<compile_context>
chip_gen: v6e
topology: v6e:2x2x1
jax: 0.10.0
libtpu: 0.0.40
codegen_flags: <defaults>
</compile_context>

<pallas_src>
import math

import jax
import jax.numpy as jnp
import numpy as np
from jax.experimental import pallas as pl
from jax.experimental.pallas import tpu as pltpu


# ----------------------------------------------------------------------------
# Single fused kernel: projection + confidence + attention + loss.
# ----------------------------------------------------------------------------
def _gca_kernel(x_ref, wp_ref, bp_ref, wc_ref, bc_ref, loss_ref, vals_ref):
    M, B, S, D = x_ref.shape
    norm = 1.0 / math.sqrt(D)

    # ---- per-modality projection: relu(x[i] @ Wp[i] + bp[i]) ---------------
    # Batch folded into matmul rows: (B*S, D) @ (D, D).  M is tiny (3), so the
    # static Python loop unrolls into a handful of MXU pushes.
    proj_rows = []   # (B*S, D) per modality
    proj_bsd = []    # (B, S, D) per modality
    for i in range(M):
        xi = x_ref[i].reshape(B * S, D)
        pi = jnp.dot(xi, wp_ref[i], preferred_element_type=jnp.float32)
        pi = jnp.maximum(pi + bp_ref[i], 0.0)                     # relu
        proj_rows.append(pi)
        proj_bsd.append(pi.reshape(B, S, D))

    # ---- confidence head: sigmoid(proj @ Wc + bc), one wide matmul ---------
    p_cat = jnp.concatenate(proj_rows, axis=0)                    # (M*B*S, D)
    z = jnp.dot(p_cat, wc_ref[...],
                preferred_element_type=jnp.float32) + bc_ref[...]
    conf = pl.reciprocal(1.0 + jnp.exp(-z), approx=False)         # sigmoid
    conf = conf.reshape(M, B, S, S)                               # (M, B, S, S)

    # ---- attention ----------------------------------------------------------
    # All query modalities stacked into rows: Q_all = (B, M*S, D).
    q_all = jnp.concatenate(proj_bsd, axis=1)
    sq_acc = jnp.zeros((B, S, S), jnp.float32)   # per-element squared error

    for j in range(M):                                            # key modality
        pj = proj_bsd[j]                                          # (B, S, D)
        logits = jnp.einsum('bqd,btd->bqt', q_all, pj,
                            preferred_element_type=jnp.float32) * norm
        logits = jnp.maximum(logits, 0.0)                         # relu
        m = jnp.max(logits, axis=-1, keepdims=True)
        e = jnp.exp(logits - m)
        denom = jnp.sum(e, axis=-1, keepdims=True)
        # Exact reciprocal (approx=True would perturb results ~1e-4 rel.).
        a = e * pl.reciprocal(denom, approx=False)                # (B, M*S, S)

        # loss term: (sum_i A_ij) vs confidence_j
        s_sum = a[:, 0:S, :]
        for i in range(1, M):
            s_sum = s_sum + a[:, i * S:(i + 1) * S, :]
        diff = s_sum - conf[j]
        sq_acc = sq_acc + diff * diff

        # values: V1_ij = A_ij @ Pj for all i at once (wide matmul);
        #         V2_ij = A_ij @ V1_ij  (RHS depends on i -> per-pair matmul)
        v1 = jnp.einsum('bqt,btd->bqd', a, pj,
                        preferred_element_type=jnp.float32)       # (B, M*S, D)
        for i in range(M):
            a_i = a[:, i * S:(i + 1) * S, :]                      # (B, S, S)
            v1_i = v1[:, i * S:(i + 1) * S, :]                    # (B, S, D)
            v2 = jnp.einsum('bst,btd->bsd', a_i, v1_i,
                            preferred_element_type=jnp.float32)   # (B, S, D)
            vals_ref[i, j] = v2

    # ---- GCA loss: mean over all M*B*S*S squared errors ---------------------
    t = jnp.sum(sq_acc, axis=0)                  # (S, S)  sum over batch
    t = jnp.sum(t, axis=1, keepdims=True)        # (S, 1)  lane reduce (XLU)
    t = jnp.sum(t, axis=0, keepdims=True)        # (1, 1)  sublane reduce
    loss_ref[...] = t * (1.0 / float(M * B * S * S))


# ----------------------------------------------------------------------------
# Wrapper
# ----------------------------------------------------------------------------
def global_confidence_attention(x, Wp, bp, Wc, bc):
    """x: [M, B, S, D]; Wp: [M, D, D] (== torch weight.T), bp: [M, D];
    Wc: [D, S] (== torch weight.T), bc: [S].
    Returns (GCA_loss scalar, attn_values [B, M*M*S*D])."""
    M, B, S, D = x.shape

    loss2d, vals = pl.pallas_call(
        _gca_kernel,
        out_shape=(jax.ShapeDtypeStruct((1, 1), jnp.float32),
                   jax.ShapeDtypeStruct((M, M, B, S, D), jnp.float32)),
        in_specs=[pl.BlockSpec(memory_space=pltpu.MemorySpace.VMEM)] * 5,
        out_specs=(pl.BlockSpec(memory_space=pltpu.MemorySpace.VMEM),
                   pl.BlockSpec(memory_space=pltpu.MemorySpace.VMEM)),
    )(x, Wp, bp.reshape(M, 1, D), Wc, bc.reshape(1, S))

    gca_loss = loss2d[0, 0]
    # Row-major re-chunk identical to torch's .view(B, M*M*S*D) on the
    # contiguous (M, M, B, S, D) tensor; free (bitcast) in XLA.
    attn_values = vals.reshape(B, M * M * S * D)
    return gca_loss, attn_values


# ----------------------------------------------------------------------------
# Pure-JAX reference (mirrors the PyTorch forward) for a correctness check.
# ----------------------------------------------------------------------------
def _reference(x, Wp, bp, Wc, bc):
    M, B, S, D = x.shape
    norm = 1.0 / np.sqrt(D)
    proj = jax.nn.relu(jnp.einsum('mbsd,mde->mbse', x, Wp) + bp[:, None, None, :])
    conf = jax.nn.sigmoid(jnp.einsum('mbsd,dt->mbst', proj, Wc) + bc)
    qk = jax.nn.relu(jnp.einsum('ibsd,jbtd->ijbst', proj, proj) * norm)
    a = jax.nn.softmax(qk, axis=-1)
    v = jnp.einsum('ijbst,jbtd->ijbsd', a, proj)
    loss = jnp.mean((jnp.sum(a, axis=0) - conf) ** 2)
    out = jnp.einsum('ijbst,ijbtd->ijbsd', a, v).reshape(B, M * M * S * D)
    return loss, out


if __name__ == "__main__":
    M, B, S, D = 3, 2, 8, 32   # modality_num=3, batch=2, seq_len=8, feature_dim=32
    key = jax.random.PRNGKey(0)
    k1, k2, k3, k4, k5 = jax.random.split(key, 5)

    x = jax.random.normal(k1, (M, B, S, D), jnp.float32)
    # Deterministic synthetic parameters (W stored as [in, out] == torch weight.T)
    Wp = jax.random.normal(k2, (M, D, D), jnp.float32) * (1.0 / np.sqrt(D))
    bp = jax.random.normal(k3, (M, D), jnp.float32) * 0.1
    Wc = jax.random.normal(k4, (D, S), jnp.float32) * (1.0 / np.sqrt(D))
    bc = jax.random.normal(k5, (S,), jnp.float32) * 0.1

    fn = jax.jit(global_confidence_attention)
    loss, out = fn(x, Wp, bp, Wc, bc)
    jax.block_until_ready((loss, out))

    ref_loss, ref_out = _reference(x, Wp, bp, Wc, bc)
    assert out.shape == (B, M * M * S * D)
    np.testing.assert_allclose(np.asarray(loss), np.asarray(ref_loss),
                               rtol=1e-5, atol=1e-5)
    np.testing.assert_allclose(np.asarray(out), np.asarray(ref_out),
                               rtol=1e-4, atol=1e-4)
    print("KERNEL_OK")
</pallas_src>

<mosaic_0001>
module attributes {stable_mosaic.version = 11 : i64} {
  func.func @_gca_kernel(%arg0: memref<3x2x8x32xf32, #tpu.memory_space<vmem>>, %arg1: memref<3x32x32xf32, #tpu.memory_space<vmem>>, %arg2: memref<3x1x32xf32, #tpu.memory_space<vmem>>, %arg3: memref<32x8xf32, #tpu.memory_space<vmem>>, %arg4: memref<1x8xf32, #tpu.memory_space<vmem>>, %arg5: memref<1x1xf32, #tpu.memory_space<vmem>>, %arg6: memref<3x3x2x8x32xf32, #tpu.memory_space<vmem>>) attributes {dimension_semantics = [], scalar_prefetch = 0 : i64, scratch_operands = 0 : i64, tpu.core_type = #tpu.core_type<tc>} {
    %c0 = arith.constant 0 : index
    %c0_0 = arith.constant 0 : index
    %c0_1 = arith.constant 0 : index
    %c0_2 = arith.constant 0 : index
    %0 = vector.load %arg0[%c0, %c0_0, %c0_1, %c0_2] : memref<3x2x8x32xf32, #tpu.memory_space<vmem>>, vector<1x2x8x32xf32>
    %1 = vector.shape_cast %0 : vector<1x2x8x32xf32> to vector<2x8x32xf32>
    %2 = vector.shape_cast %1 : vector<2x8x32xf32> to vector<16x32xf32>
    %c0_3 = arith.constant 0 : index
    %c0_4 = arith.constant 0 : index
    %c0_5 = arith.constant 0 : index
    %3 = vector.load %arg1[%c0_3, %c0_4, %c0_5] : memref<3x32x32xf32, #tpu.memory_space<vmem>>, vector<1x32x32xf32>
    %4 = vector.shape_cast %3 : vector<1x32x32xf32> to vector<32x32xf32>
    %cst = arith.constant dense<0.000000e+00> : vector<16x32xf32>
    %5 = tpu.matmul %2, %4, %cst {dimension_numbers = #tpu.dot_dimension_numbers<[1], [0], [0], [1], [0, 0, 1, 1], [], []>} : vector<16x32xf32>, vector<32x32xf32>, vector<16x32xf32> -> vector<16x32xf32>
    %c0_6 = arith.constant 0 : index
    %c0_7 = arith.constant 0 : index
    %c0_8 = arith.constant 0 : index
    %6 = vector.load %arg2[%c0_6, %c0_7, %c0_8] : memref<3x1x32xf32, #tpu.memory_space<vmem>>, vector<1x1x32xf32>
    %7 = vector.shape_cast %6 : vector<1x1x32xf32> to vector<1x32xf32>
    %8 = vector.broadcast %7 : vector<1x32xf32> to vector<16x32xf32>
    %9 = arith.addf %5, %8 : vector<16x32xf32>
    %cst_9 = arith.constant 0.000000e+00 : f32
    %10 = vector.broadcast %cst_9 : f32 to vector<16x32xf32>
    %11 = arith.maximumf %9, %10 : vector<16x32xf32>
    %12 = vector.shape_cast %11 : vector<16x32xf32> to vector<2x8x32xf32>
    %c1 = arith.constant 1 : index
    %c0_10 = arith.constant 0 : index
    %c0_11 = arith.constant 0 : index
    %c0_12 = arith.constant 0 : index
    %13 = vector.load %arg0[%c1, %c0_10, %c0_11, %c0_12] : memref<3x2x8x32xf32, #tpu.memory_space<vmem>>, vector<1x2x8x32xf32>
    %14 = vector.shape_cast %13 : vector<1x2x8x32xf32> to vector<2x8x32xf32>
    %15 = vector.shape_cast %14 : vector<2x8x32xf32> to vector<16x32xf32>
    %c1_13 = arith.constant 1 : index
    %c0_14 = arith.constant 0 : index
    %c0_15 = arith.constant 0 : index
    %16 = vector.load %arg1[%c1_13, %c0_14, %c0_15] : memref<3x32x32xf32, #tpu.memory_space<vmem>>, vector<1x32x32xf32>
    %17 = vector.shape_cast %16 : vector<1x32x32xf32> to vector<32x32xf32>
    %cst_16 = arith.constant dense<0.000000e+00> : vector<16x32xf32>
    %18 = tpu.matmul %15, %17, %cst_16 {dimension_numbers = #tpu.dot_dimension_numbers<[1], [0], [0], [1], [0, 0, 1, 1], [], []>} : vector<16x32xf32>, vector<32x32xf32>, vector<16x32xf32> -> vector<16x32xf32>
    %c1_17 = arith.constant 1 : index
    %c0_18 = arith.constant 0 : index
    %c0_19 = arith.constant 0 : index
    %19 = vector.load %arg2[%c1_17, %c0_18, %c0_19] : memref<3x1x32xf32, #tpu.memory_space<vmem>>, vector<1x1x32xf32>
    %20 = vector.shape_cast %19 : vector<1x1x32xf32> to vector<1x32xf32>
    %21 = vector.broadcast %20 : vector<1x32xf32> to vector<16x32xf32>
    %22 = arith.addf %18, %21 : vector<16x32xf32>
    %cst_20 = arith.constant 0.000000e+00 : f32
    %23 = vector.broadcast %cst_20 : f32 to vector<16x32xf32>
    %24 = arith.maximumf %22, %23 : vector<16x32xf32>
    %25 = vector.shape_cast %24 : vector<16x32xf32> to vector<2x8x32xf32>
    %c2 = arith.constant 2 : index
    %c0_21 = arith.constant 0 : index
    %c0_22 = arith.constant 0 : index
    %c0_23 = arith.constant 0 : index
    %26 = vector.load %arg0[%c2, %c0_21, %c0_22, %c0_23] : memref<3x2x8x32xf32, #tpu.memory_space<vmem>>, vector<1x2x8x32xf32>
    %27 = vector.shape_cast %26 : vector<1x2x8x32xf32> to vector<2x8x32xf32>
    %28 = vector.shape_cast %27 : vector<2x8x32xf32> to vector<16x32xf32>
    %c2_24 = arith.constant 2 : index
    %c0_25 = arith.constant 0 : index
    %c0_26 = arith.constant 0 : index
    %29 = vector.load %arg1[%c2_24, %c0_25, %c0_26] : memref<3x32x32xf32, #tpu.memory_space<vmem>>, vector<1x32x32xf32>
    %30 = vector.shape_cast %29 : vector<1x32x32xf32> to vector<32x32xf32>
    %cst_27 = arith.constant dense<0.000000e+00> : vector<16x32xf32>
    %31 = tpu.matmul %28, %30, %cst_27 {dimension_numbers = #tpu.dot_dimension_numbers<[1], [0], [0], [1], [0, 0, 1, 1], [], []>} : vector<16x32xf32>, vector<32x32xf32>, vector<16x32xf32> -> vector<16x32xf32>
    %c2_28 = arith.constant 2 : index
    %c0_29 = arith.constant 0 : index
    %c0_30 = arith.constant 0 : index
    %32 = vector.load %arg2[%c2_28, %c0_29, %c0_30] : memref<3x1x32xf32, #tpu.memory_space<vmem>>, vector<1x1x32xf32>
    %33 = vector.shape_cast %32 : vector<1x1x32xf32> to vector<1x32xf32>
    %34 = vector.broadcast %33 : vector<1x32xf32> to vector<16x32xf32>
    %35 = arith.addf %31, %34 : vector<16x32xf32>
    %cst_31 = arith.constant 0.000000e+00 : f32
    %36 = vector.broadcast %cst_31 : f32 to vector<16x32xf32>
    %37 = arith.maximumf %35, %36 : vector<16x32xf32>
    %38 = vector.shape_cast %37 : vector<16x32xf32> to vector<2x8x32xf32>
    %39 = tpu.concatenate %11, %24, %37 in 0 : vector<16x32xf32>, vector<16x32xf32>, vector<16x32xf32> -> vector<48x32xf32>
    %c0_32 = arith.constant 0 : index
    %c0_33 = arith.constant 0 : index
    %40 = vector.load %arg3[%c0_32, %c0_33] : memref<32x8xf32, #tpu.memory_space<vmem>>, vector<32x8xf32>
    %cst_34 = arith.constant dense<0.000000e+00> : vector<48x8xf32>
    %41 = tpu.matmul %39, %40, %cst_34 {dimension_numbers = #tpu.dot_dimension_numbers<[1], [0], [0], [1], [0, 0, 1, 1], [], []>} : vector<48x32xf32>, vector<32x8xf32>, vector<48x8xf32> -> vector<48x8xf32>
    %c0_35 = arith.constant 0 : index
    %c0_36 = arith.constant 0 : index
    %42 = vector.load %arg4[%c0_35, %c0_36] : memref<1x8xf32, #tpu.memory_space<vmem>>, vector<1x8xf32>
    %43 = vector.broadcast %42 : vector<1x8xf32> to vector<48x8xf32>
    %44 = arith.addf %41, %43 : vector<48x8xf32>
    %cst_37 = arith.constant 0.000000e+00 : f32
    %45 = vector.broadcast %cst_37 : f32 to vector<48x8xf32>
    %46 = arith.subf %45, %44 : vector<48x8xf32>
    %47 = math.exp %46 : vector<48x8xf32>
    %cst_38 = arith.constant 1.000000e+00 : f32
    %48 = vector.broadcast %cst_38 : f32 to vector<48x8xf32>
    %49 = arith.addf %48, %47 : vector<48x8xf32>
    %50 = tpu.reciprocal %49 : vector<48x8xf32> -> vector<48x8xf32>
    %51 = vector.shape_cast %50 : vector<48x8xf32> to vector<3x2x8x8xf32>
    %52 = tpu.concatenate %12, %25, %38 in 1 : vector<2x8x32xf32>, vector<2x8x32xf32>, vector<2x8x32xf32> -> vector<2x24x32xf32>
    %cst_39 = arith.constant 0.000000e+00 : f32
    %53 = vector.broadcast %cst_39 : f32 to vector<2x8x8xf32>
    "tpu.trace_start"() <{level = 10 : i32, message = "bqd,btd->bqt"}> : () -> ()
    %cst_40 = arith.constant dense<0.000000e+00> : vector<2x24x8xf32>
    %54 = tpu.matmul %52, %12, %cst_40 {dimension_numbers = #tpu.dot_dimension_numbers<[2], [2], [1], [1], [0, 0, 0, 1, 1, 1], [0], [0]>} : vector<2x24x32xf32>, vector<2x8x32xf32>, vector<2x24x8xf32> -> vector<2x24x8xf32>
    "tpu.trace_stop"() : () -> ()
    %cst_41 = arith.constant 0.176776692 : f32
    %55 = vector.broadcast %cst_41 : f32 to vector<2x24x8xf32>
    %56 = arith.mulf %54, %55 : vector<2x24x8xf32>
    %cst_42 = arith.constant 0.000000e+00 : f32
    %57 = vector.broadcast %cst_42 : f32 to vector<2x24x8xf32>
    %58 = arith.maximumf %56, %57 : vector<2x24x8xf32>
    %cst_43 = arith.constant dense<0xFF800000> : vector<2x24xf32>
    %59 = vector.multi_reduction <maximumf>, %58, %cst_43 [2] : vector<2x24x8xf32> to vector<2x24xf32>
    %60 = vector.shape_cast %59 : vector<2x24xf32> to vector<2x24x1xf32>
    %61 = vector.broadcast %60 : vector<2x24x1xf32> to vector<2x24x8xf32>
    %62 = arith.subf %58, %61 : vector<2x24x8xf32>
    %63 = math.exp %62 : vector<2x24x8xf32>
    %cst_44 = arith.constant dense<0.000000e+00> : vector<2x24xf32>
    %64 = vector.multi_reduction <add>, %63, %cst_44 [2] : vector<2x24x8xf32> to vector<2x24xf32>
    %65 = vector.shape_cast %64 : vector<2x24xf32> to vector<2x24x1xf32>
    %66 = tpu.reciprocal %65 : vector<2x24x1xf32> -> vector<2x24x1xf32>
    %67 = vector.broadcast %66 : vector<2x24x1xf32> to vector<2x24x8xf32>
    %68 = arith.mulf %63, %67 : vector<2x24x8xf32>
    %69 = vector.extract_strided_slice %68 {offsets = [0, 0, 0], sizes = [2, 8, 8], strides = [1, 1, 1]} : vector<2x24x8xf32> to vector<2x8x8xf32>
    %70 = vector.extract_strided_slice %68 {offsets = [0, 8, 0], sizes = [2, 8, 8], strides = [1, 1, 1]} : vector<2x24x8xf32> to vector<2x8x8xf32>
    %71 = arith.addf %69, %70 : vector<2x8x8xf32>
    %72 = vector.extract_strided_slice %68 {offsets = [0, 16, 0], sizes = [2, 8, 8], strides = [1, 1, 1]} : vector<2x24x8xf32> to vector<2x8x8xf32>
    %73 = arith.addf %71, %72 : vector<2x8x8xf32>
    %74 = vector.extract_strided_slice %51 {offsets = [0, 0, 0, 0], sizes = [1, 2, 8, 8], strides = [1, 1, 1, 1]} : vector<3x2x8x8xf32> to vector<1x2x8x8xf32>
    %75 = vector.shape_cast %74 : vector<1x2x8x8xf32> to vector<2x8x8xf32>
    %76 = arith.subf %73, %75 : vector<2x8x8xf32>
    %77 = arith.mulf %76, %76 : vector<2x8x8xf32>
    %78 = arith.addf %53, %77 : vector<2x8x8xf32>
    "tpu.trace_start"() <{level = 10 : i32, message = "bqt,btd->bqd"}> : () -> ()
    %cst_45 = arith.constant dense<0.000000e+00> : vector<2x24x32xf32>
    %79 = tpu.matmul %68, %12, %cst_45 {dimension_numbers = #tpu.dot_dimension_numbers<[2], [1], [1], [2], [0, 0, 0, 1, 1, 2], [0], [0]>} : vector<2x24x8xf32>, vector<2x8x32xf32>, vector<2x24x32xf32> -> vector<2x24x32xf32>
    "tpu.trace_stop"() : () -> ()
    %80 = vector.extract_strided_slice %68 {offsets = [0, 0, 0], sizes = [2, 8, 8], strides = [1, 1, 1]} : vector<2x24x8xf32> to vector<2x8x8xf32>
    %81 = vector.extract_strided_slice %79 {offsets = [0, 0, 0], sizes = [2, 8, 32], strides = [1, 1, 1]} : vector<2x24x32xf32> to vector<2x8x32xf32>
    "tpu.trace_start"() <{level = 10 : i32, message = "bst,btd->bsd"}> : () -> ()
    %cst_46 = arith.constant dense<0.000000e+00> : vector<2x8x32xf32>
    %82 = tpu.matmul %80, %81, %cst_46 {dimension_numbers = #tpu.dot_dimension_numbers<[2], [1], [1], [2], [0, 0, 0, 1, 1, 2], [0], [0]>} : vector<2x8x8xf32>, vector<2x8x32xf32>, vector<2x8x32xf32> -> vector<2x8x32xf32>
    "tpu.trace_stop"() : () -> ()
    %c0_47 = arith.constant 0 : index
    %c0_48 = arith.constant 0 : index
    %c0_49 = arith.constant 0 : index
    %c0_50 = arith.constant 0 : index
    %c0_51 = arith.constant 0 : index
    %83 = vector.load %arg6[%c0_47, %c0_48, %c0_49, %c0_50, %c0_51] : memref<3x3x2x8x32xf32, #tpu.memory_space<vmem>>, vector<1x1x2x8x32xf32>
    %84 = vector.shape_cast %83 : vector<1x1x2x8x32xf32> to vector<2x8x32xf32>
    %85 = vector.shape_cast %82 : vector<2x8x32xf32> to vector<1x1x2x8x32xf32>
    tpu.vector_store %arg6[%c0_47, %c0_48, %c0_49, %c0_50, %c0_51], %85 {strides = array<i32>} : memref<3x3x2x8x32xf32, #tpu.memory_space<vmem>>, vector<1x1x2x8x32xf32>,
    %86 = vector.extract_strided_slice %68 {offsets = [0, 8, 0], sizes = [2, 8, 8], strides = [1, 1, 1]} : vector<2x24x8xf32> to vector<2x8x8xf32>
    %87 = vector.extract_strided_slice %79 {offsets = [0, 8, 0], sizes = [2, 8, 32], strides = [1, 1, 1]} : vector<2x24x32xf32> to vector<2x8x32xf32>
    "tpu.trace_start"() <{level = 10 : i32, message = "bst,btd->bsd"}> : () -> ()
    %cst_52 = arith.constant dense<0.000000e+00> : vector<2x8x32xf32>
    %88 = tpu.matmul %86, %87, %cst_52 {dimension_numbers = #tpu.dot_dimension_numbers<[2], [1], [1], [2], [0, 0, 0, 1, 1, 2], [0], [0]>} : vector<2x8x8xf32>, vector<2x8x32xf32>, vector<2x8x32xf32> -> vector<2x8x32xf32>
    "tpu.trace_stop"() : () -> ()
    %c1_53 = arith.constant 1 : index
    %c0_54 = arith.constant 0 : index
    %c0_55 = arith.constant 0 : index
    %c0_56 = arith.constant 0 : index
    %c0_57 = arith.constant 0 : index
    %89 = vector.load %arg6[%c1_53, %c0_54, %c0_55, %c0_56, %c0_57] : memref<3x3x2x8x32xf32, #tpu.memory_space<vmem>>, vector<1x1x2x8x32xf32>
    %90 = vector.shape_cast %89 : vector<1x1x2x8x32xf32> to vector<2x8x32xf32>
    %91 = vector.shape_cast %88 : vector<2x8x32xf32> to vector<1x1x2x8x32xf32>
    tpu.vector_store %arg6[%c1_53, %c0_54, %c0_55, %c0_56, %c0_57], %91 {strides = array<i32>} : memref<3x3x2x8x32xf32, #tpu.memory_space<vmem>>, vector<1x1x2x8x32xf32>,
    %92 = vector.extract_strided_slice %68 {offsets = [0, 16, 0], sizes = [2, 8, 8], strides = [1, 1, 1]} : vector<2x24x8xf32> to vector<2x8x8xf32>
    %93 = vector.extract_strided_slice %79 {offsets = [0, 16, 0], sizes = [2, 8, 32], strides = [1, 1, 1]} : vector<2x24x32xf32> to vector<2x8x32xf32>
    "tpu.trace_start"() <{level = 10 : i32, message = "bst,btd->bsd"}> : () -> ()
    %cst_58 = arith.constant dense<0.000000e+00> : vector<2x8x32xf32>
    %94 = tpu.matmul %92, %93, %cst_58 {dimension_numbers = #tpu.dot_dimension_numbers<[2], [1], [1], [2], [0, 0, 0, 1, 1, 2], [0], [0]>} : vector<2x8x8xf32>, vector<2x8x32xf32>, vector<2x8x32xf32> -> vector<2x8x32xf32>
    "tpu.trace_stop"() : () -> ()
    %c2_59 = arith.constant 2 : index
    %c0_60 = arith.constant 0 : index
    %c0_61 = arith.constant 0 : index
    %c0_62 = arith.constant 0 : index
    %c0_63 = arith.constant 0 : index
    %95 = vector.load %arg6[%c2_59, %c0_60, %c0_61, %c0_62, %c0_63] : memref<3x3x2x8x32xf32, #tpu.memory_space<vmem>>, vector<1x1x2x8x32xf32>
    %96 = vector.shape_cast %95 : vector<1x1x2x8x32xf32> to vector<2x8x32xf32>
    %97 = vector.shape_cast %94 : vector<2x8x32xf32> to vector<1x1x2x8x32xf32>
    tpu.vector_store %arg6[%c2_59, %c0_60, %c0_61, %c0_62, %c0_63], %97 {strides = array<i32>} : memref<3x3x2x8x32xf32, #tpu.memory_space<vmem>>, vector<1x1x2x8x32xf32>,
    "tpu.trace_start"() <{level = 10 : i32, message = "bqd,btd->bqt"}> : () -> ()
    %cst_64 = arith.constant dense<0.000000e+00> : vector<2x24x8xf32>
    %98 = tpu.matmul %52, %25, %cst_64 {dimension_numbers = #tpu.dot_dimension_numbers<[2], [2], [1], [1], [0, 0, 0, 1, 1, 1], [0], [0]>} : vector<2x24x32xf32>, vector<2x8x32xf32>, vector<2x24x8xf32> -> vector<2x24x8xf32>
    "tpu.trace_stop"() : () -> ()
    %cst_65 = arith.constant 0.176776692 : f32
    %99 = vector.broadcast %cst_65 : f32 to vector<2x24x8xf32>
    %100 = arith.mulf %98, %99 : vector<2x24x8xf32>
    %cst_66 = arith.constant 0.000000e+00 : f32
    %101 = vector.broadcast %cst_66 : f32 to vector<2x24x8xf32>
    %102 = arith.maximumf %100, %101 : vector<2x24x8xf32>
    %cst_67 = arith.constant dense<0xFF800000> : vector<2x24xf32>
    %103 = vector.multi_reduction <maximumf>, %102, %cst_67 [2] : vector<2x24x8xf32> to vector<2x24xf32>
    %104 = vector.shape_cast %103 : vector<2x24xf32> to vector<2x24x1xf32>
    %105 = vector.broadcast %104 : vector<2x24x1xf32> to vector<2x24x8xf32>
    %106 = arith.subf %102, %105 : vector<2x24x8xf32>
    %107 = math.exp %106 : vector<2x24x8xf32>
    %cst_68 = arith.constant dense<0.000000e+00> : vector<2x24xf32>
    %108 = vector.multi_reduction <add>, %107, %cst_68 [2] : vector<2x24x8xf32> to vector<2x24xf32>
    %109 = vector.shape_cast %108 : vector<2x24xf32> to vector<2x24x1xf32>
    %110 = tpu.reciprocal %109 : vector<2x24x1xf32> -> vector<2x24x1xf32>
    %111 = vector.broadcast %110 : vector<2x24x1xf32> to vector<2x24x8xf32>
    %112 = arith.mulf %107, %111 : vector<2x24x8xf32>
    %113 = vector.extract_strided_slice %112 {offsets = [0, 0, 0], sizes = [2, 8, 8], strides = [1, 1, 1]} : vector<2x24x8xf32> to vector<2x8x8xf32>
    %114 = vector.extract_strided_slice %112 {offsets = [0, 8, 0], sizes = [2, 8, 8], strides = [1, 1, 1]} : vector<2x24x8xf32> to vector<2x8x8xf32>
    %115 = arith.addf %113, %114 : vector<2x8x8xf32>
    %116 = vector.extract_strided_slice %112 {offsets = [0, 16, 0], sizes = [2, 8, 8], strides = [1, 1, 1]} : vector<2x24x8xf32> to vector<2x8x8xf32>
    %117 = arith.addf %115, %116 : vector<2x8x8xf32>
    %118 = vector.extract_strided_slice %51 {offsets = [1, 0, 0, 0], sizes = [1, 2, 8, 8], strides = [1, 1, 1, 1]} : vector<3x2x8x8xf32> to vector<1x2x8x8xf32>
    %119 = vector.shape_cast %118 : vector<1x2x8x8xf32> to vector<2x8x8xf32>
    %120 = arith.subf %117, %119 : vector<2x8x8xf32>
    %121 = arith.mulf %120, %120 : vector<2x8x8xf32>
    %122 = arith.addf %78, %121 : vector<2x8x8xf32>
    "tpu.trace_start"() <{level = 10 : i32, message = "bqt,btd->bqd"}> : () -> ()
    %cst_69 = arith.constant dense<0.000000e+00> : vector<2x24x32xf32>
    %123 = tpu.matmul %112, %25, %cst_69 {dimension_numbers = #tpu.dot_dimension_numbers<[2], [1], [1], [2], [0, 0, 0, 1, 1, 2], [0], [0]>} : vector<2x24x8xf32>, vector<2x8x32xf32>, vector<2x24x32xf32> -> vector<2x24x32xf32>
    "tpu.trace_stop"() : () -> ()
    %124 = vector.extract_strided_slice %112 {offsets = [0, 0, 0], sizes = [2, 8, 8], strides = [1, 1, 1]} : vector<2x24x8xf32> to vector<2x8x8xf32>
    %125 = vector.extract_strided_slice %123 {offsets = [0, 0, 0], sizes = [2, 8, 32], strides = [1, 1, 1]} : vector<2x24x32xf32> to vector<2x8x32xf32>
    "tpu.trace_start"() <{level = 10 : i32, message = "bst,btd->bsd"}> : () -> ()
    %cst_70 = arith.constant dense<0.000000e+00> : vector<2x8x32xf32>
    %126 = tpu.matmul %124, %125, %cst_70 {dimension_numbers = #tpu.dot_dimension_numbers<[2], [1], [1], [2], [0, 0, 0, 1, 1, 2], [0], [0]>} : vector<2x8x8xf32>, vector<2x8x32xf32>, vector<2x8x32xf32> -> vector<2x8x32xf32>
    "tpu.trace_stop"() : () -> ()
    %c0_71 = arith.constant 0 : index
    %c1_72 = arith.constant 1 : index
    %c0_73 = arith.constant 0 : index
    %c0_74 = arith.constant 0 : index
    %c0_75 = arith.constant 0 : index
    %127 = vector.load %arg6[%c0_71, %c1_72, %c0_73, %c0_74, %c0_75] : memref<3x3x2x8x32xf32, #tpu.memory_space<vmem>>, vector<1x1x2x8x32xf32>
    %128 = vector.shape_cast %127 : vector<1x1x2x8x32xf32> to vector<2x8x32xf32>
    %129 = vector.shape_cast %126 : vector<2x8x32xf32> to vector<1x1x2x8x32xf32>
    tpu.vector_store %arg6[%c0_71, %c1_72, %c0_73, %c0_74, %c0_75], %129 {strides = array<i32>} : memref<3x3x2x8x32xf32, #tpu.memory_space<vmem>>, vector<1x1x2x8x32xf32>,
    %130 = vector.extract_strided_slice %112 {offsets = [0, 8, 0], sizes = [2, 8, 8], strides = [1, 1, 1]} : vector<2x24x8xf32> to vector<2x8x8xf32>
    %131 = vector.extract_strided_slice %123 {offsets = [0, 8, 0], sizes = [2, 8, 32], strides = [1, 1, 1]} : vector<2x24x32xf32> to vector<2x8x32xf32>
    "tpu.trace_start"() <{level = 10 : i32, message = "bst,btd->bsd"}> : () -> ()
    %cst_76 = arith.constant dense<0.000000e+00> : vector<2x8x32xf32>
    %132 = tpu.matmul %130, %131, %cst_76 {dimension_numbers = #tpu.dot_dimension_numbers<[2], [1], [1], [2], [0, 0, 0, 1, 1, 2], [0], [0]>} : vector<2x8x8xf32>, vector<2x8x32xf32>, vector<2x8x32xf32> -> vector<2x8x32xf32>
    "tpu.trace_stop"() : () -> ()
    %c1_77 = arith.constant 1 : index
    %c1_78 = arith.constant 1 : index
    %c0_79 = arith.constant 0 : index
    %c0_80 = arith.constant 0 : index
    %c0_81 = arith.constant 0 : index
    %133 = vector.load %arg6[%c1_77, %c1_78, %c0_79, %c0_80, %c0_81] : memref<3x3x2x8x32xf32, #tpu.memory_space<vmem>>, vector<1x1x2x8x32xf32>
    %134 = vector.shape_cast %133 : vector<1x1x2x8x32xf32> to vector<2x8x32xf32>
    %135 = vector.shape_cast %132 : vector<2x8x32xf32> to vector<1x1x2x8x32xf32>
    tpu.vector_store %arg6[%c1_77, %c1_78, %c0_79, %c0_80, %c0_81], %135 {strides = array<i32>} : memref<3x3x2x8x32xf32, #tpu.memory_space<vmem>>, vector<1x1x2x8x32xf32>,
    %136 = vector.extract_strided_slice %112 {offsets = [0, 16, 0], sizes = [2, 8, 8], strides = [1, 1, 1]} : vector<2x24x8xf32> to vector<2x8x8xf32>
    %137 = vector.extract_strided_slice %123 {offsets = [0, 16, 0], sizes = [2, 8, 32], strides = [1, 1, 1]} : vector<2x24x32xf32> to vector<2x8x32xf32>
    "tpu.trace_start"() <{level = 10 : i32, message = "bst,btd->bsd"}> : () -> ()
    %cst_82 = arith.constant dense<0.000000e+00> : vector<2x8x32xf32>
    %138 = tpu.matmul %136, %137, %cst_82 {dimension_numbers = #tpu.dot_dimension_numbers<[2], [1], [1], [2], [0, 0, 0, 1, 1, 2], [0], [0]>} : vector<2x8x8xf32>, vector<2x8x32xf32>, vector<2x8x32xf32> -> vector<2x8x32xf32>
    "tpu.trace_stop"() : () -> ()
    %c2_83 = arith.constant 2 : index
    %c1_84 = arith.constant 1 : index
    %c0_85 = arith.constant 0 : index
    %c0_86 = arith.constant 0 : index
    %c0_87 = arith.constant 0 : index
    %139 = vector.load %arg6[%c2_83, %c1_84, %c0_85, %c0_86, %c0_87] : memref<3x3x2x8x32xf32, #tpu.memory_space<vmem>>, vector<1x1x2x8x32xf32>
    %140 = vector.shape_cast %139 : vector<1x1x2x8x32xf32> to vector<2x8x32xf32>
    %141 = vector.shape_cast %138 : vector<2x8x32xf32> to vector<1x1x2x8x32xf32>
    tpu.vector_store %arg6[%c2_83, %c1_84, %c0_85, %c0_86, %c0_87], %141 {strides = array<i32>} : memref<3x3x2x8x32xf32, #tpu.memory_space<vmem>>, vector<1x1x2x8x32xf32>,
    "tpu.trace_start"() <{level = 10 : i32, message = "bqd,btd->bqt"}> : () -> ()
    %cst_88 = arith.constant dense<0.000000e+00> : vector<2x24x8xf32>
    %142 = tpu.matmul %52, %38, %cst_88 {dimension_numbers = #tpu.dot_dimension_numbers<[2], [2], [1], [1], [0, 0, 0, 1, 1, 1], [0], [0]>} : vector<2x24x32xf32>, vector<2x8x32xf32>, vector<2x24x8xf32> -> vector<2x24x8xf32>
    "tpu.trace_stop"() : () -> ()
    %cst_89 = arith.constant 0.176776692 : f32
    %143 = vector.broadcast %cst_89 : f32 to vector<2x24x8xf32>
    %144 = arith.mulf %142, %143 : vector<2x24x8xf32>
    %cst_90 = arith.constant 0.000000e+00 : f32
    %145 = vector.broadcast %cst_90 : f32 to vector<2x24x8xf32>
    %146 = arith.maximumf %144, %145 : vector<2x24x8xf32>
    %cst_91 = arith.constant dense<0xFF800000> : vector<2x24xf32>
    %147 = vector.multi_reduction <maximumf>, %146, %cst_91 [2] : vector<2x24x8xf32> to vector<2x24xf32>
    %148 = vector.shape_cast %147 : vector<2x24xf32> to vector<2x24x1xf32>
    %149 = vector.broadcast %148 : vector<2x24x1xf32> to vector<2x24x8xf32>
    %150 = arith.subf %146, %149 : vector<2x24x8xf32>
    %151 = math.exp %150 : vector<2x24x8xf32>
    %cst_92 = arith.constant dense<0.000000e+00> : vector<2x24xf32>
    %152 = vector.multi_reduction <add>, %151, %cst_92 [2] : vector<2x24x8xf32> to vector<2x24xf32>
    %153 = vector.shape_cast %152 : vector<2x24xf32> to vector<2x24x1xf32>
    %154 = tpu.reciprocal %153 : vector<2x24x1xf32> -> vector<2x24x1xf32>
    %155 = vector.broadcast %154 : vector<2x24x1xf32> to vector<2x24x8xf32>
    %156 = arith.mulf %151, %155 : vector<2x24x8xf32>
    %157 = vector.extract_strided_slice %156 {offsets = [0, 0, 0], sizes = [2, 8, 8], strides = [1, 1, 1]} : vector<2x24x8xf32> to vector<2x8x8xf32>
    %158 = vector.extract_strided_slice %156 {offsets = [0, 8, 0], sizes = [2, 8, 8], strides = [1, 1, 1]} : vector<2x24x8xf32> to vector<2x8x8xf32>
    %159 = arith.addf %157, %158 : vector<2x8x8xf32>
    %160 = vector.extract_strided_slice %156 {offsets = [0, 16, 0], sizes = [2, 8, 8], strides = [1, 1, 1]} : vector<2x24x8xf32> to vector<2x8x8xf32>
    %161 = arith.addf %159, %160 : vector<2x8x8xf32>
    %162 = vector.extract_strided_slice %51 {offsets = [2, 0, 0, 0], sizes = [1, 2, 8, 8], strides = [1, 1, 1, 1]} : vector<3x2x8x8xf32> to vector<1x2x8x8xf32>
    %163 = vector.shape_cast %162 : vector<1x2x8x8xf32> to vector<2x8x8xf32>
    %164 = arith.subf %161, %163 : vector<2x8x8xf32>
    %165 = arith.mulf %164, %164 : vector<2x8x8xf32>
    %166 = arith.addf %122, %165 : vector<2x8x8xf32>
    "tpu.trace_start"() <{level = 10 : i32, message = "bqt,btd->bqd"}> : () -> ()
    %cst_93 = arith.constant dense<0.000000e+00> : vector<2x24x32xf32>
    %167 = tpu.matmul %156, %38, %cst_93 {dimension_numbers = #tpu.dot_dimension_numbers<[2], [1], [1], [2], [0, 0, 0, 1, 1, 2], [0], [0]>} : vector<2x24x8xf32>, vector<2x8x32xf32>, vector<2x24x32xf32> -> vector<2x24x32xf32>
    "tpu.trace_stop"() : () -> ()
    %168 = vector.extract_strided_slice %156 {offsets = [0, 0, 0], sizes = [2, 8, 8], strides = [1, 1, 1]} : vector<2x24x8xf32> to vector<2x8x8xf32>
    %169 = vector.extract_strided_slice %167 {offsets = [0, 0, 0], sizes = [2, 8, 32], strides = [1, 1, 1]} : vector<2x24x32xf32> to vector<2x8x32xf32>
    "tpu.trace_start"() <{level = 10 : i32, message = "bst,btd->bsd"}> : () -> ()
    %cst_94 = arith.constant dense<0.000000e+00> : vector<2x8x32xf32>
    %170 = tpu.matmul %168, %169, %cst_94 {dimension_numbers = #tpu.dot_dimension_numbers<[2], [1], [1], [2], [0, 0, 0, 1, 1, 2], [0], [0]>} : vector<2x8x8xf32>, vector<2x8x32xf32>, vector<2x8x32xf32> -> vector<2x8x32xf32>
    "tpu.trace_stop"() : () -> ()
    %c0_95 = arith.constant 0 : index
    %c2_96 = arith.constant 2 : index
    %c0_97 = arith.constant 0 : index
    %c0_98 = arith.constant 0 : index
    %c0_99 = arith.constant 0 : index
    %171 = vector.load %arg6[%c0_95, %c2_96, %c0_97, %c0_98, %c0_99] : memref<3x3x2x8x32xf32, #tpu.memory_space<vmem>>, vector<1x1x2x8x32xf32>
    %172 = vector.shape_cast %171 : vector<1x1x2x8x32xf32> to vector<2x8x32xf32>
    %173 = vector.shape_cast %170 : vector<2x8x32xf32> to vector<1x1x2x8x32xf32>
    tpu.vector_store %arg6[%c0_95, %c2_96, %c0_97, %c0_98, %c0_99], %173 {strides = array<i32>} : memref<3x3x2x8x32xf32, #tpu.memory_space<vmem>>, vector<1x1x2x8x32xf32>,
    %174 = vector.extract_strided_slice %156 {offsets = [0, 8, 0], sizes = [2, 8, 8], strides = [1, 1, 1]} : vector<2x24x8xf32> to vector<2x8x8xf32>
    %175 = vector.extract_strided_slice %167 {offsets = [0, 8, 0], sizes = [2, 8, 32], strides = [1, 1, 1]} : vector<2x24x32xf32> to vector<2x8x32xf32>
    "tpu.trace_start"() <{level = 10 : i32, message = "bst,btd->bsd"}> : () -> ()
    %cst_100 = arith.constant dense<0.000000e+00> : vector<2x8x32xf32>
    %176 = tpu.matmul %174, %175, %cst_100 {dimension_numbers = #tpu.dot_dimension_numbers<[2], [1], [1], [2], [0, 0, 0, 1, 1, 2], [0], [0]>} : vector<2x8x8xf32>, vector<2x8x32xf32>, vector<2x8x32xf32> -> vector<2x8x32xf32>
    "tpu.trace_stop"() : () -> ()
    %c1_101 = arith.constant 1 : index
    %c2_102 = arith.constant 2 : index
    %c0_103 = arith.constant 0 : index
    %c0_104 = arith.constant 0 : index
    %c0_105 = arith.constant 0 : index
    %177 = vector.load %arg6[%c1_101, %c2_102, %c0_103, %c0_104, %c0_105] : memref<3x3x2x8x32xf32, #tpu.memory_space<vmem>>, vector<1x1x2x8x32xf32>
    %178 = vector.shape_cast %177 : vector<1x1x2x8x32xf32> to vector<2x8x32xf32>
    %179 = vector.shape_cast %176 : vector<2x8x32xf32> to vector<1x1x2x8x32xf32>
    tpu.vector_store %arg6[%c1_101, %c2_102, %c0_103, %c0_104, %c0_105], %179 {strides = array<i32>} : memref<3x3x2x8x32xf32, #tpu.memory_space<vmem>>, vector<1x1x2x8x32xf32>,
    %180 = vector.extract_strided_slice %156 {offsets = [0, 16, 0], sizes = [2, 8, 8], strides = [1, 1, 1]} : vector<2x24x8xf32> to vector<2x8x8xf32>
    %181 = vector.extract_strided_slice %167 {offsets = [0, 16, 0], sizes = [2, 8, 32], strides = [1, 1, 1]} : vector<2x24x32xf32> to vector<2x8x32xf32>
    "tpu.trace_start"() <{level = 10 : i32, message = "bst,btd->bsd"}> : () -> ()
    %cst_106 = arith.constant dense<0.000000e+00> : vector<2x8x32xf32>
    %182 = tpu.matmul %180, %181, %cst_106 {dimension_numbers = #tpu.dot_dimension_numbers<[2], [1], [1], [2], [0, 0, 0, 1, 1, 2], [0], [0]>} : vector<2x8x8xf32>, vector<2x8x32xf32>, vector<2x8x32xf32> -> vector<2x8x32xf32>
    "tpu.trace_stop"() : () -> ()
    %c2_107 = arith.constant 2 : index
    %c2_108 = arith.constant 2 : index
    %c0_109 = arith.constant 0 : index
    %c0_110 = arith.constant 0 : index
    %c0_111 = arith.constant 0 : index
    %183 = vector.load %arg6[%c2_107, %c2_108, %c0_109, %c0_110, %c0_111] : memref<3x3x2x8x32xf32, #tpu.memory_space<vmem>>, vector<1x1x2x8x32xf32>
    %184 = vector.shape_cast %183 : vector<1x1x2x8x32xf32> to vector<2x8x32xf32>
    %185 = vector.shape_cast %182 : vector<2x8x32xf32> to vector<1x1x2x8x32xf32>
    tpu.vector_store %arg6[%c2_107, %c2_108, %c0_109, %c0_110, %c0_111], %185 {strides = array<i32>} : memref<3x3x2x8x32xf32, #tpu.memory_space<vmem>>, vector<1x1x2x8x32xf32>,
    %cst_112 = arith.constant dense<0.000000e+00> : vector<8x8xf32>
    %186 = vector.multi_reduction <add>, %166, %cst_112 [0] : vector<2x8x8xf32> to vector<8x8xf32>
    %cst_113 = arith.constant dense<0.000000e+00> : vector<8xf32>
    %187 = vector.multi_reduction <add>, %186, %cst_113 [1] : vector<8x8xf32> to vector<8xf32>
    %188 = vector.shape_cast %187 : vector<8xf32> to vector<8x1xf32>
    %cst_114 = arith.constant dense<0.000000e+00> : vector<1xf32>
    %189 = vector.multi_reduction <add>, %188, %cst_114 [0] : vector<8x1xf32> to vector<1xf32>
    %190 = vector.shape_cast %189 : vector<1xf32> to vector<1x1xf32>
    %cst_115 = arith.constant 0.00260416674 : f32
    %191 = vector.broadcast %cst_115 : f32 to vector<1x1xf32>
    %192 = arith.mulf %190, %191 : vector<1x1xf32>
    %c0_116 = arith.constant 0 : index
    %c0_117 = arith.constant 0 : index
    %193 = vector.load %arg5[%c0_116, %c0_117] : memref<1x1xf32, #tpu.memory_space<vmem>>, vector<1x1xf32>
    tpu.vector_store %arg5[%c0_116, %c0_117], %192 {strides = array<i32>} : memref<1x1xf32, #tpu.memory_space<vmem>>, vector<1x1xf32>,
    return
  }
}

</mosaic_0001>

<llo_original>
// kernel: global_confidence_attention.1
$region0: #{global_confidence_attention.1}
  #allocation0 [shape = 'u32[]', space=smem, size = 0x4, offset = 0x4, fixed_abs, tag = 'smem constant byte address 0x4 - core index']
  #allocation1 [shape = 'u32[144,128]{1,0:T(1,128)}', space=vmem, size = 0x12000, scoped, tag = 'internal scratch']
  %s0 = inlined_call_operand.vmem [shape: f32[3,2,8,32], index: 0, kind: input, shape index: {}]
  %s1 = inlined_call_operand.hbm [shape: f32[3,32,32], index: 1, kind: input, shape index: {}]
  %s2 = inlined_call_operand.vmem [shape: f32[3,1,32], index: 2, kind: input, shape index: {}]
  %s3 = inlined_call_operand.vmem [shape: f32[32,8], index: 3, kind: input, shape index: {}]
  %s4 = inlined_call_operand.vmem [shape: f32[1,8], index: 4, kind: input, shape index: {}]
  %s5 = inlined_call_operand.hbm [shape: f32[1,1], index: 5, kind: output, shape index: {0}]
  %s6 = inlined_call_operand.vmem [shape: f32[3,3,2,8,32], index: 6, kind: output, shape index: {1}]
  %7 = xla_tuple %s5, %s6
  %s8 = sld [smem:[#allocation0]]
  $region42: #{global_confidence_attention.1} parent=0
    _
  %s10 = ssub.s32 1, %s8
  %s11 = scalar_select 0, %s10, %s8
  $region1: #{global_confidence_attention.1} parent=0
    #allocation2 [shape = 'u8[49152]{0}', space=vmem, size = 0xc000, scoped, tag = 'input window, operand 1, single buffered']
    #allocation3 [shape = 's32[1]{0}', space=sflag, size = 0x4, scoped, tag = 'scoped memory for global_confidence_attention.1']
    #allocation4 [shape = 's32[1]{0}', space=sflag, size = 0x4, scoped, tag = 'scoped memory for global_confidence_attention.1']
    #allocation5 [shape = 'u8[512]{0}', space=vmem, size = 0x400, scoped, tag = 'output window, operand 0, single buffered']
    %12 = vsyncpa [#allocation3], 0
    %13 = vsyncpa [#allocation4], 0
    // Predicated region
    $region2: #{global_confidence_attention.1} parent=1 // pred_check
      _
    $region3: #{global_confidence_attention.1} parent=1 // pred_check_branch
      %15 = sbr.rel (0) target = $region5
    $region4: #{global_confidence_attention.1} parent=1 // pred_region
      _
    $region5: #{global_confidence_attention.1} parent=1 // pred_fallthru
      _
    // Predicated region
    $region6: #{global_confidence_attention.1} parent=1 // pred_check
      _
    $region7: #{global_confidence_attention.1} parent=1 // pred_check_branch
      %17 = sbr.rel (0) target = $region9
    $region8: #{global_confidence_attention.1} parent=1 // pred_region
      %s19 = ssub.s32 1536, 1536
      %20 = vsyncadd [#allocation3], %s19
      %s21 = sshll.u32 [#allocation2], 4
      %s22 = int_to_ptr.vmem [resolvable:$true] %s21
      %27 = dma.hbm_to_vmem [thread:$0]  %s1, 1536, %s22, [#allocation3], 128, 128, 8
    $region9: #{global_confidence_attention.1} parent=1 // pred_fallthru
      _
    // Predicated region
    $region10: #{global_confidence_attention.1} parent=1 // pred_check
      _
    $region11: #{global_confidence_attention.1} parent=1 // pred_check_branch
      %29 = sbr.rel (0) target = $region13
    $region12: #{global_confidence_attention.1} parent=1 // pred_region
      _
    $region13: #{global_confidence_attention.1} parent=1 // pred_fallthru
      _
    // Predicated region
    $region14: #{global_confidence_attention.1} parent=1 // pred_check
      _
    $region15: #{global_confidence_attention.1} parent=1 // pred_check_branch
      %31 = sbr.rel (0) target = $region17
    $region16: #{global_confidence_attention.1} parent=1 // pred_region
      _
    $region17: #{global_confidence_attention.1} parent=1 // pred_fallthru
      _
    // Predicated region
    $region18: #{global_confidence_attention.1} parent=1 // pred_check
      _
    $region19: #{global_confidence_attention.1} parent=1 // pred_check_branch
      %33 = sbr.rel (0) target = $region21
    $region20: #{global_confidence_attention.1} parent=1 // pred_region
      _
    $region21: #{global_confidence_attention.1} parent=1 // pred_fallthru
      _
    // Predicated region
    $region22: #{global_confidence_attention.1} parent=1 // pred_check
      _
    $region23: #{global_confidence_attention.1} parent=1 // pred_check_branch
      %35 = sbr.rel (0) target = $region25
    $region24: #{global_confidence_attention.1} parent=1 // pred_region
      %36 = dma.done [#allocation3], 1536
    $region25: #{global_confidence_attention.1} parent=1 // pred_fallthru
      _
    %v37 = vld [vmem:[%s0] sm:$0xff]
    %v38 = vld [vmem:[%s0 + $0x8] sm:$0xff]
    %v39 = vld [vmem:[#allocation2] sm:$0xff]
    %v40 = vld [vmem:[#allocation2 + $0x8] sm:$0xff]
    %v41 = vld [vmem:[#allocation2 + $0x10] sm:$0xff]
    %v42 = vld [vmem:[#allocation2 + $0x18] sm:$0xff]
    %v43 = vld [vmem:[%s2] sm:$0x1]
    %v45 = vlaneseq
    %v46 = vshrl.u32 %v45, 7
    %v47 = vsub.s32 0, %v46
    %v48 = vrot.slane %v43, %v47
    %vm50 = vcmask 261120
    %v52 = vsel %vm50, %v37, 0
    %v55 = vsel %vm50, %v38, 0
    %57 = vmatprep.subr.mxu0 0.0
    %58 = vmatpush1.msra.mxu0 0.0
    %59 = vmatprep.subr.mxu0 0.0
    %60 = vmatpush1.msra.mxu0 0.0
    %61 = vmatprep.subr.mxu0 0.0
    %62 = vmatpush1.msra.mxu0 0.0
    %63 = vmatprep.subr.mxu0 0.0
    %64 = vmatpush1.msra.mxu0 0.0
    %65 = vmatprep.subr.mxu0 0.0
    %66 = vmatpush1.msra.mxu0 0.0
    %67 = vmatprep.subr.mxu0 0.0
    %68 = vmatpush1.msra.mxu0 0.0
    %69 = vmatprep.subr.mxu0 0.0
    %70 = vmatpush1.msra.mxu0 0.0
    %71 = vmatprep.subr.mxu0 0.0
    %72 = vmatpush1.msra.mxu0 0.0
    %73 = vmatprep.subr.mxu0 0.0
    %74 = vmatpush1.msra.mxu0 0.0
    %75 = vmatprep.subr.mxu0 0.0
    %76 = vmatpush1.msra.mxu0 0.0
    %77 = vmatprep.subr.mxu0 0.0
    %78 = vmatpush1.msra.mxu0 0.0
    %79 = vmatprep.subr.mxu0 0.0
    %80 = vmatpush1.msra.mxu0 0.0
    %81 = vmatprep.subr.mxu0 0.0
    %82 = vmatpush1.msra.mxu0 %v42
    %83 = vmatprep.subr.mxu0 0.0
    %84 = vmatpush1.msra.mxu0 %v41
    %85 = vmatprep.subr.mxu0 0.0
    %86 = vmatpush1.msra.mxu0 %v40
    %87 = vmatprep.subr.mxu0 0.0
    %88 = vmatpush1.msra.mxu0 %v39
    %89 = vmatprep.subr.mxu0 0.0
    %90 = vmatpush2.msra.mxu0 0.0
    %91 = vmatprep.subr.mxu0 0.0
    %92 = vmatpush2.msra.mxu0 0.0
    %93 = vmatprep.subr.mxu0 0.0
    %94 = vmatpush2.msra.mxu0 0.0
    %95 = vmatprep.subr.mxu0 0.0
    %96 = vmatpush2.msra.mxu0 0.0
    %97 = vmatprep.subr.mxu0 0.0
    %98 = vmatpush2.msra.mxu0 0.0
    %99 = vmatprep.subr.mxu0 0.0
    %100 = vmatpush2.msra.mxu0 0.0
    %101 = vmatprep.subr.mxu0 0.0
    %102 = vmatpush2.msra.mxu0 0.0
    %103 = vmatprep.subr.mxu0 0.0
    %104 = vmatpush2.msra.mxu0 0.0
    %105 = vmatprep.subr.mxu0 0.0
    %106 = vmatpush2.msra.mxu0 0.0
    %107 = vmatprep.subr.mxu0 0.0
    %108 = vmatpush2.msra.mxu0 0.0
    %109 = vmatprep.subr.mxu0 0.0
    %110 = vmatpush2.msra.mxu0 0.0
    %111 = vmatprep.subr.mxu0 0.0
    %112 = vmatpush2.msra.mxu0 0.0
    %113 = vmatprep.subr.mxu0 0.0
    %114 = vmatpush2.msra.mxu0 0.0
    %115 = vmatprep.subr.mxu0 0.0
    %116 = vmatpush2.msra.mxu0 0.0
    %117 = vmatprep.subr.mxu0 0.0
    %118 = vmatpush2.msra.mxu0 0.0
    %119 = vmatprep.subr.mxu0 0.0
    %120 = vmatpush2.msra.mxu0 0.0
    %121 = vmatprep.mubr.f32.mxu0 0.0
    %122 = vmatmul.mubr.f32.gmra.mxu0 %v52
    %v123 = vpop.f32.mrf.mxu0
    %v124 = vadd.f32 %v48, %v123
    %v125 = vpop.f32.mrf.mxu0
    %126 = vmatprep.mubr.f32.mxu0 0.0
    %127 = vmatmul.mubr.f32.gmra.mxu0 %v55
    %v128 = vpop.f32.mrf.mxu0
    %v129 = vadd.f32 %v48, %v128
    %v130 = vpop.f32.mrf.mxu0
    %131 = vdwg.mxu0
    %v132 = vmax.f32 %v124, 0.0
    %v133 = vmax.f32 %v129, 0.0
    %s134 = scalar_lea.vmem %s0, 16
    %v135 = vld [vmem:[%s134] sm:$0xff]
    %v136 = vld [vmem:[%s134 + $0x8] sm:$0xff]
    %s137 = scalar_lea.vmem [#allocation2], 32
    %v138 = vld [vmem:[%s137] sm:$0xff]
    %v139 = vld [vmem:[%s137 + $0x8] sm:$0xff]
    %v140 = vld [vmem:[%s137 + $0x10] sm:$0xff]
    %v141 = vld [vmem:[%s137 + $0x18] sm:$0xff]
    %s142 = scalar_lea.vmem %s2, 1
    %v143 = vld [vmem:[%s142] sm:$0x1]
    %v145 = vlaneseq
    %v146 = vshrl.u32 %v145, 7
    %v147 = vsub.s32 0, %v146
    %v148 = vrot.slane %v143, %v147
    %v151 = vsel %vm50, %v135, 0
    %v154 = vsel %vm50, %v136, 0
    %156 = vmatprep.subr.mxu0 0.0
    %157 = vmatpush1.msra.mxu0 0.0
    %158 = vmatprep.subr.mxu0 0.0
    %159 = vmatpush1.msra.mxu0 0.0
    %160 = vmatprep.subr.mxu0 0.0
    %161 = vmatpush1.msra.mxu0 0.0
    %162 = vmatprep.subr.mxu0 0.0
    %163 = vmatpush1.msra.mxu0 0.0
    %164 = vmatprep.subr.mxu0 0.0
    %165 = vmatpush1.msra.mxu0 0.0
    %166 = vmatprep.subr.mxu0 0.0
    %167 = vmatpush1.msra.mxu0 0.0
    %168 = vmatprep.subr.mxu0 0.0
    %169 = vmatpush1.msra.mxu0 0.0
    %170 = vmatprep.subr.mxu0 0.0
    %171 = vmatpush1.msra.mxu0 0.0
    %172 = vmatprep.subr.mxu0 0.0
    %173 = vmatpush1.msra.mxu0 0.0
    %174 = vmatprep.subr.mxu0 0.0
    %175 = vmatpush1.msra.mxu0 0.0
    %176 = vmatprep.subr.mxu0 0.0
    %177 = vmatpush1.msra.mxu0 0.0
    %178 = vmatprep.subr.mxu0 0.0
    %179 = vmatpush1.msra.mxu0 0.0
    %180 = vmatprep.subr.mxu0 0.0
    %181 = vmatpush1.msra.mxu0 %v141
    %182 = vmatprep.subr.mxu0 0.0
    %183 = vmatpush1.msra.mxu0 %v140
    %184 = vmatprep.subr.mxu0 0.0
    %185 = vmatpush1.msra.mxu0 %v139
    %186 = vmatprep.subr.mxu0 0.0
    %187 = vmatpush1.msra.mxu0 %v138
    %188 = vmatprep.subr.mxu0 0.0
    %189 = vmatpush2.msra.mxu0 0.0
    %190 = vmatprep.subr.mxu0 0.0
    %191 = vmatpush2.msra.mxu0 0.0
    %192 = vmatprep.subr.mxu0 0.0
    %193 = vmatpush2.msra.mxu0 0.0
    %194 = vmatprep.subr.mxu0 0.0
    %195 = vmatpush2.msra.mxu0 0.0
    %196 = vmatprep.subr.mxu0 0.0
    %197 = vmatpush2.msra.mxu0 0.0
    %198 = vmatprep.subr.mxu0 0.0
    %199 = vmatpush2.msra.mxu0 0.0
    %200 = vmatprep.subr.mxu0 0.0
    %201 = vmatpush2.msra.mxu0 0.0
    %202 = vmatprep.subr.mxu0 0.0
    %203 = vmatpush2.msra.mxu0 0.0
    %204 = vmatprep.subr.mxu0 0.0
    %205 = vmatpush2.msra.mxu0 0.0
    %206 = vmatprep.subr.mxu0 0.0
    %207 = vmatpush2.msra.mxu0 0.0
    %208 = vmatprep.subr.mxu0 0.0
    %209 = vmatpush2.msra.mxu0 0.0
    %210 = vmatprep.subr.mxu0 0.0
    %211 = vmatpush2.msra.mxu0 0.0
    %212 = vmatprep.subr.mxu0 0.0
    %213 = vmatpush2.msra.mxu0 0.0
    %214 = vmatprep.subr.mxu0 0.0
    %215 = vmatpush2.msra.mxu0 0.0
    %216 = vmatprep.subr.mxu0 0.0
    %217 = vmatpush2.msra.mxu0 0.0
    %218 = vmatprep.subr.mxu0 0.0
    %219 = vmatpush2.msra.mxu0 0.0
    %220 = vmatprep.mubr.f32.mxu0 0.0
    %221 = vmatmul.mubr.f32.gmra.mxu0 %v151
    %v222 = vpop.f32.mrf.mxu0
    %v223 = vadd.f32 %v148, %v222
    %v224 = vpop.f32.mrf.mxu0
    %225 = vmatprep.mubr.f32.mxu0 0.0
    %226 = vmatmul.mubr.f32.gmra.mxu0 %v154
    %v227 = vpop.f32.mrf.mxu0
    %v228 = vadd.f32 %v148, %v227
    %v229 = vpop.f32.mrf.mxu0
    %230 = vdwg.mxu0
    %v231 = vmax.f32 %v223, 0.0
    %v232 = vmax.f32 %v228, 0.0
    %s233 = scalar_lea.vmem %s0, 32
    %v234 = vld [vmem:[%s233] sm:$0xff]
    %v235 = vld [vmem:[%s233 + $0x8] sm:$0xff]
    %s236 = scalar_lea.vmem [#allocation2], 64
    %v237 = vld [vmem:[%s236] sm:$0xff]
    %v238 = vld [vmem:[%s236 + $0x8] sm:$0xff]
    %v239 = vld [vmem:[%s236 + $0x10] sm:$0xff]
    %v240 = vld [vmem:[%s236 + $0x18] sm:$0xff]
    %s241 = scalar_lea.vmem %s2, 2
    %v242 = vld [vmem:[%s241] sm:$0x1]
    %v244 = vlaneseq
    %v245 = vshrl.u32 %v244, 7
    %v246 = vsub.s32 0, %v245
    %v247 = vrot.slane %v242, %v246
    %v250 = vsel %vm50, %v234, 0
    %v253 = vsel %vm50, %v235, 0
    %255 = vmatprep.subr.mxu0 0.0
    %256 = vmatpush1.msra.mxu0 0.0
    %257 = vmatprep.subr.mxu0 0.0
    %258 = vmatpush1.msra.mxu0 0.0
    %259 = vmatprep.subr.mxu0 0.0
    %260 = vmatpush1.msra.mxu0 0.0
    %261 = vmatprep.subr.mxu0 0.0
    %262 = vmatpush1.msra.mxu0 0.0
    %263 = vmatprep.subr.mxu0 0.0
    %264 = vmatpush1.msra.mxu0 0.0
    %265 = vmatprep.subr.mxu0 0.0
    %266 = vmatpush1.msra.mxu0 0.0
    %267 = vmatprep.subr.mxu0 0.0
    %268 = vmatpush1.msra.mxu0 0.0
    %269 = vmatprep.subr.mxu0 0.0
    %270 = vmatpush1.msra.mxu0 0.0
    %271 = vmatprep.subr.mxu0 0.0
    %272 = vmatpush1.msra.mxu0 0.0
    %273 = vmatprep.subr.mxu0 0.0
    %274 = vmatpush1.msra.mxu0 0.0
    %275 = vmatprep.subr.mxu0 0.0
    %276 = vmatpush1.msra.mxu0 0.0
    %277 = vmatprep.subr.mxu0 0.0
    %278 = vmatpush1.msra.mxu0 0.0
    %279 = vmatprep.subr.mxu0 0.0
    %280 = vmatpush1.msra.mxu0 %v240
    %281 = vmatprep.subr.mxu0 0.0
    %282 = vmatpush1.msra.mxu0 %v239
    %283 = vmatprep.subr.mxu0 0.0
    %284 = vmatpush1.msra.mxu0 %v238
    %285 = vmatprep.subr.mxu0 0.0
    %286 = vmatpush1.msra.mxu0 %v237
    %287 = vmatprep.subr.mxu0 0.0
    %288 = vmatpush2.msra.mxu0 0.0
    %289 = vmatprep.subr.mxu0 0.0
    %290 = vmatpush2.msra.mxu0 0.0
    %291 = vmatprep.subr.mxu0 0.0
    %292 = vmatpush2.msra.mxu0 0.0
    %293 = vmatprep.subr.mxu0 0.0
    %294 = vmatpush2.msra.mxu0 0.0
    %295 = vmatprep.subr.mxu0 0.0
    %296 = vmatpush2.msra.mxu0 0.0
    %297 = vmatprep.subr.mxu0 0.0
    %298 = vmatpush2.msra.mxu0 0.0
    %299 = vmatprep.subr.mxu0 0.0
    %300 = vmatpush2.msra.mxu0 0.0
    %301 = vmatprep.subr.mxu0 0.0
    %302 = vmatpush2.msra.mxu0 0.0
    %303 = vmatprep.subr.mxu0 0.0
    %304 = vmatpush2.msra.mxu0 0.0
    %305 = vmatprep.subr.mxu0 0.0
    %306 = vmatpush2.msra.mxu0 0.0
    %307 = vmatprep.subr.mxu0 0.0
    %308 = vmatpush2.msra.mxu0 0.0
    %309 = vmatprep.subr.mxu0 0.0
    %310 = vmatpush2.msra.mxu0 0.0
    %311 = vmatprep.subr.mxu0 0.0
    %312 = vmatpush2.msra.mxu0 0.0
    %313 = vmatprep.subr.mxu0 0.0
    %314 = vmatpush2.msra.mxu0 0.0
    %315 = vmatprep.subr.mxu0 0.0
    %316 = vmatpush2.msra.mxu0 0.0
    %317 = vmatprep.subr.mxu0 0.0
    %318 = vmatpush2.msra.mxu0 0.0
    %319 = vmatprep.mubr.f32.mxu0 0.0
    %320 = vmatmul.mubr.f32.gmra.mxu0 %v250
    %v321 = vpop.f32.mrf.mxu0
    %v322 = vadd.f32 %v247, %v321
    %v323 = vpop.f32.mrf.mxu0
    %324 = vmatprep.mubr.f32.mxu0 0.0
    %325 = vmatmul.mubr.f32.gmra.mxu0 %v253
    %v326 = vpop.f32.mrf.mxu0
    %v327 = vadd.f32 %v247, %v326
    %v328 = vpop.f32.mrf.mxu0
    %329 = vdwg.mxu0
    %v330 = vmax.f32 %v322, 0.0
    %v331 = vmax.f32 %v327, 0.0
    %v332 = vld [vmem:[%s3] sm:$0xff]
    %v333 = vld [vmem:[%s3 + $0x8] sm:$0xff]
    %v334 = vld [vmem:[%s3 + $0x10] sm:$0xff]
    %v335 = vld [vmem:[%s3 + $0x18] sm:$0xff]
    %v336 = vld [vmem:[%s4] sm:$0x1]
    %v338 = vlaneseq
    %v339 = vshrl.u32 %v338, 7
    %v340 = vsub.s32 0, %v339
    %v341 = vrot.slane %v336, %v340
    %v344 = vsel %vm50, %v132, 0
    %v347 = vsel %vm50, %v133, 0
    %v350 = vsel %vm50, %v231, 0
    %v353 = vsel %vm50, %v232, 0
    %v356 = vsel %vm50, %v330, 0
    %v359 = vsel %vm50, %v331, 0
    %361 = vmatprep.subr.mxu0 0.0
    %362 = vmatpush1.msra.mxu0 0.0
    %363 = vmatprep.subr.mxu0 0.0
    %364 = vmatpush1.msra.mxu0 0.0
    %365 = vmatprep.subr.mxu0 0.0
    %366 = vmatpush1.msra.mxu0 0.0
    %367 = vmatprep.subr.mxu0 0.0
    %368 = vmatpush1.msra.mxu0 0.0
    %369 = vmatprep.subr.mxu0 0.0
    %370 = vmatpush1.msra.mxu0 0.0
    %371 = vmatprep.subr.mxu0 0.0
    %372 = vmatpush1.msra.mxu0 0.0
    %373 = vmatprep.subr.mxu0 0.0
    %374 = vmatpush1.msra.mxu0 0.0
    %375 = vmatprep.subr.mxu0 0.0
    %376 = vmatpush1.msra.mxu0 0.0
    %377 = vmatprep.subr.mxu0 0.0
    %378 = vmatpush1.msra.mxu0 0.0
    %379 = vmatprep.subr.mxu0 0.0
    %380 = vmatpush1.msra.mxu0 0.0
    %381 = vmatprep.subr.mxu0 0.0
    %382 = vmatpush1.msra.mxu0 0.0
    %383 = vmatprep.subr.mxu0 0.0
    %384 = vmatpush1.msra.mxu0 0.0
    %385 = vmatprep.subr.mxu0 0.0
    %386 = vmatpush1.msra.mxu0 %v335
    %387 = vmatprep.subr.mxu0 0.0
    %388 = vmatpush1.msra.mxu0 %v334
    %389 = vmatprep.subr.mxu0 0.0
    %390 = vmatpush1.msra.mxu0 %v333
    %391 = vmatprep.subr.mxu0 0.0
    %392 = vmatpush1.msra.mxu0 %v332
    %393 = vmatprep.subr.mxu0 0.0
    %394 = vmatpush2.msra.mxu0 0.0
    %395 = vmatprep.subr.mxu0 0.0
    %396 = vmatpush2.msra.mxu0 0.0
    %397 = vmatprep.subr.mxu0 0.0
    %398 = vmatpush2.msra.mxu0 0.0
    %399 = vmatprep.subr.mxu0 0.0
    %400 = vmatpush2.msra.mxu0 0.0
    %401 = vmatprep.subr.mxu0 0.0
    %402 = vmatpush2.msra.mxu0 0.0
    %403 = vmatprep.subr.mxu0 0.0
    %404 = vmatpush2.msra.mxu0 0.0
    %405 = vmatprep.subr.mxu0 0.0
    %406 = vmatpush2.msra.mxu0 0.0
    %407 = vmatprep.subr.mxu0 0.0
    %408 = vmatpush2.msra.mxu0 0.0
    %409 = vmatprep.subr.mxu0 0.0
    %410 = vmatpush2.msra.mxu0 0.0
    %411 = vmatprep.subr.mxu0 0.0
    %412 = vmatpush2.msra.mxu0 0.0
    %413 = vmatprep.subr.mxu0 0.0
    %414 = vmatpush2.msra.mxu0 0.0
    %415 = vmatprep.subr.mxu0 0.0
    %416 = vmatpush2.msra.mxu0 0.0
    %417 = vmatprep.subr.mxu0 0.0
    %418 = vmatpush2.msra.mxu0 0.0
    %419 = vmatprep.subr.mxu0 0.0
    %420 = vmatpush2.msra.mxu0 0.0
    %421 = vmatprep.subr.mxu0 0.0
    %422 = vmatpush2.msra.mxu0 0.0
    %423 = vmatprep.subr.mxu0 0.0
    %424 = vmatpush2.msra.mxu0 0.0
    %425 = vmatprep.mubr.f32.mxu0 0.0
    %426 = vmatmul.mubr.f32.gmra.mxu0 %v344
    %v427 = vpop.f32.mrf.mxu0
    %v428 = vadd.f32 %v341, %v427
    %v429 = vpop.f32.mrf.mxu0
    %430 = vmatprep.mubr.f32.mxu0 0.0
    %431 = vmatmul.mubr.f32.gmra.mxu0 %v347
    %v432 = vpop.f32.mrf.mxu0
    %v433 = vadd.f32 %v341, %v432
    %v434 = vpop.f32.mrf.mxu0
    %435 = vmatprep.mubr.f32.mxu0 0.0
    %436 = vmatmul.mubr.f32.gmra.mxu0 %v350
    %v437 = vpop.f32.mrf.mxu0
    %v438 = vadd.f32 %v341, %v437
    %v439 = vpop.f32.mrf.mxu0
    %440 = vmatprep.mubr.f32.mxu0 0.0
    %441 = vmatmul.mubr.f32.gmra.mxu0 %v353
    %v442 = vpop.f32.mrf.mxu0
    %v443 = vadd.f32 %v341, %v442
    %v444 = vpop.f32.mrf.mxu0
    %445 = vmatprep.mubr.f32.mxu0 0.0
    %446 = vmatmul.mubr.f32.gmra.mxu0 %v356
    %v447 = vpop.f32.mrf.mxu0
    %v448 = vadd.f32 %v341, %v447
    %v449 = vpop.f32.mrf.mxu0
    %450 = vmatprep.mubr.f32.mxu0 0.0
    %451 = vmatmul.mubr.f32.gmra.mxu0 %v359
    %v452 = vpop.f32.mrf.mxu0
    %v453 = vadd.f32 %v341, %v452
    %v454 = vpop.f32.mrf.mxu0
    %455 = vdwg.mxu0
    %v456 = vsub.f32 0.0, %v428
    %v457 = vsub.f32 0.0, %v433
    %v458 = vsub.f32 0.0, %v438
    %v459 = vsub.f32 0.0, %v443
    %v460 = vsub.f32 0.0, %v448
    %v461 = vsub.f32 0.0, %v453
    %v462 = vmul.f32 %v456, 1.442695
    %v463 = vpow.pop %v462
    %v464 = vmul.f32 %v457, 1.442695
    %v465 = vpow.pop %v464
    %v466 = vmul.f32 %v458, 1.442695
    %v467 = vpow.pop %v466
    %v468 = vmul.f32 %v459, 1.442695
    %v469 = vpow.pop %v468
    %v470 = vmul.f32 %v460, 1.442695
    %v471 = vpow.pop %v470
    %v472 = vmul.f32 %v461, 1.442695
    %v473 = vpow.pop %v472
    %v474 = vadd.f32 %v463, 1.0
    %v475 = vadd.f32 %v465, 1.0
    %v476 = vadd.f32 %v467, 1.0
    %v477 = vadd.f32 %v469, 1.0
    %v478 = vadd.f32 %v471, 1.0
    %v479 = vadd.f32 %v473, 1.0
    %v480 = vrcp.pop %v474
    %v481 = vrcp.pop %v475
    %v482 = vrcp.pop %v476
    %v483 = vrcp.pop %v477
    %v484 = vrcp.pop %v478
    %v485 = vrcp.pop %v479
    %486 = vmatprep.subr.mxu0 0.0
    %487 = vmatpush1.xpose.msra.mxu0 0.0
    %488 = vmatprep.subr.mxu0 0.0
    %489 = vmatpush1.xpose.msra.mxu0 0.0
    %490 = vmatprep.subr.mxu0 0.0
    %491 = vmatpush1.xpose.msra.mxu0 0.0
    %492 = vmatprep.subr.mxu0 0.0
    %493 = vmatpush1.xpose.msra.mxu0 0.0
    %494 = vmatprep.subr.mxu0 0.0
    %495 = vmatpush1.xpose.msra.mxu0 0.0
    %496 = vmatprep.subr.mxu0 0.0
    %497 = vmatpush1.xpose.msra.mxu0 0.0
    %498 = vmatprep.subr.mxu0 0.0
    %499 = vmatpush1.xpose.msra.mxu0 0.0
    %500 = vmatprep.subr.mxu0 0.0
    %501 = vmatpush1.xpose.msra.mxu0 0.0
    %502 = vmatprep.subr.mxu0 0.0
    %503 = vmatpush1.xpose.msra.mxu0 0.0
    %504 = vmatprep.subr.mxu0 0.0
    %505 = vmatpush1.xpose.msra.mxu0 0.0
    %506 = vmatprep.subr.mxu0 0.0
    %507 = vmatpush1.xpose.msra.mxu0 0.0
    %508 = vmatprep.subr.mxu0 0.0
    %509 = vmatpush1.xpose.msra.mxu0 0.0
    %510 = vmatprep.subr.mxu0 0.0
    %511 = vmatpush1.xpose.msra.mxu0 0.0
    %512 = vmatprep.subr.mxu0 0.0
    %513 = vmatpush1.xpose.msra.mxu0 0.0
    %514 = vmatprep.subr.mxu0 0.0
    %515 = vmatpush1.xpose.msra.mxu0 0.0
    %516 = vmatprep.subr.mxu0 0.0
    %517 = vmatpush1.xpose.msra.mxu0 %v344
    %518 = vmatprep.subr.mxu0 0.0
    %519 = vmatpush2.xpose.msra.mxu0 0.0
    %520 = vmatprep.subr.mxu0 0.0
    %521 = vmatpush2.xpose.msra.mxu0 0.0
    %522 = vmatprep.subr.mxu0 0.0
    %523 = vmatpush2.xpose.msra.mxu0 0.0
    %524 = vmatprep.subr.mxu0 0.0
    %525 = vmatpush2.xpose.msra.mxu0 0.0
    %526 = vmatprep.subr.mxu0 0.0
    %527 = vmatpush2.xpose.msra.mxu0 0.0
    %528 = vmatprep.subr.mxu0 0.0
    %529 = vmatpush2.xpose.msra.mxu0 0.0
    %530 = vmatprep.subr.mxu0 0.0
    %531 = vmatpush2.xpose.msra.mxu0 0.0
    %532 = vmatprep.subr.mxu0 0.0
    %533 = vmatpush2.xpose.msra.mxu0 0.0
    %534 = vmatprep.subr.mxu0 0.0
    %535 = vmatpush2.xpose.msra.mxu0 0.0
    %536 = vmatprep.subr.mxu0 0.0
    %537 = vmatpush2.xpose.msra.mxu0 0.0
    %538 = vmatprep.subr.mxu0 0.0
    %539 = vmatpush2.xpose.msra.mxu0 0.0
    %540 = vmatprep.subr.mxu0 0.0
    %541 = vmatpush2.xpose.msra.mxu0 0.0
    %542 = vmatprep.subr.mxu0 0.0
    %543 = vmatpush2.xpose.msra.mxu0 0.0
    %544 = vmatprep.subr.mxu0 0.0
    %545 = vmatpush2.xpose.msra.mxu0 0.0
    %546 = vmatprep.subr.mxu0 0.0
    %547 = vmatpush2.xpose.msra.mxu0 0.0
    %548 = vmatprep.subr.mxu0 0.0
    %549 = vmatpush2.xpose.msra.mxu0 0.0
    %550 = vmatprep.mubr.f32.mxu0 0.0
    %551 = vmatmul.mubr.f32.gmra.mxu0 %v344
    %v552 = vpop.f32.mrf.mxu0
    %v553 = vadd.f32 0.0, %v552
    %v554 = vpop.f32.mrf.mxu0
    %555 = vmatprep.mubr.f32.mxu0 0.0
    %556 = vmatmul.mubr.f32.gmra.mxu0 %v350
    %v557 = vpop.f32.mrf.mxu0
    %v558 = vadd.f32 0.0, %v557
    %v559 = vpop.f32.mrf.mxu0
    %560 = vmatprep.mubr.f32.mxu0 0.0
    %561 = vmatmul.mubr.f32.gmra.mxu0 %v356
    %v562 = vpop.f32.mrf.mxu0
    %v563 = vadd.f32 0.0, %v562
    %v564 = vpop.f32.mrf.mxu0
    %565 = vdwg.mxu0
    %566 = vmatprep.subr.mxu0 0.0
    %567 = vmatpush1.xpose.msra.mxu0 0.0
    %568 = vmatprep.subr.mxu0 0.0
    %569 = vmatpush1.xpose.msra.mxu0 0.0
    %570 = vmatprep.subr.mxu0 0.0
    %571 = vmatpush1.xpose.msra.mxu0 0.0
    %572 = vmatprep.subr.mxu0 0.0
    %573 = vmatpush1.xpose.msra.mxu0 0.0
    %574 = vmatprep.subr.mxu0 0.0
    %575 = vmatpush1.xpose.msra.mxu0 0.0
    %576 = vmatprep.subr.mxu0 0.0
    %577 = vmatpush1.xpose.msra.mxu0 0.0
    %578 = vmatprep.subr.mxu0 0.0
    %579 = vmatpush1.xpose.msra.mxu0 0.0
    %580 = vmatprep.subr.mxu0 0.0
    %581 = vmatpush1.xpose.msra.mxu0 0.0
    %582 = vmatprep.subr.mxu0 0.0
    %583 = vmatpush1.xpose.msra.mxu0 0.0
    %584 = vmatprep.subr.mxu0 0.0
    %585 = vmatpush1.xpose.msra.mxu0 0.0
    %586 = vmatprep.subr.mxu0 0.0
    %587 = vmatpush1.xpose.msra.mxu0 0.0
    %588 = vmatprep.subr.mxu0 0.0
    %589 = vmatpush1.xpose.msra.mxu0 0.0
    %590 = vmatprep.subr.mxu0 0.0
    %591 = vmatpush1.xpose.msra.mxu0 0.0
    %592 = vmatprep.subr.mxu0 0.0
    %593 = vmatpush1.xpose.msra.mxu0 0.0
    %594 = vmatprep.subr.mxu0 0.0
    %595 = vmatpush1.xpose.msra.mxu0 0.0
    %596 = vmatprep.subr.mxu0 0.0
    %597 = vmatpush1.xpose.msra.mxu0 %v347
    %598 = vmatprep.subr.mxu0 0.0
    %599 = vmatpush2.xpose.msra.mxu0 0.0
    %600 = vmatprep.subr.mxu0 0.0
    %601 = vmatpush2.xpose.msra.mxu0 0.0
    %602 = vmatprep.subr.mxu0 0.0
    %603 = vmatpush2.xpose.msra.mxu0 0.0
    %604 = vmatprep.subr.mxu0 0.0
    %605 = vmatpush2.xpose.msra.mxu0 0.0
    %606 = vmatprep.subr.mxu0 0.0
    %607 = vmatpush2.xpose.msra.mxu0 0.0
    %608 = vmatprep.subr.mxu0 0.0
    %609 = vmatpush2.xpose.msra.mxu0 0.0
    %610 = vmatprep.subr.mxu0 0.0
    %611 = vmatpush2.xpose.msra.mxu0 0.0
    %612 = vmatprep.subr.mxu0 0.0
    %613 = vmatpush2.xpose.msra.mxu0 0.0
    %614 = vmatprep.subr.mxu0 0.0
    %615 = vmatpush2.xpose.msra.mxu0 0.0
    %616 = vmatprep.subr.mxu0 0.0
    %617 = vmatpush2.xpose.msra.mxu0 0.0
    %618 = vmatprep.subr.mxu0 0.0
    %619 = vmatpush2.xpose.msra.mxu0 0.0
    %620 = vmatprep.subr.mxu0 0.0
    %621 = vmatpush2.xpose.msra.mxu0 0.0
    %622 = vmatprep.subr.mxu0 0.0
    %623 = vmatpush2.xpose.msra.mxu0 0.0
    %624 = vmatprep.subr.mxu0 0.0
    %625 = vmatpush2.xpose.msra.mxu0 0.0
    %626 = vmatprep.subr.mxu0 0.0
    %627 = vmatpush2.xpose.msra.mxu0 0.0
    %628 = vmatprep.subr.mxu0 0.0
    %629 = vmatpush2.xpose.msra.mxu0 0.0
    %630 = vmatprep.mubr.f32.mxu0 0.0
    %631 = vmatmul.mubr.f32.gmra.mxu0 %v347
    %v632 = vpop.f32.mrf.mxu0
    %v633 = vadd.f32 0.0, %v632
    %v634 = vpop.f32.mrf.mxu0
    %635 = vmatprep.mubr.f32.mxu0 0.0
    %636 = vmatmul.mubr.f32.gmra.mxu0 %v353
    %v637 = vpop.f32.mrf.mxu0
    %v638 = vadd.f32 0.0, %v637
    %v639 = vpop.f32.mrf.mxu0
    %640 = vmatprep.mubr.f32.mxu0 0.0
    %641 = vmatmul.mubr.f32.gmra.mxu0 %v359
    %v642 = vpop.f32.mrf.mxu0
    %v643 = vadd.f32 0.0, %v642
    %v644 = vpop.f32.mrf.mxu0
    %645 = vdwg.mxu0
    %v646 = vmul.f32 %v553, 0.17677669
    %v647 = vmul.f32 %v558, 0.17677669
    %v648 = vmul.f32 %v563, 0.17677669
    %v649 = vmul.f32 %v633, 0.17677669
    %v650 = vmul.f32 %v638, 0.17677669
    %v651 = vmul.f32 %v643, 0.17677669
    %v652 = vmax.f32 %v646, 0.0
    %v653 = vmax.f32 %v647, 0.0
    %v654 = vmax.f32 %v648, 0.0
    %v655 = vmax.f32 %v649, 0.0
    %v656 = vmax.f32 %v650, 0.0
    %v657 = vmax.f32 %v651, 0.0
    %vm658 = vcmask 64512
    %v659 = vsel %vm658, %v652, -inf
    %660 = vmax.xlane.f32.xlu0 %v659
    %v661 = vpop.xlane.xlu0 %660
    %v662 = vsel %vm658, %v653, -inf
    %663 = vmax.xlane.f32.xlu0 %v662
    %v664 = vpop.xlane.xlu0 %663
    %v665 = vsel %vm658, %v654, -inf
    %666 = vmax.xlane.f32.xlu0 %v665
    %v667 = vpop.xlane.xlu0 %666
    %v668 = vsel %vm658, %v655, -inf
    %669 = vmax.xlane.f32.xlu0 %v668
    %v670 = vpop.xlane.xlu0 %669
    %v671 = vsel %vm658, %v656, -inf
    %672 = vmax.xlane.f32.xlu0 %v671
    %v673 = vpop.xlane.xlu0 %672
    %v674 = vsel %vm658, %v657, -inf
    %675 = vmax.xlane.f32.xlu0 %v674
    %v676 = vpop.xlane.xlu0 %675
    %v677 = vsub.f32 %v652, %v661
    %v678 = vsub.f32 %v653, %v664
    %v679 = vsub.f32 %v654, %v667
    %v680 = vsub.f32 %v655, %v670
    %v681 = vsub.f32 %v656, %v673
    %v682 = vsub.f32 %v657, %v676
    %v683 = vmul.f32 %v677, 1.442695
    %v684 = vpow.pop %v683
    %v685 = vmul.f32 %v678, 1.442695
    %v686 = vpow.pop %v685
    %v687 = vmul.f32 %v679, 1.442695
    %v688 = vpow.pop %v687
    %v689 = vmul.f32 %v680, 1.442695
    %v690 = vpow.pop %v689
    %v691 = vmul.f32 %v681, 1.442695
    %v692 = vpow.pop %v691
    %v693 = vmul.f32 %v682, 1.442695
    %v694 = vpow.pop %v693
    %v695 = vsel %vm658, %v684, 0.0
    %696 = vadd.xlane.f32.xlu0 %v695
    %v697 = vpop.xlane.xlu0 %696
    %v698 = vsel %vm658, %v686, 0.0
    %699 = vadd.xlane.f32.xlu0 %v698
    %v700 = vpop.xlane.xlu0 %699
    %v701 = vsel %vm658, %v688, 0.0
    %702 = vadd.xlane.f32.xlu0 %v701
    %v703 = vpop.xlane.xlu0 %702
    %v704 = vsel %vm658, %v690, 0.0
    %705 = vadd.xlane.f32.xlu0 %v704
    %v706 = vpop.xlane.xlu0 %705
    %v707 = vsel %vm658, %v692, 0.0
    %708 = vadd.xlane.f32.xlu0 %v707
    %v709 = vpop.xlane.xlu0 %708
    %v710 = vsel %vm658, %v694, 0.0
    %711 = vadd.xlane.f32.xlu0 %v710
    %v712 = vpop.xlane.xlu0 %711
    %v713 = vrcp.pop %v697
    %v714 = vrcp.pop %v700
    %v715 = vrcp.pop %v703
    %v716 = vrcp.pop %v706
    %v717 = vrcp.pop %v709
    %v718 = vrcp.pop %v712
    %v719 = vmul.f32 %v684, %v713
    %v720 = vmul.f32 %v686, %v714
    %v721 = vmul.f32 %v688, %v715
    %v722 = vmul.f32 %v690, %v716
    %v723 = vmul.f32 %v692, %v717
    %v724 = vmul.f32 %v694, %v718
    %v725 = vadd.f32 %v719, %v720
    %v726 = vadd.f32 %v722, %v723
    %v727 = vadd.f32 %v725, %v721
    %v728 = vadd.f32 %v726, %v724
    %v729 = vsub.f32 %v727, %v480
    %v730 = vsub.f32 %v728, %v481
    %v731 = vmul.f32 %v729, %v729
    %v732 = vmul.f32 %v730, %v730
    %v733 = vadd.f32 %v731, 0.0
    %v734 = vadd.f32 %v732, 0.0
    %v736 = vsel %vm658, %v719, 0
    %v739 = vsel %vm658, %v720, 0
    %v742 = vsel %vm658, %v721, 0
    %744 = vmatprep.subr.mxu0 0.0
    %745 = vmatpush1.msra.mxu0 0.0
    %746 = vmatprep.subr.mxu0 0.0
    %747 = vmatpush1.msra.mxu0 0.0
    %748 = vmatprep.subr.mxu0 0.0
    %749 = vmatpush1.msra.mxu0 0.0
    %750 = vmatprep.subr.mxu0 0.0
    %751 = vmatpush1.msra.mxu0 0.0
    %752 = vmatprep.subr.mxu0 0.0
    %753 = vmatpush1.msra.mxu0 0.0
    %754 = vmatprep.subr.mxu0 0.0
    %755 = vmatpush1.msra.mxu0 0.0
    %756 = vmatprep.subr.mxu0 0.0
    %757 = vmatpush1.msra.mxu0 0.0
    %758 = vmatprep.subr.mxu0 0.0
    %759 = vmatpush1.msra.mxu0 0.0
    %760 = vmatprep.subr.mxu0 0.0
    %761 = vmatpush1.msra.mxu0 0.0
    %762 = vmatprep.subr.mxu0 0.0
    %763 = vmatpush1.msra.mxu0 0.0
    %764 = vmatprep.subr.mxu0 0.0
    %765 = vmatpush1.msra.mxu0 0.0
    %766 = vmatprep.subr.mxu0 0.0
    %767 = vmatpush1.msra.mxu0 0.0
    %768 = vmatprep.subr.mxu0 0.0
    %769 = vmatpush1.msra.mxu0 0.0
    %770 = vmatprep.subr.mxu0 0.0
    %771 = vmatpush1.msra.mxu0 0.0
    %772 = vmatprep.subr.mxu0 0.0
    %773 = vmatpush1.msra.mxu0 0.0
    %774 = vmatprep.subr.mxu0 0.0
    %775 = vmatpush1.msra.mxu0 %v132
    %776 = vmatprep.subr.mxu0 0.0
    %777 = vmatpush2.msra.mxu0 0.0
    %778 = vmatprep.subr.mxu0 0.0
    %779 = vmatpush2.msra.mxu0 0.0
    %780 = vmatprep.subr.mxu0 0.0
    %781 = vmatpush2.msra.mxu0 0.0
    %782 = vmatprep.subr.mxu0 0.0
    %783 = vmatpush2.msra.mxu0 0.0
    %784 = vmatprep.subr.mxu0 0.0
    %785 = vmatpush2.msra.mxu0 0.0
    %786 = vmatprep.subr.mxu0 0.0
    %787 = vmatpush2.msra.mxu0 0.0
    %788 = vmatprep.subr.mxu0 0.0
    %789 = vmatpush2.msra.mxu0 0.0
    %790 = vmatprep.subr.mxu0 0.0
    %791 = vmatpush2.msra.mxu0 0.0
    %792 = vmatprep.subr.mxu0 0.0
    %793 = vmatpush2.msra.mxu0 0.0
    %794 = vmatprep.subr.mxu0 0.0
    %795 = vmatpush2.msra.mxu0 0.0
    %796 = vmatprep.subr.mxu0 0.0
    %797 = vmatpush2.msra.mxu0 0.0
    %798 = vmatprep.subr.mxu0 0.0
    %799 = vmatpush2.msra.mxu0 0.0
    %800 = vmatprep.subr.mxu0 0.0
    %801 = vmatpush2.msra.mxu0 0.0
    %802 = vmatprep.subr.mxu0 0.0
    %803 = vmatpush2.msra.mxu0 0.0
    %804 = vmatprep.subr.mxu0 0.0
    %805 = vmatpush2.msra.mxu0 0.0
    %806 = vmatprep.subr.mxu0 0.0
    %807 = vmatpush2.msra.mxu0 0.0
    %808 = vmatprep.mubr.f32.mxu0 0.0
    %809 = vmatmul.mubr.f32.gmra.mxu0 %v736
    %v810 = vpop.f32.mrf.mxu0
    %v811 = vadd.f32 0.0, %v810
    %v812 = vpop.f32.mrf.mxu0
    %813 = vmatprep.mubr.f32.mxu0 0.0
    %814 = vmatmul.mubr.f32.gmra.mxu0 %v739
    %v815 = vpop.f32.mrf.mxu0
    %v816 = vadd.f32 0.0, %v815
    %v817 = vpop.f32.mrf.mxu0
    %818 = vmatprep.mubr.f32.mxu0 0.0
    %819 = vmatmul.mubr.f32.gmra.mxu0 %v742
    %v820 = vpop.f32.mrf.mxu0
    %v821 = vadd.f32 0.0, %v820
    %v822 = vpop.f32.mrf.mxu0
    %823 = vdwg.mxu0
    %v825 = vsel %vm658, %v722, 0
    %v828 = vsel %vm658, %v723, 0
    %v831 = vsel %vm658, %v724, 0
    %833 = vmatprep.subr.mxu0 0.0
    %834 = vmatpush1.msra.mxu0 0.0
    %835 = vmatprep.subr.mxu0 0.0
    %836 = vmatpush1.msra.mxu0 0.0
    %837 = vmatprep.subr.mxu0 0.0
    %838 = vmatpush1.msra.mxu0 0.0
    %839 = vmatprep.subr.mxu0 0.0
    %840 = vmatpush1.msra.mxu0 0.0
    %841 = vmatprep.subr.mxu0 0.0
    %842 = vmatpush1.msra.mxu0 0.0
    %843 = vmatprep.subr.mxu0 0.0
    %844 = vmatpush1.msra.mxu0 0.0
    %845 = vmatprep.subr.mxu0 0.0
    %846 = vmatpush1.msra.mxu0 0.0
    %847 = vmatprep.subr.mxu0 0.0
    %848 = vmatpush1.msra.mxu0 0.0
    %849 = vmatprep.subr.mxu0 0.0
    %850 = vmatpush1.msra.mxu0 0.0
    %851 = vmatprep.subr.mxu0 0.0
    %852 = vmatpush1.msra.mxu0 0.0
    %853 = vmatprep.subr.mxu0 0.0
    %854 = vmatpush1.msra.mxu0 0.0
    %855 = vmatprep.subr.mxu0 0.0
    %856 = vmatpush1.msra.mxu0 0.0
    %857 = vmatprep.subr.mxu0 0.0
    %858 = vmatpush1.msra.mxu0 0.0
    %859 = vmatprep.subr.mxu0 0.0
    %860 = vmatpush1.msra.mxu0 0.0
    %861 = vmatprep.subr.mxu0 0.0
    %862 = vmatpush1.msra.mxu0 0.0
    %863 = vmatprep.subr.mxu0 0.0
    %864 = vmatpush1.msra.mxu0 %v133
    %865 = vmatprep.subr.mxu0 0.0
    %866 = vmatpush2.msra.mxu0 0.0
    %867 = vmatprep.subr.mxu0 0.0
    %868 = vmatpush2.msra.mxu0 0.0
    %869 = vmatprep.subr.mxu0 0.0
    %870 = vmatpush2.msra.mxu0 0.0
    %871 = vmatprep.subr.mxu0 0.0
    %872 = vmatpush2.msra.mxu0 0.0
    %873 = vmatprep.subr.mxu0 0.0
    %874 = vmatpush2.msra.mxu0 0.0
    %875 = vmatprep.subr.mxu0 0.0
    %876 = vmatpush2.msra.mxu0 0.0
    %877 = vmatprep.subr.mxu0 0.0
    %878 = vmatpush2.msra.mxu0 0.0
    %879 = vmatprep.subr.mxu0 0.0
    %880 = vmatpush2.msra.mxu0 0.0
    %881 = vmatprep.subr.mxu0 0.0
    %882 = vmatpush2.msra.mxu0 0.0
    %883 = vmatprep.subr.mxu0 0.0
    %884 = vmatpush2.msra.mxu0 0.0
    %885 = vmatprep.subr.mxu0 0.0
    %886 = vmatpush2.msra.mxu0 0.0
    %887 = vmatprep.subr.mxu0 0.0
    %888 = vmatpush2.msra.mxu0 0.0
    %889 = vmatprep.subr.mxu0 0.0
    %890 = vmatpush2.msra.mxu0 0.0
    %891 = vmatprep.subr.mxu0 0.0
    %892 = vmatpush2.msra.mxu0 0.0
    %893 = vmatprep.subr.mxu0 0.0
    %894 = vmatpush2.msra.mxu0 0.0
    %895 = vmatprep.subr.mxu0 0.0
    %896 = vmatpush2.msra.mxu0 0.0
    %897 = vmatprep.mubr.f32.mxu0 0.0
    %898 = vmatmul.mubr.f32.gmra.mxu0 %v825
    %v899 = vpop.f32.mrf.mxu0
    %v900 = vadd.f32 0.0, %v899
    %v901 = vpop.f32.mrf.mxu0
    %902 = vmatprep.mubr.f32.mxu0 0.0
    %903 = vmatmul.mubr.f32.gmra.mxu0 %v828
    %v904 = vpop.f32.mrf.mxu0
    %v905 = vadd.f32 0.0, %v904
    %v906 = vpop.f32.mrf.mxu0
    %907 = vmatprep.mubr.f32.mxu0 0.0
    %908 = vmatmul.mubr.f32.gmra.mxu0 %v831
    %v909 = vpop.f32.mrf.mxu0
    %v910 = vadd.f32 0.0, %v909
    %v911 = vpop.f32.mrf.mxu0
    %912 = vdwg.mxu0
    %913 = vmatprep.subr.mxu0 0.0
    %914 = vmatpush1.msra.mxu0 0.0
    %915 = vmatprep.subr.mxu0 0.0
    %916 = vmatpush1.msra.mxu0 0.0
    %917 = vmatprep.subr.mxu0 0.0
    %918 = vmatpush1.msra.mxu0 0.0
    %919 = vmatprep.subr.mxu0 0.0
    %920 = vmatpush1.msra.mxu0 0.0
    %921 = vmatprep.subr.mxu0 0.0
    %922 = vmatpush1.msra.mxu0 0.0
    %923 = vmatprep.subr.mxu0 0.0
    %924 = vmatpush1.msra.mxu0 0.0
    %925 = vmatprep.subr.mxu0 0.0
    %926 = vmatpush1.msra.mxu0 0.0
    %927 = vmatprep.subr.mxu0 0.0
    %928 = vmatpush1.msra.mxu0 0.0
    %929 = vmatprep.subr.mxu0 0.0
    %930 = vmatpush1.msra.mxu0 0.0
    %931 = vmatprep.subr.mxu0 0.0
    %932 = vmatpush1.msra.mxu0 0.0
    %933 = vmatprep.subr.mxu0 0.0
    %934 = vmatpush1.msra.mxu0 0.0
    %935 = vmatprep.subr.mxu0 0.0
    %936 = vmatpush1.msra.mxu0 0.0
    %937 = vmatprep.subr.mxu0 0.0
    %938 = vmatpush1.msra.mxu0 0.0
    %939 = vmatprep.subr.mxu0 0.0
    %940 = vmatpush1.msra.mxu0 0.0
    %941 = vmatprep.subr.mxu0 0.0
    %942 = vmatpush1.msra.mxu0 0.0
    %943 = vmatprep.subr.mxu0 0.0
    %944 = vmatpush1.msra.mxu0 %v811
    %945 = vmatprep.subr.mxu0 0.0
    %946 = vmatpush2.msra.mxu0 0.0
    %947 = vmatprep.subr.mxu0 0.0
    %948 = vmatpush2.msra.mxu0 0.0
    %949 = vmatprep.subr.mxu0 0.0
    %950 = vmatpush2.msra.mxu0 0.0
    %951 = vmatprep.subr.mxu0 0.0
    %952 = vmatpush2.msra.mxu0 0.0
    %953 = vmatprep.subr.mxu0 0.0
    %954 = vmatpush2.msra.mxu0 0.0
    %955 = vmatprep.subr.mxu0 0.0
    %956 = vmatpush2.msra.mxu0 0.0
    %957 = vmatprep.subr.mxu0 0.0
    %958 = vmatpush2.msra.mxu0 0.0
    %959 = vmatprep.subr.mxu0 0.0
    %960 = vmatpush2.msra.mxu0 0.0
    %961 = vmatprep.subr.mxu0 0.0
    %962 = vmatpush2.msra.mxu0 0.0
    %963 = vmatprep.subr.mxu0 0.0
    %964 = vmatpush2.msra.mxu0 0.0
    %965 = vmatprep.subr.mxu0 0.0
    %966 = vmatpush2.msra.mxu0 0.0
    %967 = vmatprep.subr.mxu0 0.0
    %968 = vmatpush2.msra.mxu0 0.0
    %969 = vmatprep.subr.mxu0 0.0
    %970 = vmatpush2.msra.mxu0 0.0
    %971 = vmatprep.subr.mxu0 0.0
    %972 = vmatpush2.msra.mxu0 0.0
    %973 = vmatprep.subr.mxu0 0.0
    %974 = vmatpush2.msra.mxu0 0.0
    %975 = vmatprep.subr.mxu0 0.0
    %976 = vmatpush2.msra.mxu0 0.0
    %977 = vmatprep.mubr.f32.mxu0 0.0
    %978 = vmatmul.mubr.f32.gmra.mxu0 %v736
    %v979 = vpop.f32.mrf.mxu0
    %v980 = vadd.f32 0.0, %v979
    %v981 = vpop.f32.mrf.mxu0
    %982 = vdwg.mxu0
    %983 = vmatprep.subr.mxu0 0.0
    %984 = vmatpush1.msra.mxu0 0.0
    %985 = vmatprep.subr.mxu0 0.0
    %986 = vmatpush1.msra.mxu0 0.0
    %987 = vmatprep.subr.mxu0 0.0
    %988 = vmatpush1.msra.mxu0 0.0
    %989 = vmatprep.subr.mxu0 0.0
    %990 = vmatpush1.msra.mxu0 0.0
    %991 = vmatprep.subr.mxu0 0.0
    %992 = vmatpush1.msra.mxu0 0.0
    %993 = vmatprep.subr.mxu0 0.0
    %994 = vmatpush1.msra.mxu0 0.0
    %995 = vmatprep.subr.mxu0 0.0
    %996 = vmatpush1.msra.mxu0 0.0
    %997 = vmatprep.subr.mxu0 0.0
    %998 = vmatpush1.msra.mxu0 0.0
    %999 = vmatprep.subr.mxu0 0.0
    %1000 = vmatpush1.msra.mxu0 0.0
    %1001 = vmatprep.subr.mxu0 0.0
    %1002 = vmatpush1.msra.mxu0 0.0
    %1003 = vmatprep.subr.mxu0 0.0
    %1004 = vmatpush1.msra.mxu0 0.0
    %1005 = vmatprep.subr.mxu0 0.0
    %1006 = vmatpush1.msra.mxu0 0.0
    %1007 = vmatprep.subr.mxu0 0.0
    %1008 = vmatpush1.msra.mxu0 0.0
    %1009 = vmatprep.subr.mxu0 0.0
    %1010 = vmatpush1.msra.mxu0 0.0
    %1011 = vmatprep.subr.mxu0 0.0
    %1012 = vmatpush1.msra.mxu0 0.0
    %1013 = vmatprep.subr.mxu0 0.0
    %1014 = vmatpush1.msra.mxu0 %v900
    %1015 = vmatprep.subr.mxu0 0.0
    %1016 = vmatpush2.msra.mxu0 0.0
    %1017 = vmatprep.subr.mxu0 0.0
    %1018 = vmatpush2.msra.mxu0 0.0
    %1019 = vmatprep.subr.mxu0 0.0
    %1020 = vmatpush2.msra.mxu0 0.0
    %1021 = vmatprep.subr.mxu0 0.0
    %1022 = vmatpush2.msra.mxu0 0.0
    %1023 = vmatprep.subr.mxu0 0.0
    %1024 = vmatpush2.msra.mxu0 0.0
    %1025 = vmatprep.subr.mxu0 0.0
    %1026 = vmatpush2.msra.mxu0 0.0
    %1027 = vmatprep.subr.mxu0 0.0
    %1028 = vmatpush2.msra.mxu0 0.0
    %1029 = vmatprep.subr.mxu0 0.0
    %1030 = vmatpush2.msra.mxu0 0.0
    %1031 = vmatprep.subr.mxu0 0.0
    %1032 = vmatpush2.msra.mxu0 0.0
    %1033 = vmatprep.subr.mxu0 0.0
    %1034 = vmatpush2.msra.mxu0 0.0
    %1035 = vmatprep.subr.mxu0 0.0
    %1036 = vmatpush2.msra.mxu0 0.0
    %1037 = vmatprep.subr.mxu0 0.0
    %1038 = vmatpush2.msra.mxu0 0.0
    %1039 = vmatprep.subr.mxu0 0.0
    %1040 = vmatpush2.msra.mxu0 0.0
    %1041 = vmatprep.subr.mxu0 0.0
    %1042 = vmatpush2.msra.mxu0 0.0
    %1043 = vmatprep.subr.mxu0 0.0
    %1044 = vmatpush2.msra.mxu0 0.0
    %1045 = vmatprep.subr.mxu0 0.0
    %1046 = vmatpush2.msra.mxu0 0.0
    %1047 = vmatprep.mubr.f32.mxu0 0.0
    %1048 = vmatmul.mubr.f32.gmra.mxu0 %v825
    %v1049 = vpop.f32.mrf.mxu0
    %v1050 = vadd.f32 0.0, %v1049
    %v1051 = vpop.f32.mrf.mxu0
    %1052 = vdwg.mxu0
    %1053 = vst.msk [vmem:[%s6] sm:$0xff] %vm50, %v980
    %1054 = vst.msk [vmem:[%s6 + $0x8] sm:$0xff] %vm50, %v1050
    %1055 = vmatprep.subr.mxu0 0.0
    %1056 = vmatpush1.msra.mxu0 0.0
    %1057 = vmatprep.subr.mxu0 0.0
    %1058 = vmatpush1.msra.mxu0 0.0
    %1059 = vmatprep.subr.mxu0 0.0
    %1060 = vmatpush1.msra.mxu0 0.0
    %1061 = vmatprep.subr.mxu0 0.0
    %1062 = vmatpush1.msra.mxu0 0.0
    %1063 = vmatprep.subr.mxu0 0.0
    %1064 = vmatpush1.msra.mxu0 0.0
    %1065 = vmatprep.subr.mxu0 0.0
    %1066 = vmatpush1.msra.mxu0 0.0
    %1067 = vmatprep.subr.mxu0 0.0
    %1068 = vmatpush1.msra.mxu0 0.0
    %1069 = vmatprep.subr.mxu0 0.0
    %1070 = vmatpush1.msra.mxu0 0.0
    %1071 = vmatprep.subr.mxu0 0.0
    %1072 = vmatpush1.msra.mxu0 0.0
    %1073 = vmatprep.subr.mxu0 0.0
    %1074 = vmatpush1.msra.mxu0 0.0
    %1075 = vmatprep.subr.mxu0 0.0
    %1076 = vmatpush1.msra.mxu0 0.0
    %1077 = vmatprep.subr.mxu0 0.0
    %1078 = vmatpush1.msra.mxu0 0.0
    %1079 = vmatprep.subr.mxu0 0.0
    %1080 = vmatpush1.msra.mxu0 0.0
    %1081 = vmatprep.subr.mxu0 0.0
    %1082 = vmatpush1.msra.mxu0 0.0
    %1083 = vmatprep.subr.mxu0 0.0
    %1084 = vmatpush1.msra.mxu0 0.0
    %1085 = vmatprep.subr.mxu0 0.0
    %1086 = vmatpush1.msra.mxu0 %v816
    %1087 = vmatprep.subr.mxu0 0.0
    %1088 = vmatpush2.msra.mxu0 0.0
    %1089 = vmatprep.subr.mxu0 0.0
    %1090 = vmatpush2.msra.mxu0 0.0
    %1091 = vmatprep.subr.mxu0 0.0
    %1092 = vmatpush2.msra.mxu0 0.0
    %1093 = vmatprep.subr.mxu0 0.0
    %1094 = vmatpush2.msra.mxu0 0.0
    %1095 = vmatprep.subr.mxu0 0.0
    %1096 = vmatpush2.msra.mxu0 0.0
    %1097 = vmatprep.subr.mxu0 0.0
    %1098 = vmatpush2.msra.mxu0 0.0
    %1099 = vmatprep.subr.mxu0 0.0
    %1100 = vmatpush2.msra.mxu0 0.0
    %1101 = vmatprep.subr.mxu0 0.0
    %1102 = vmatpush2.msra.mxu0 0.0
    %1103 = vmatprep.subr.mxu0 0.0
    %1104 = vmatpush2.msra.mxu0 0.0
    %1105 = vmatprep.subr.mxu0 0.0
    %1106 = vmatpush2.msra.mxu0 0.0
    %1107 = vmatprep.subr.mxu0 0.0
    %1108 = vmatpush2.msra.mxu0 0.0
    %1109 = vmatprep.subr.mxu0 0.0
    %1110 = vmatpush2.msra.mxu0 0.0
    %1111 = vmatprep.subr.mxu0 0.0
    %1112 = vmatpush2.msra.mxu0 0.0
    %1113 = vmatprep.subr.mxu0 0.0
    %1114 = vmatpush2.msra.mxu0 0.0
    %1115 = vmatprep.subr.mxu0 0.0
    %1116 = vmatpush2.msra.mxu0 0.0
    %1117 = vmatprep.subr.mxu0 0.0
    %1118 = vmatpush2.msra.mxu0 0.0
    %1119 = vmatprep.mubr.f32.mxu0 0.0
    %1120 = vmatmul.mubr.f32.gmra.mxu0 %v739
    %v1121 = vpop.f32.mrf.mxu0
    %v1122 = vadd.f32 0.0, %v1121
    %v1123 = vpop.f32.mrf.mxu0
    %1124 = vdwg.mxu0
    %1125 = vmatprep.subr.mxu0 0.0
    %1126 = vmatpush1.msra.mxu0 0.0
    %1127 = vmatprep.subr.mxu0 0.0
    %1128 = vmatpush1.msra.mxu0 0.0
    %1129 = vmatprep.subr.mxu0 0.0
    %1130 = vmatpush1.msra.mxu0 0.0
    %1131 = vmatprep.subr.mxu0 0.0
    %1132 = vmatpush1.msra.mxu0 0.0
    %1133 = vmatprep.subr.mxu0 0.0
    %1134 = vmatpush1.msra.mxu0 0.0
    %1135 = vmatprep.subr.mxu0 0.0
    %1136 = vmatpush1.msra.mxu0 0.0
    %1137 = vmatprep.subr.mxu0 0.0
    %1138 = vmatpush1.msra.mxu0 0.0
    %1139 = vmatprep.subr.mxu0 0.0
    %1140 = vmatpush1.msra.mxu0 0.0
    %1141 = vmatprep.subr.mxu0 0.0
    %1142 = vmatpush1.msra.mxu0 0.0
    %1143 = vmatprep.subr.mxu0 0.0
    %1144 = vmatpush1.msra.mxu0 0.0
    %1145 = vmatprep.subr.mxu0 0.0
    %1146 = vmatpush1.msra.mxu0 0.0
    %1147 = vmatprep.subr.mxu0 0.0
    %1148 = vmatpush1.msra.mxu0 0.0
    %1149 = vmatprep.subr.mxu0 0.0
    %1150 = vmatpush1.msra.mxu0 0.0
    %1151 = vmatprep.subr.mxu0 0.0
    %1152 = vmatpush1.msra.mxu0 0.0
    %1153 = vmatprep.subr.mxu0 0.0
    %1154 = vmatpush1.msra.mxu0 0.0
    %1155 = vmatprep.subr.mxu0 0.0
    %1156 = vmatpush1.msra.mxu0 %v905
    %1157 = vmatprep.subr.mxu0 0.0
    %1158 = vmatpush2.msra.mxu0 0.0
    %1159 = vmatprep.subr.mxu0 0.0
    %1160 = vmatpush2.msra.mxu0 0.0
    %1161 = vmatprep.subr.mxu0 0.0
    %1162 = vmatpush2.msra.mxu0 0.0
    %1163 = vmatprep.subr.mxu0 0.0
    %1164 = vmatpush2.msra.mxu0 0.0
    %1165 = vmatprep.subr.mxu0 0.0
    %1166 = vmatpush2.msra.mxu0 0.0
    %1167 = vmatprep.subr.mxu0 0.0
    %1168 = vmatpush2.msra.mxu0 0.0
    %1169 = vmatprep.subr.mxu0 0.0
    %1170 = vmatpush2.msra.mxu0 0.0
    %1171 = vmatprep.subr.mxu0 0.0
    %1172 = vmatpush2.msra.mxu0 0.0
    %1173 = vmatprep.subr.mxu0 0.0
    %1174 = vmatpush2.msra.mxu0 0.0
    %1175 = vmatprep.subr.mxu0 0.0
    %1176 = vmatpush2.msra.mxu0 0.0
    %1177 = vmatprep.subr.mxu0 0.0
    %1178 = vmatpush2.msra.mxu0 0.0
    %1179 = vmatprep.subr.mxu0 0.0
    %1180 = vmatpush2.msra.mxu0 0.0
    %1181 = vmatprep.subr.mxu0 0.0
    %1182 = vmatpush2.msra.mxu0 0.0
    %1183 = vmatprep.subr.mxu0 0.0
    %1184 = vmatpush2.msra.mxu0 0.0
    %1185 = vmatprep.subr.mxu0 0.0
    %1186 = vmatpush2.msra.mxu0 0.0
    %1187 = vmatprep.subr.mxu0 0.0
    %1188 = vmatpush2.msra.mxu0 0.0
    %1189 = vmatprep.mubr.f32.mxu0 0.0
    %1190 = vmatmul.mubr.f32.gmra.mxu0 %v828
    %v1191 = vpop.f32.mrf.mxu0
    %v1192 = vadd.f32 0.0, %v1191
    %v1193 = vpop.f32.mrf.mxu0
    %1194 = vdwg.mxu0
    %s1195 = scalar_lea.vmem %s6, 48
    %1196 = vst.msk [vmem:[%s1195] sm:$0xff] %vm50, %v1122
    %1197 = vst.msk [vmem:[%s1195 + $0x8] sm:$0xff] %vm50, %v1192
    %1198 = vmatprep.subr.mxu0 0.0
    %1199 = vmatpush1.msra.mxu0 0.0
    %1200 = vmatprep.subr.mxu0 0.0
    %1201 = vmatpush1.msra.mxu0 0.0
    %1202 = vmatprep.subr.mxu0 0.0
    %1203 = vmatpush1.msra.mxu0 0.0
    %1204 = vmatprep.subr.mxu0 0.0
    %1205 = vmatpush1.msra.mxu0 0.0
    %1206 = vmatprep.subr.mxu0 0.0
    %1207 = vmatpush1.msra.mxu0 0.0
    %1208 = vmatprep.subr.mxu0 0.0
    %1209 = vmatpush1.msra.mxu0 0.0
    %1210 = vmatprep.subr.mxu0 0.0
    %1211 = vmatpush1.msra.mxu0 0.0
    %1212 = vmatprep.subr.mxu0 0.0
    %1213 = vmatpush1.msra.mxu0 0.0
    %1214 = vmatprep.subr.mxu0 0.0
    %1215 = vmatpush1.msra.mxu0 0.0
    %1216 = vmatprep.subr.mxu0 0.0
    %1217 = vmatpush1.msra.mxu0 0.0
    %1218 = vmatprep.subr.mxu0 0.0
    %1219 = vmatpush1.msra.mxu0 0.0
    %1220 = vmatprep.subr.mxu0 0.0
    %1221 = vmatpush1.msra.mxu0 0.0
    %1222 = vmatprep.subr.mxu0 0.0
    %1223 = vmatpush1.msra.mxu0 0.0
    %1224 = vmatprep.subr.mxu0 0.0
    %1225 = vmatpush1.msra.mxu0 0.0
    %1226 = vmatprep.subr.mxu0 0.0
    %1227 = vmatpush1.msra.mxu0 0.0
    %1228 = vmatprep.subr.mxu0 0.0
    %1229 = vmatpush1.msra.mxu0 %v821
    %1230 = vmatprep.subr.mxu0 0.0
    %1231 = vmatpush2.msra.mxu0 0.0
    %1232 = vmatprep.subr.mxu0 0.0
    %1233 = vmatpush2.msra.mxu0 0.0
    %1234 = vmatprep.subr.mxu0 0.0
    %1235 = vmatpush2.msra.mxu0 0.0
    %1236 = vmatprep.subr.mxu0 0.0
    %1237 = vmatpush2.msra.mxu0 0.0
    %1238 = vmatprep.subr.mxu0 0.0
    %1239 = vmatpush2.msra.mxu0 0.0
    %1240 = vmatprep.subr.mxu0 0.0
    %1241 = vmatpush2.msra.mxu0 0.0
    %1242 = vmatprep.subr.mxu0 0.0
    %1243 = vmatpush2.msra.mxu0 0.0
    %1244 = vmatprep.subr.mxu0 0.0
    %1245 = vmatpush2.msra.mxu0 0.0
    %1246 = vmatprep.subr.mxu0 0.0
    %1247 = vmatpush2.msra.mxu0 0.0
    %1248 = vmatprep.subr.mxu0 0.0
    %1249 = vmatpush2.msra.mxu0 0.0
    %1250 = vmatprep.subr.mxu0 0.0
    %1251 = vmatpush2.msra.mxu0 0.0
    %1252 = vmatprep.subr.mxu0 0.0
    %1253 = vmatpush2.msra.mxu0 0.0
    %1254 = vmatprep.subr.mxu0 0.0
    %1255 = vmatpush2.msra.mxu0 0.0
    %1256 = vmatprep.subr.mxu0 0.0
    %1257 = vmatpush2.msra.mxu0 0.0
    %1258 = vmatprep.subr.mxu0 0.0
    %1259 = vmatpush2.msra.mxu0 0.0
    %1260 = vmatprep.subr.mxu0 0.0
    %1261 = vmatpush2.msra.mxu0 0.0
    %1262 = vmatprep.mubr.f32.mxu0 0.0
    %1263 = vmatmul.mubr.f32.gmra.mxu0 %v742
    %v1264 = vpop.f32.mrf.mxu0
    %v1265 = vadd.f32 0.0, %v1264
    %v1266 = vpop.f32.mrf.mxu0
    %1267 = vdwg.mxu0
    %1268 = vmatprep.subr.mxu0 0.0
    %1269 = vmatpush1.msra.mxu0 0.0
    %1270 = vmatprep.subr.mxu0 0.0
    %1271 = vmatpush1.msra.mxu0 0.0
    %1272 = vmatprep.subr.mxu0 0.0
    %1273 = vmatpush1.msra.mxu0 0.0
    %1274 = vmatprep.subr.mxu0 0.0
    %1275 = vmatpush1.msra.mxu0 0.0
    %1276 = vmatprep.subr.mxu0 0.0
    %1277 = vmatpush1.msra.mxu0 0.0
    %1278 = vmatprep.subr.mxu0 0.0
    %1279 = vmatpush1.msra.mxu0 0.0
    %1280 = vmatprep.subr.mxu0 0.0
    %1281 = vmatpush1.msra.mxu0 0.0
    %1282 = vmatprep.subr.mxu0 0.0
    %1283 = vmatpush1.msra.mxu0 0.0
    %1284 = vmatprep.subr.mxu0 0.0
    %1285 = vmatpush1.msra.mxu0 0.0
    %1286 = vmatprep.subr.mxu0 0.0
    %1287 = vmatpush1.msra.mxu0 0.0
    %1288 = vmatprep.subr.mxu0 0.0
    %1289 = vmatpush1.msra.mxu0 0.0
    %1290 = vmatprep.subr.mxu0 0.0
    %1291 = vmatpush1.msra.mxu0 0.0
    %1292 = vmatprep.subr.mxu0 0.0
    %1293 = vmatpush1.msra.mxu0 0.0
    %1294 = vmatprep.subr.mxu0 0.0
    %1295 = vmatpush1.msra.mxu0 0.0
    %1296 = vmatprep.subr.mxu0 0.0
    %1297 = vmatpush1.msra.mxu0 0.0
    %1298 = vmatprep.subr.mxu0 0.0
    %1299 = vmatpush1.msra.mxu0 %v910
    %1300 = vmatprep.subr.mxu0 0.0
    %1301 = vmatpush2.msra.mxu0 0.0
    %1302 = vmatprep.subr.mxu0 0.0
    %1303 = vmatpush2.msra.mxu0 0.0
    %1304 = vmatprep.subr.mxu0 0.0
    %1305 = vmatpush2.msra.mxu0 0.0
    %1306 = vmatprep.subr.mxu0 0.0
    %1307 = vmatpush2.msra.mxu0 0.0
    %1308 = vmatprep.subr.mxu0 0.0
    %1309 = vmatpush2.msra.mxu0 0.0
    %1310 = vmatprep.subr.mxu0 0.0
    %1311 = vmatpush2.msra.mxu0 0.0
    %1312 = vmatprep.subr.mxu0 0.0
    %1313 = vmatpush2.msra.mxu0 0.0
    %1314 = vmatprep.subr.mxu0 0.0
    %1315 = vmatpush2.msra.mxu0 0.0
    %1316 = vmatprep.subr.mxu0 0.0
    %1317 = vmatpush2.msra.mxu0 0.0
    %1318 = vmatprep.subr.mxu0 0.0
    %1319 = vmatpush2.msra.mxu0 0.0
    %1320 = vmatprep.subr.mxu0 0.0
    %1321 = vmatpush2.msra.mxu0 0.0
    %1322 = vmatprep.subr.mxu0 0.0
    %1323 = vmatpush2.msra.mxu0 0.0
    %1324 = vmatprep.subr.mxu0 0.0
    %1325 = vmatpush2.msra.mxu0 0.0
    %1326 = vmatprep.subr.mxu0 0.0
    %1327 = vmatpush2.msra.mxu0 0.0
    %1328 = vmatprep.subr.mxu0 0.0
    %1329 = vmatpush2.msra.mxu0 0.0
    %1330 = vmatprep.subr.mxu0 0.0
    %1331 = vmatpush2.msra.mxu0 0.0
    %1332 = vmatprep.mubr.f32.mxu0 0.0
    %1333 = vmatmul.mubr.f32.gmra.mxu0 %v831
    %v1334 = vpop.f32.mrf.mxu0
    %v1335 = vadd.f32 0.0, %v1334
    %v1336 = vpop.f32.mrf.mxu0
    %1337 = vdwg.mxu0
    %s1338 = scalar_lea.vmem %s6, 96
    %1339 = vst.msk [vmem:[%s1338] sm:$0xff] %vm50, %v1265
    %1340 = vst.msk [vmem:[%s1338 + $0x8] sm:$0xff] %vm50, %v1335
    %1341 = vmatprep.subr.mxu0 0.0
    %1342 = vmatpush1.xpose.msra.mxu0 0.0
    %1343 = vmatprep.subr.mxu0 0.0
    %1344 = vmatpush1.xpose.msra.mxu0 0.0
    %1345 = vmatprep.subr.mxu0 0.0
    %1346 = vmatpush1.xpose.msra.mxu0 0.0
    %1347 = vmatprep.subr.mxu0 0.0
    %1348 = vmatpush1.xpose.msra.mxu0 0.0
    %1349 = vmatprep.subr.mxu0 0.0
    %1350 = vmatpush1.xpose.msra.mxu0 0.0
    %1351 = vmatprep.subr.mxu0 0.0
    %1352 = vmatpush1.xpose.msra.mxu0 0.0
    %1353 = vmatprep.subr.mxu0 0.0
    %1354 = vmatpush1.xpose.msra.mxu0 0.0
    %1355 = vmatprep.subr.mxu0 0.0
    %1356 = vmatpush1.xpose.msra.mxu0 0.0
    %1357 = vmatprep.subr.mxu0 0.0
    %1358 = vmatpush1.xpose.msra.mxu0 0.0
    %1359 = vmatprep.subr.mxu0 0.0
    %1360 = vmatpush1.xpose.msra.mxu0 0.0
    %1361 = vmatprep.subr.mxu0 0.0
    %1362 = vmatpush1.xpose.msra.mxu0 0.0
    %1363 = vmatprep.subr.mxu0 0.0
    %1364 = vmatpush1.xpose.msra.mxu0 0.0
    %1365 = vmatprep.subr.mxu0 0.0
    %1366 = vmatpush1.xpose.msra.mxu0 0.0
    %1367 = vmatprep.subr.mxu0 0.0
    %1368 = vmatpush1.xpose.msra.mxu0 0.0
    %1369 = vmatprep.subr.mxu0 0.0
    %1370 = vmatpush1.xpose.msra.mxu0 0.0
    %1371 = vmatprep.subr.mxu0 0.0
    %1372 = vmatpush1.xpose.msra.mxu0 %v350
    %1373 = vmatprep.subr.mxu0 0.0
    %1374 = vmatpush2.xpose.msra.mxu0 0.0
    %1375 = vmatprep.subr.mxu0 0.0
    %1376 = vmatpush2.xpose.msra.mxu0 0.0
    %1377 = vmatprep.subr.mxu0 0.0
    %1378 = vmatpush2.xpose.msra.mxu0 0.0
    %1379 = vmatprep.subr.mxu0 0.0
    %1380 = vmatpush2.xpose.msra.mxu0 0.0
    %1381 = vmatprep.subr.mxu0 0.0
    %1382 = vmatpush2.xpose.msra.mxu0 0.0
    %1383 = vmatprep.subr.mxu0 0.0
    %1384 = vmatpush2.xpose.msra.mxu0 0.0
    %1385 = vmatprep.subr.mxu0 0.0
    %1386 = vmatpush2.xpose.msra.mxu0 0.0
    %1387 = vmatprep.subr.mxu0 0.0
    %1388 = vmatpush2.xpose.msra.mxu0 0.0
    %1389 = vmatprep.subr.mxu0 0.0
    %1390 = vmatpush2.xpose.msra.mxu0 0.0
    %1391 = vmatprep.subr.mxu0 0.0
    %1392 = vmatpush2.xpose.msra.mxu0 0.0
    %1393 = vmatprep.subr.mxu0 0.0
    %1394 = vmatpush2.xpose.msra.mxu0 0.0
    %1395 = vmatprep.subr.mxu0 0.0
    %1396 = vmatpush2.xpose.msra.mxu0 0.0
    %1397 = vmatprep.subr.mxu0 0.0
    %1398 = vmatpush2.xpose.msra.mxu0 0.0
    %1399 = vmatprep.subr.mxu0 0.0
    %1400 = vmatpush2.xpose.msra.mxu0 0.0
    %1401 = vmatprep.subr.mxu0 0.0
    %1402 = vmatpush2.xpose.msra.mxu0 0.0
    %1403 = vmatprep.subr.mxu0 0.0
    %1404 = vmatpush2.xpose.msra.mxu0 0.0
    %1405 = vmatprep.mubr.f32.mxu0 0.0
    %1406 = vmatmul.mubr.f32.gmra.mxu0 %v344
    %v1407 = vpop.f32.mrf.mxu0
    %v1408 = vadd.f32 0.0, %v1407
    %v1409 = vpop.f32.mrf.mxu0
    %1410 = vmatprep.mubr.f32.mxu0 0.0
    %1411 = vmatmul.mubr.f32.gmra.mxu0 %v350
    %v1412 = vpop.f32.mrf.mxu0
    %v1413 = vadd.f32 0.0, %v1412
    %v1414 = vpop.f32.mrf.mxu0
    %1415 = vmatprep.mubr.f32.mxu0 0.0
    %1416 = vmatmul.mubr.f32.gmra.mxu0 %v356
    %v1417 = vpop.f32.mrf.mxu0
    %v1418 = vadd.f32 0.0, %v1417
    %v1419 = vpop.f32.mrf.mxu0
    %1420 = vdwg.mxu0
    %1421 = vmatprep.subr.mxu0 0.0
    %1422 = vmatpush1.xpose.msra.mxu0 0.0
    %1423 = vmatprep.subr.mxu0 0.0
    %1424 = vmatpush1.xpose.msra.mxu0 0.0
    %1425 = vmatprep.subr.mxu0 0.0
    %1426 = vmatpush1.xpose.msra.mxu0 0.0
    %1427 = vmatprep.subr.mxu0 0.0
    %1428 = vmatpush1.xpose.msra.mxu0 0.0
    %1429 = vmatprep.subr.mxu0 0.0
    %1430 = vmatpush1.xpose.msra.mxu0 0.0
    %1431 = vmatprep.subr.mxu0 0.0
    %1432 = vmatpush1.xpose.msra.mxu0 0.0
    %1433 = vmatprep.subr.mxu0 0.0
    %1434 = vmatpush1.xpose.msra.mxu0 0.0
    %1435 = vmatprep.subr.mxu0 0.0
    %1436 = vmatpush1.xpose.msra.mxu0 0.0
    %1437 = vmatprep.subr.mxu0 0.0
    %1438 = vmatpush1.xpose.msra.mxu0 0.0
    %1439 = vmatprep.subr.mxu0 0.0
    %1440 = vmatpush1.xpose.msra.mxu0 0.0
    %1441 = vmatprep.subr.mxu0 0.0
    %1442 = vmatpush1.xpose.msra.mxu0 0.0
    %1443 = vmatprep.subr.mxu0 0.0
    %1444 = vmatpush1.xpose.msra.mxu0 0.0
    %1445 = vmatprep.subr.mxu0 0.0
    %1446 = vmatpush1.xpose.msra.mxu0 0.0
    %1447 = vmatprep.subr.mxu0 0.0
    %1448 = vmatpush1.xpose.msra.mxu0 0.0
    %1449 = vmatprep.subr.mxu0 0.0
    %1450 = vmatpush1.xpose.msra.mxu0 0.0
    %1451 = vmatprep.subr.mxu0 0.0
    %1452 = vmatpush1.xpose.msra.mxu0 %v353
    %1453 = vmatprep.subr.mxu0 0.0
    %1454 = vmatpush2.xpose.msra.mxu0 0.0
    %1455 = vmatprep.subr.mxu0 0.0
    %1456 = vmatpush2.xpose.msra.mxu0 0.0
    %1457 = vmatprep.subr.mxu0 0.0
    %1458 = vmatpush2.xpose.msra.mxu0 0.0
    %1459 = vmatprep.subr.mxu0 0.0
    %1460 = vmatpush2.xpose.msra.mxu0 0.0
    %1461 = vmatprep.subr.mxu0 0.0
    %1462 = vmatpush2.xpose.msra.mxu0 0.0
    %1463 = vmatprep.subr.mxu0 0.0
    %1464 = vmatpush2.xpose.msra.mxu0 0.0
    %1465 = vmatprep.subr.mxu0 0.0
    %1466 = vmatpush2.xpose.msra.mxu0 0.0
    %1467 = vmatprep.subr.mxu0 0.0
    %1468 = vmatpush2.xpose.msra.mxu0 0.0
    %1469 = vmatprep.subr.mxu0 0.0
    %1470 = vmatpush2.xpose.msra.mxu0 0.0
    %1471 = vmatprep.subr.mxu0 0.0
    %1472 = vmatpush2.xpose.msra.mxu0 0.0
    %1473 = vmatprep.subr.mxu0 0.0
    %1474 = vmatpush2.xpose.msra.mxu0 0.0
    %1475 = vmatprep.subr.mxu0 0.0
    %1476 = vmatpush2.xpose.msra.mxu0 0.0
    %1477 = vmatprep.subr.mxu0 0.0
    %1478 = vmatpush2.xpose.msra.mxu0 0.0
    %1479 = vmatprep.subr.mxu0 0.0
    %1480 = vmatpush2.xpose.msra.mxu0 0.0
    %1481 = vmatprep.subr.mxu0 0.0
    %1482 = vmatpush2.xpose.msra.mxu0 0.0
    %1483 = vmatprep.subr.mxu0 0.0
    %1484 = vmatpush2.xpose.msra.mxu0 0.0
    %1485 = vmatprep.mubr.f32.mxu0 0.0
    %1486 = vmatmul.mubr.f32.gmra.mxu0 %v347
    %v1487 = vpop.f32.mrf.mxu0
    %v1488 = vadd.f32 0.0, %v1487
    %v1489 = vpop.f32.mrf.mxu0
    %1490 = vmatprep.mubr.f32.mxu0 0.0
    %1491 = vmatmul.mubr.f32.gmra.mxu0 %v353
    %v1492 = vpop.f32.mrf.mxu0
    %v1493 = vadd.f32 0.0, %v1492
    %v1494 = vpop.f32.mrf.mxu0
    %1495 = vmatprep.mubr.f32.mxu0 0.0
    %1496 = vmatmul.mubr.f32.gmra.mxu0 %v359
    %v1497 = vpop.f32.mrf.mxu0
    %v1498 = vadd.f32 0.0, %v1497
    %v1499 = vpop.f32.mrf.mxu0
    %1500 = vdwg.mxu0
    %v1501 = vmul.f32 %v1408, 0.17677669
    %v1502 = vmul.f32 %v1413, 0.17677669
    %v1503 = vmul.f32 %v1418, 0.17677669
    %v1504 = vmul.f32 %v1488, 0.17677669
    %v1505 = vmul.f32 %v1493, 0.17677669
    %v1506 = vmul.f32 %v1498, 0.17677669
    %v1507 = vmax.f32 %v1501, 0.0
    %v1508 = vmax.f32 %v1502, 0.0
    %v1509 = vmax.f32 %v1503, 0.0
    %v1510 = vmax.f32 %v1504, 0.0
    %v1511 = vmax.f32 %v1505, 0.0
    %v1512 = vmax.f32 %v1506, 0.0
    %v1513 = vsel %vm658, %v1507, -inf
    %1514 = vmax.xlane.f32.xlu0 %v1513
    %v1515 = vpop.xlane.xlu0 %1514
    %v1516 = vsel %vm658, %v1508, -inf
    %1517 = vmax.xlane.f32.xlu0 %v1516
    %v1518 = vpop.xlane.xlu0 %1517
    %v1519 = vsel %vm658, %v1509, -inf
    %1520 = vmax.xlane.f32.xlu0 %v1519
    %v1521 = vpop.xlane.xlu0 %1520
    %v1522 = vsel %vm658, %v1510, -inf
    %1523 = vmax.xlane.f32.xlu0 %v1522
    %v1524 = vpop.xlane.xlu0 %1523
    %v1525 = vsel %vm658, %v1511, -inf
    %1526 = vmax.xlane.f32.xlu0 %v1525
    %v1527 = vpop.xlane.xlu0 %1526
    %v1528 = vsel %vm658, %v1512, -inf
    %1529 = vmax.xlane.f32.xlu0 %v1528
    %v1530 = vpop.xlane.xlu0 %1529
    %v1531 = vsub.f32 %v1507, %v1515
    %v1532 = vsub.f32 %v1508, %v1518
    %v1533 = vsub.f32 %v1509, %v1521
    %v1534 = vsub.f32 %v1510, %v1524
    %v1535 = vsub.f32 %v1511, %v1527
    %v1536 = vsub.f32 %v1512, %v1530
    %v1537 = vmul.f32 %v1531, 1.442695
    %v1538 = vpow.pop %v1537
    %v1539 = vmul.f32 %v1532, 1.442695
    %v1540 = vpow.pop %v1539
    %v1541 = vmul.f32 %v1533, 1.442695
    %v1542 = vpow.pop %v1541
    %v1543 = vmul.f32 %v1534, 1.442695
    %v1544 = vpow.pop %v1543
    %v1545 = vmul.f32 %v1535, 1.442695
    %v1546 = vpow.pop %v1545
    %v1547 = vmul.f32 %v1536, 1.442695
    %v1548 = vpow.pop %v1547
    %v1549 = vsel %vm658, %v1538, 0.0
    %1550 = vadd.xlane.f32.xlu0 %v1549
    %v1551 = vpop.xlane.xlu0 %1550
    %v1552 = vsel %vm658, %v1540, 0.0
    %1553 = vadd.xlane.f32.xlu0 %v1552
    %v1554 = vpop.xlane.xlu0 %1553
    %v1555 = vsel %vm658, %v1542, 0.0
    %1556 = vadd.xlane.f32.xlu0 %v1555
    %v1557 = vpop.xlane.xlu0 %1556
    %v1558 = vsel %vm658, %v1544, 0.0
    %1559 = vadd.xlane.f32.xlu0 %v1558
    %v1560 = vpop.xlane.xlu0 %1559
    %v1561 = vsel %vm658, %v1546, 0.0
    %1562 = vadd.xlane.f32.xlu0 %v1561
    %v1563 = vpop.xlane.xlu0 %1562
    %v1564 = vsel %vm658, %v1548, 0.0
    %1565 = vadd.xlane.f32.xlu0 %v1564
    %v1566 = vpop.xlane.xlu0 %1565
    %v1567 = vrcp.pop %v1551
    %v1568 = vrcp.pop %v1554
    %v1569 = vrcp.pop %v1557
    %v1570 = vrcp.pop %v1560
    %v1571 = vrcp.pop %v1563
    %v1572 = vrcp.pop %v1566
    %v1573 = vmul.f32 %v1538, %v1567
    %v1574 = vmul.f32 %v1540, %v1568
    %v1575 = vmul.f32 %v1542, %v1569
    %v1576 = vmul.f32 %v1544, %v1570
    %v1577 = vmul.f32 %v1546, %v1571
    %v1578 = vmul.f32 %v1548, %v1572
    %v1579 = vadd.f32 %v1573, %v1574
    %v1580 = vadd.f32 %v1576, %v1577
    %v1581 = vadd.f32 %v1579, %v1575
    %v1582 = vadd.f32 %v1580, %v1578
    %v1583 = vsub.f32 %v1581, %v482
    %v1584 = vsub.f32 %v1582, %v483
    %v1585 = vmul.f32 %v1583, %v1583
    %v1586 = vmul.f32 %v1584, %v1584
    %v1587 = vadd.f32 %v733, %v1585
    %v1588 = vadd.f32 %v734, %v1586
    %v1590 = vsel %vm658, %v1573, 0
    %v1593 = vsel %vm658, %v1574, 0
    %v1596 = vsel %vm658, %v1575, 0
    %1598 = vmatprep.subr.mxu0 0.0
    %1599 = vmatpush1.msra.mxu0 0.0
    %1600 = vmatprep.subr.mxu0 0.0
    %1601 = vmatpush1.msra.mxu0 0.0
    %1602 = vmatprep.subr.mxu0 0.0
    %1603 = vmatpush1.msra.mxu0 0.0
    %1604 = vmatprep.subr.mxu0 0.0
    %1605 = vmatpush1.msra.mxu0 0.0
    %1606 = vmatprep.subr.mxu0 0.0
    %1607 = vmatpush1.msra.mxu0 0.0
    %1608 = vmatprep.subr.mxu0 0.0
    %1609 = vmatpush1.msra.mxu0 0.0
    %1610 = vmatprep.subr.mxu0 0.0
    %1611 = vmatpush1.msra.mxu0 0.0
    %1612 = vmatprep.subr.mxu0 0.0
    %1613 = vmatpush1.msra.mxu0 0.0
    %1614 = vmatprep.subr.mxu0 0.0
    %1615 = vmatpush1.msra.mxu0 0.0
    %1616 = vmatprep.subr.mxu0 0.0
    %1617 = vmatpush1.msra.mxu0 0.0
    %1618 = vmatprep.subr.mxu0 0.0
    %1619 = vmatpush1.msra.mxu0 0.0
    %1620 = vmatprep.subr.mxu0 0.0
    %1621 = vmatpush1.msra.mxu0 0.0
    %1622 = vmatprep.subr.mxu0 0.0
    %1623 = vmatpush1.msra.mxu0 0.0
    %1624 = vmatprep.subr.mxu0 0.0
    %1625 = vmatpush1.msra.mxu0 0.0
    %1626 = vmatprep.subr.mxu0 0.0
    %1627 = vmatpush1.msra.mxu0 0.0
    %1628 = vmatprep.subr.mxu0 0.0
    %1629 = vmatpush1.msra.mxu0 %v231
    %1630 = vmatprep.subr.mxu0 0.0
    %1631 = vmatpush2.msra.mxu0 0.0
    %1632 = vmatprep.subr.mxu0 0.0
    %1633 = vmatpush2.msra.mxu0 0.0
    %1634 = vmatprep.subr.mxu0 0.0
    %1635 = vmatpush2.msra.mxu0 0.0
    %1636 = vmatprep.subr.mxu0 0.0
    %1637 = vmatpush2.msra.mxu0 0.0
    %1638 = vmatprep.subr.mxu0 0.0
    %1639 = vmatpush2.msra.mxu0 0.0
    %1640 = vmatprep.subr.mxu0 0.0
    %1641 = vmatpush2.msra.mxu0 0.0
    %1642 = vmatprep.subr.mxu0 0.0
    %1643 = vmatpush2.msra.mxu0 0.0
    %1644 = vmatprep.subr.mxu0 0.0
    %1645 = vmatpush2.msra.mxu0 0.0
    %1646 = vmatprep.subr.mxu0 0.0
    %1647 = vmatpush2.msra.mxu0 0.0
    %1648 = vmatprep.subr.mxu0 0.0
    %1649 = vmatpush2.msra.mxu0 0.0
    %1650 = vmatprep.subr.mxu0 0.0
    %1651 = vmatpush2.msra.mxu0 0.0
    %1652 = vmatprep.subr.mxu0 0.0
    %1653 = vmatpush2.msra.mxu0 0.0
    %1654 = vmatprep.subr.mxu0 0.0
    %1655 = vmatpush2.msra.mxu0 0.0
    %1656 = vmatprep.subr.mxu0 0.0
    %1657 = vmatpush2.msra.mxu0 0.0
    %1658 = vmatprep.subr.mxu0 0.0
    %1659 = vmatpush2.msra.mxu0 0.0
    %1660 = vmatprep.subr.mxu0 0.0
    %1661 = vmatpush2.msra.mxu0 0.0
    %1662 = vmatprep.mubr.f32.mxu0 0.0
    %1663 = vmatmul.mubr.f32.gmra.mxu0 %v1590
    %v1664 = vpop.f32.mrf.mxu0
    %v1665 = vadd.f32 0.0, %v1664
    %v1666 = vpop.f32.mrf.mxu0
    %1667 = vmatprep.mubr.f32.mxu0 0.0
    %1668 = vmatmul.mubr.f32.gmra.mxu0 %v1593
    %v1669 = vpop.f32.mrf.mxu0
    %v1670 = vadd.f32 0.0, %v1669
    %v1671 = vpop.f32.mrf.mxu0
    %1672 = vmatprep.mubr.f32.mxu0 0.0
    %1673 = vmatmul.mubr.f32.gmra.mxu0 %v1596
    %v1674 = vpop.f32.mrf.mxu0
    %v1675 = vadd.f32 0.0, %v1674
    %v1676 = vpop.f32.mrf.mxu0
    %1677 = vdwg.mxu0
    %v1679 = vsel %vm658, %v1576, 0
    %v1682 = vsel %vm658, %v1577, 0
    %v1685 = vsel %vm658, %v1578, 0
    %1687 = vmatprep.subr.mxu0 0.0
    %1688 = vmatpush1.msra.mxu0 0.0
    %1689 = vmatprep.subr.mxu0 0.0
    %1690 = vmatpush1.msra.mxu0 0.0
    %1691 = vmatprep.subr.mxu0 0.0
    %1692 = vmatpush1.msra.mxu0 0.0
    %1693 = vmatprep.subr.mxu0 0.0
    %1694 = vmatpush1.msra.mxu0 0.0
    %1695 = vmatprep.subr.mxu0 0.0
    %1696 = vmatpush1.msra.mxu0 0.0
    %1697 = vmatprep.subr.mxu0 0.0
    %1698 = vmatpush1.msra.mxu0 0.0
    %1699 = vmatprep.subr.mxu0 0.0
    %1700 = vmatpush1.msra.mxu0 0.0
    %1701 = vmatprep.subr.mxu0 0.0
    %1702 = vmatpush1.msra.mxu0 0.0
    %1703 = vmatprep.subr.mxu0 0.0
    %1704 = vmatpush1.msra.mxu0 0.0
    %1705 = vmatprep.subr.mxu0 0.0
    %1706 = vmatpush1.msra.mxu0 0.0
    %1707 = vmatprep.subr.mxu0 0.0
    %1708 = vmatpush1.msra.mxu0 0.0
    %1709 = vmatprep.subr.mxu0 0.0
    %1710 = vmatpush1.msra.mxu0 0.0
    %1711 = vmatprep.subr.mxu0 0.0
    %1712 = vmatpush1.msra.mxu0 0.0
    %1713 = vmatprep.subr.mxu0 0.0
    %1714 = vmatpush1.msra.mxu0 0.0
    %1715 = vmatprep.subr.mxu0 0.0
    %1716 = vmatpush1.msra.mxu0 0.0
    %1717 = vmatprep.subr.mxu0 0.0
    %1718 = vmatpush1.msra.mxu0 %v232
    %1719 = vmatprep.subr.mxu0 0.0
    %1720 = vmatpush2.msra.mxu0 0.0
    %1721 = vmatprep.subr.mxu0 0.0
    %1722 = vmatpush2.msra.mxu0 0.0
    %1723 = vmatprep.subr.mxu0 0.0
    %1724 = vmatpush2.msra.mxu0 0.0
    %1725 = vmatprep.subr.mxu0 0.0
    %1726 = vmatpush2.msra.mxu0 0.0
    %1727 = vmatprep.subr.mxu0 0.0
    %1728 = vmatpush2.msra.mxu0 0.0
    %1729 = vmatprep.subr.mxu0 0.0
    %1730 = vmatpush2.msra.mxu0 0.0
    %1731 = vmatprep.subr.mxu0 0.0
    %1732 = vmatpush2.msra.mxu0 0.0
    %1733 = vmatprep.subr.mxu0 0.0
    %1734 = vmatpush2.msra.mxu0 0.0
    %1735 = vmatprep.subr.mxu0 0.0
    %1736 = vmatpush2.msra.mxu0 0.0
    %1737 = vmatprep.subr.mxu0 0.0
    %1738 = vmatpush2.msra.mxu0 0.0
    %1739 = vmatprep.subr.mxu0 0.0
    %1740 = vmatpush2.msra.mxu0 0.0
    %1741 = vmatprep.subr.mxu0 0.0
    %1742 = vmatpush2.msra.mxu0 0.0
    %1743 = vmatprep.subr.mxu0 0.0
    %1744 = vmatpush2.msra.mxu0 0.0
    %1745 = vmatprep.subr.mxu0 0.0
    %1746 = vmatpush2.msra.mxu0 0.0
    %1747 = vmatprep.subr.mxu0 0.0
    %1748 = vmatpush2.msra.mxu0 0.0
    %1749 = vmatprep.subr.mxu0 0.0
    %1750 = vmatpush2.msra.mxu0 0.0
    %1751 = vmatprep.mubr.f32.mxu0 0.0
    %1752 = vmatmul.mubr.f32.gmra.mxu0 %v1679
    %v1753 = vpop.f32.mrf.mxu0
    %v1754 = vadd.f32 0.0, %v1753
    %v1755 = vpop.f32.mrf.mxu0
    %1756 = vmatprep.mubr.f32.mxu0 0.0
    %1757 = vmatmul.mubr.f32.gmra.mxu0 %v1682
    %v1758 = vpop.f32.mrf.mxu0
    %v1759 = vadd.f32 0.0, %v1758
    %v1760 = vpop.f32.mrf.mxu0
    %1761 = vmatprep.mubr.f32.mxu0 0.0
    %1762 = vmatmul.mubr.f32.gmra.mxu0 %v1685
    %v1763 = vpop.f32.mrf.mxu0
    %v1764 = vadd.f32 0.0, %v1763
    %v1765 = vpop.f32.mrf.mxu0
    %1766 = vdwg.mxu0
    %1767 = vmatprep.subr.mxu0 0.0
    %1768 = vmatpush1.msra.mxu0 0.0
    %1769 = vmatprep.subr.mxu0 0.0
    %1770 = vmatpush1.msra.mxu0 0.0
    %1771 = vmatprep.subr.mxu0 0.0
    %1772 = vmatpush1.msra.mxu0 0.0
    %1773 = vmatprep.subr.mxu0 0.0
    %1774 = vmatpush1.msra.mxu0 0.0
    %1775 = vmatprep.subr.mxu0 0.0
    %1776 = vmatpush1.msra.mxu0 0.0
    %1777 = vmatprep.subr.mxu0 0.0
    %1778 = vmatpush1.msra.mxu0 0.0
    %1779 = vmatprep.subr.mxu0 0.0
    %1780 = vmatpush1.msra.mxu0 0.0
    %1781 = vmatprep.subr.mxu0 0.0
    %1782 = vmatpush1.msra.mxu0 0.0
    %1783 = vmatprep.subr.mxu0 0.0
    %1784 = vmatpush1.msra.mxu0 0.0
    %1785 = vmatprep.subr.mxu0 0.0
    %1786 = vmatpush1.msra.mxu0 0.0
    %1787 = vmatprep.subr.mxu0 0.0
    %1788 = vmatpush1.msra.mxu0 0.0
    %1789 = vmatprep.subr.mxu0 0.0
    %1790 = vmatpush1.msra.mxu0 0.0
    %1791 = vmatprep.subr.mxu0 0.0
    %1792 = vmatpush1.msra.mxu0 0.0
    %1793 = vmatprep.subr.mxu0 0.0
    %1794 = vmatpush1.msra.mxu0 0.0
    %1795 = vmatprep.subr.mxu0 0.0
    %1796 = vmatpush1.msra.mxu0 0.0
    %1797 = vmatprep.subr.mxu0 0.0
    %1798 = vmatpush1.msra.mxu0 %v1665
    %1799 = vmatprep.subr.mxu0 0.0
    %1800 = vmatpush2.msra.mxu0 0.0
    %1801 = vmatprep.subr.mxu0 0.0
    %1802 = vmatpush2.msra.mxu0 0.0
    %1803 = vmatprep.subr.mxu0 0.0
    %1804 = vmatpush2.msra.mxu0 0.0
    %1805 = vmatprep.subr.mxu0 0.0
    %1806 = vmatpush2.msra.mxu0 0.0
    %1807 = vmatprep.subr.mxu0 0.0
    %1808 = vmatpush2.msra.mxu0 0.0
    %1809 = vmatprep.subr.mxu0 0.0
    %1810 = vmatpush2.msra.mxu0 0.0
    %1811 = vmatprep.subr.mxu0 0.0
    %1812 = vmatpush2.msra.mxu0 0.0
    %1813 = vmatprep.subr.mxu0 0.0
    %1814 = vmatpush2.msra.mxu0 0.0
    %1815 = vmatprep.subr.mxu0 0.0
    %1816 = vmatpush2.msra.mxu0 0.0
    %1817 = vmatprep.subr.mxu0 0.0
    %1818 = vmatpush2.msra.mxu0 0.0
    %1819 = vmatprep.subr.mxu0 0.0
    %1820 = vmatpush2.msra.mxu0 0.0
    %1821 = vmatprep.subr.mxu0 0.0
    %1822 = vmatpush2.msra.mxu0 0.0
    %1823 = vmatprep.subr.mxu0 0.0
    %1824 = vmatpush2.msra.mxu0 0.0
    %1825 = vmatprep.subr.mxu0 0.0
    %1826 = vmatpush2.msra.mxu0 0.0
    %1827 = vmatprep.subr.mxu0 0.0
    %1828 = vmatpush2.msra.mxu0 0.0
    %1829 = vmatprep.subr.mxu0 0.0
    %1830 = vmatpush2.msra.mxu0 0.0
    %1831 = vmatprep.mubr.f32.mxu0 0.0
    %1832 = vmatmul.mubr.f32.gmra.mxu0 %v1590
    %v1833 = vpop.f32.mrf.mxu0
    %v1834 = vadd.f32 0.0, %v1833
    %v1835 = vpop.f32.mrf.mxu0
    %1836 = vdwg.mxu0
    %1837 = vmatprep.subr.mxu0 0.0
    %1838 = vmatpush1.msra.mxu0 0.0
    %1839 = vmatprep.subr.mxu0 0.0
    %1840 = vmatpush1.msra.mxu0 0.0
    %1841 = vmatprep.subr.mxu0 0.0
    %1842 = vmatpush1.msra.mxu0 0.0
    %1843 = vmatprep.subr.mxu0 0.0
    %1844 = vmatpush1.msra.mxu0 0.0
    %1845 = vmatprep.subr.mxu0 0.0
    %1846 = vmatpush1.msra.mxu0 0.0
    %1847 = vmatprep.subr.mxu0 0.0
    %1848 = vmatpush1.msra.mxu0 0.0
    %1849 = vmatprep.subr.mxu0 0.0
    %1850 = vmatpush1.msra.mxu0 0.0
    %1851 = vmatprep.subr.mxu0 0.0
    %1852 = vmatpush1.msra.mxu0 0.0
    %1853 = vmatprep.subr.mxu0 0.0
    %1854 = vmatpush1.msra.mxu0 0.0
    %1855 = vmatprep.subr.mxu0 0.0
    %1856 = vmatpush1.msra.mxu0 0.0
    %1857 = vmatprep.subr.mxu0 0.0
    %1858 = vmatpush1.msra.mxu0 0.0
    %1859 = vmatprep.subr.mxu0 0.0
    %1860 = vmatpush1.msra.mxu0 0.0
    %1861 = vmatprep.subr.mxu0 0.0
    %1862 = vmatpush1.msra.mxu0 0.0
    %1863 = vmatprep.subr.mxu0 0.0
    %1864 = vmatpush1.msra.mxu0 0.0
    %1865 = vmatprep.subr.mxu0 0.0
    %1866 = vmatpush1.msra.mxu0 0.0
    %1867 = vmatprep.subr.mxu0 0.0
    %1868 = vmatpush1.msra.mxu0 %v1754
    %1869 = vmatprep.subr.mxu0 0.0
    %1870 = vmatpush2.msra.mxu0 0.0
    %1871 = vmatprep.subr.mxu0 0.0
    %1872 = vmatpush2.msra.mxu0 0.0
    %1873 = vmatprep.subr.mxu0 0.0
    %1874 = vmatpush2.msra.mxu0 0.0
    %1875 = vmatprep.subr.mxu0 0.0
    %1876 = vmatpush2.msra.mxu0 0.0
    %1877 = vmatprep.subr.mxu0 0.0
    %1878 = vmatpush2.msra.mxu0 0.0
    %1879 = vmatprep.subr.mxu0 0.0
    %1880 = vmatpush2.msra.mxu0 0.0
    %1881 = vmatprep.subr.mxu0 0.0
    %1882 = vmatpush2.msra.mxu0 0.0
    %1883 = vmatprep.subr.mxu0 0.0
    %1884 = vmatpush2.msra.mxu0 0.0
    %1885 = vmatprep.subr.mxu0 0.0
    %1886 = vmatpush2.msra.mxu0 0.0
    %1887 = vmatprep.subr.mxu0 0.0
    %1888 = vmatpush2.msra.mxu0 0.0
    %1889 = vmatprep.subr.mxu0 0.0
    %1890 = vmatpush2.msra.mxu0 0.0
    %1891 = vmatprep.subr.mxu0 0.0
    %1892 = vmatpush2.msra.mxu0 0.0
    %1893 = vmatprep.subr.mxu0 0.0
    %1894 = vmatpush2.msra.mxu0 0.0
    %1895 = vmatprep.subr.mxu0 0.0
    %1896 = vmatpush2.msra.mxu0 0.0
    %1897 = vmatprep.subr.mxu0 0.0
    %1898 = vmatpush2.msra.mxu0 0.0
    %1899 = vmatprep.subr.mxu0 0.0
    %1900 = vmatpush2.msra.mxu0 0.0
    %1901 = vmatprep.mubr.f32.mxu0 0.0
    %1902 = vmatmul.mubr.f32.gmra.mxu0 %v1679
    %v1903 = vpop.f32.mrf.mxu0
    %v1904 = vadd.f32 0.0, %v1903
    %v1905 = vpop.f32.mrf.mxu0
    %1906 = vdwg.mxu0
    %s1907 = scalar_lea.vmem %s6, 16
    %1908 = vst.msk [vmem:[%s1907] sm:$0xff] %vm50, %v1834
    %1909 = vst.msk [vmem:[%s1907 + $0x8] sm:$0xff] %vm50, %v1904
    %1910 = vmatprep.subr.mxu0 0.0
    %1911 = vmatpush1.msra.mxu0 0.0
    %1912 = vmatprep.subr.mxu0 0.0
    %1913 = vmatpush1.msra.mxu0 0.0
    %1914 = vmatprep.subr.mxu0 0.0
    %1915 = vmatpush1.msra.mxu0 0.0
    %1916 = vmatprep.subr.mxu0 0.0
    %1917 = vmatpush1.msra.mxu0 0.0
    %1918 = vmatprep.subr.mxu0 0.0
    %1919 = vmatpush1.msra.mxu0 0.0
    %1920 = vmatprep.subr.mxu0 0.0
    %1921 = vmatpush1.msra.mxu0 0.0
    %1922 = vmatprep.subr.mxu0 0.0
    %1923 = vmatpush1.msra.mxu0 0.0
    %1924 = vmatprep.subr.mxu0 0.0
    %1925 = vmatpush1.msra.mxu0 0.0
    %1926 = vmatprep.subr.mxu0 0.0
    %1927 = vmatpush1.msra.mxu0 0.0
    %1928 = vmatprep.subr.mxu0 0.0
    %1929 = vmatpush1.msra.mxu0 0.0
    %1930 = vmatprep.subr.mxu0 0.0
    %1931 = vmatpush1.msra.mxu0 0.0
    %1932 = vmatprep.subr.mxu0 0.0
    %1933 = vmatpush1.msra.mxu0 0.0
    %1934 = vmatprep.subr.mxu0 0.0
    %1935 = vmatpush1.msra.mxu0 0.0
    %1936 = vmatprep.subr.mxu0 0.0
    %1937 = vmatpush1.msra.mxu0 0.0
    %1938 = vmatprep.subr.mxu0 0.0
    %1939 = vmatpush1.msra.mxu0 0.0
    %1940 = vmatprep.subr.mxu0 0.0
    %1941 = vmatpush1.msra.mxu0 %v1670
    %1942 = vmatprep.subr.mxu0 0.0
    %1943 = vmatpush2.msra.mxu0 0.0
    %1944 = vmatprep.subr.mxu0 0.0
    %1945 = vmatpush2.msra.mxu0 0.0
    %1946 = vmatprep.subr.mxu0 0.0
    %1947 = vmatpush2.msra.mxu0 0.0
    %1948 = vmatprep.subr.mxu0 0.0
    %1949 = vmatpush2.msra.mxu0 0.0
    %1950 = vmatprep.subr.mxu0 0.0
    %1951 = vmatpush2.msra.mxu0 0.0
    %1952 = vmatprep.subr.mxu0 0.0
    %1953 = vmatpush2.msra.mxu0 0.0
    %1954 = vmatprep.subr.mxu0 0.0
    %1955 = vmatpush2.msra.mxu0 0.0
    %1956 = vmatprep.subr.mxu0 0.0
    %1957 = vmatpush2.msra.mxu0 0.0
    %1958 = vmatprep.subr.mxu0 0.0
    %1959 = vmatpush2.msra.mxu0 0.0
    %1960 = vmatprep.subr.mxu0 0.0
    %1961 = vmatpush2.msra.mxu0 0.0
    %1962 = vmatprep.subr.mxu0 0.0
    %1963 = vmatpush2.msra.mxu0 0.0
    %1964 = vmatprep.subr.mxu0 0.0
    %1965 = vmatpush2.msra.mxu0 0.0
    %1966 = vmatprep.subr.mxu0 0.0
    %1967 = vmatpush2.msra.mxu0 0.0
    %1968 = vmatprep.subr.mxu0 0.0
    %1969 = vmatpush2.msra.mxu0 0.0
    %1970 = vmatprep.subr.mxu0 0.0
    %1971 = vmatpush2.msra.mxu0 0.0
    %1972 = vmatprep.subr.mxu0 0.0
    %1973 = vmatpush2.msra.mxu0 0.0
    %1974 = vmatprep.mubr.f32.mxu0 0.0
    %1975 = vmatmul.mubr.f32.gmra.mxu0 %v1593
    %v1976 = vpop.f32.mrf.mxu0
    %v1977 = vadd.f32 0.0, %v1976
    %v1978 = vpop.f32.mrf.mxu0
    %1979 = vdwg.mxu0
    %1980 = vmatprep.subr.mxu0 0.0
    %1981 = vmatpush1.msra.mxu0 0.0
    %1982 = vmatprep.subr.mxu0 0.0
    %1983 = vmatpush1.msra.mxu0 0.0
    %1984 = vmatprep.subr.mxu0 0.0
    %1985 = vmatpush1.msra.mxu0 0.0
    %1986 = vmatprep.subr.mxu0 0.0
    %1987 = vmatpush1.msra.mxu0 0.0
    %1988 = vmatprep.subr.mxu0 0.0
    %1989 = vmatpush1.msra.mxu0 0.0
    %1990 = vmatprep.subr.mxu0 0.0
    %1991 = vmatpush1.msra.mxu0 0.0
    %1992 = vmatprep.subr.mxu0 0.0
    %1993 = vmatpush1.msra.mxu0 0.0
    %1994 = vmatprep.subr.mxu0 0.0
    %1995 = vmatpush1.msra.mxu0 0.0
    %1996 = vmatprep.subr.mxu0 0.0
    %1997 = vmatpush1.msra.mxu0 0.0
    %1998 = vmatprep.subr.mxu0 0.0
    %1999 = vmatpush1.msra.mxu0 0.0
    %2000 = vmatprep.subr.mxu0 0.0
    %2001 = vmatpush1.msra.mxu0 0.0
    %2002 = vmatprep.subr.mxu0 0.0
    %2003 = vmatpush1.msra.mxu0 0.0
    %2004 = vmatprep.subr.mxu0 0.0
    %2005 = vmatpush1.msra.mxu0 0.0
    %2006 = vmatprep.subr.mxu0 0.0
    %2007 = vmatpush1.msra.mxu0 0.0
    %2008 = vmatprep.subr.mxu0 0.0
    %2009 = vmatpush1.msra.mxu0 0.0
    %2010 = vmatprep.subr.mxu0 0.0
    %2011 = vmatpush1.msra.mxu0 %v1759
    %2012 = vmatprep.subr.mxu0 0.0
    %2013 = vmatpush2.msra.mxu0 0.0
    %2014 = vmatprep.subr.mxu0 0.0
    %2015 = vmatpush2.msra.mxu0 0.0
    %2016 = vmatprep.subr.mxu0 0.0
    %2017 = vmatpush2.msra.mxu0 0.0
    %2018 = vmatprep.subr.mxu0 0.0
    %2019 = vmatpush2.msra.mxu0 0.0
    %2020 = vmatprep.subr.mxu0 0.0
    %2021 = vmatpush2.msra.mxu0 0.0
    %2022 = vmatprep.subr.mxu0 0.0
    %2023 = vmatpush2.msra.mxu0 0.0
    %2024 = vmatprep.subr.mxu0 0.0
    %2025 = vmatpush2.msra.mxu0 0.0
    %2026 = vmatprep.subr.mxu0 0.0
    %2027 = vmatpush2.msra.mxu0 0.0
    %2028 = vmatprep.subr.mxu0 0.0
    %2029 = vmatpush2.msra.mxu0 0.0
    %2030 = vmatprep.subr.mxu0 0.0
    %2031 = vmatpush2.msra.mxu0 0.0
    %2032 = vmatprep.subr.mxu0 0.0
    %2033 = vmatpush2.msra.mxu0 0.0
    %2034 = vmatprep.subr.mxu0 0.0
    %2035 = vmatpush2.msra.mxu0 0.0
    %2036 = vmatprep.subr.mxu0 0.0
    %2037 = vmatpush2.msra.mxu0 0.0
    %2038 = vmatprep.subr.mxu0 0.0
    %2039 = vmatpush2.msra.mxu0 0.0
    %2040 = vmatprep.subr.mxu0 0.0
    %2041 = vmatpush2.msra.mxu0 0.0
    %2042 = vmatprep.subr.mxu0 0.0
    %2043 = vmatpush2.msra.mxu0 0.0
    %2044 = vmatprep.mubr.f32.mxu0 0.0
    %2045 = vmatmul.mubr.f32.gmra.mxu0 %v1682
    %v2046 = vpop.f32.mrf.mxu0
    %v2047 = vadd.f32 0.0, %v2046
    %v2048 = vpop.f32.mrf.mxu0
    %2049 = vdwg.mxu0
    %s2050 = scalar_lea.vmem %s6, 64
    %2051 = vst.msk [vmem:[%s2050] sm:$0xff] %vm50, %v1977
    %2052 = vst.msk [vmem:[%s2050 + $0x8] sm:$0xff] %vm50, %v2047
    %2053 = vmatprep.subr.mxu0 0.0
    %2054 = vmatpush1.msra.mxu0 0.0
    %2055 = vmatprep.subr.mxu0 0.0
    %2056 = vmatpush1.msra.mxu0 0.0
    %2057 = vmatprep.subr.mxu0 0.0
    %2058 = vmatpush1.msra.mxu0 0.0
    %2059 = vmatprep.subr.mxu0 0.0
    %2060 = vmatpush1.msra.mxu0 0.0
    %2061 = vmatprep.subr.mxu0 0.0
    %2062 = vmatpush1.msra.mxu0 0.0
    %2063 = vmatprep.subr.mxu0 0.0
    %2064 = vmatpush1.msra.mxu0 0.0
    %2065 = vmatprep.subr.mxu0 0.0
    %2066 = vmatpush1.msra.mxu0 0.0
    %2067 = vmatprep.subr.mxu0 0.0
    %2068 = vmatpush1.msra.mxu0 0.0
    %2069 = vmatprep.subr.mxu0 0.0
    %2070 = vmatpush1.msra.mxu0 0.0
    %2071 = vmatprep.subr.mxu0 0.0
    %2072 = vmatpush1.msra.mxu0 0.0
    %2073 = vmatprep.subr.mxu0 0.0
    %2074 = vmatpush1.msra.mxu0 0.0
    %2075 = vmatprep.subr.mxu0 0.0
    %2076 = vmatpush1.msra.mxu0 0.0
    %2077 = vmatprep.subr.mxu0 0.0
    %2078 = vmatpush1.msra.mxu0 0.0
    %2079 = vmatprep.subr.mxu0 0.0
    %2080 = vmatpush1.msra.mxu0 0.0
    %2081 = vmatprep.subr.mxu0 0.0
    %2082 = vmatpush1.msra.mxu0 0.0
    %2083 = vmatprep.subr.mxu0 0.0
    %2084 = vmatpush1.msra.mxu0 %v1675
    %2085 = vmatprep.subr.mxu0 0.0
    %2086 = vmatpush2.msra.mxu0 0.0
    %2087 = vmatprep.subr.mxu0 0.0
    %2088 = vmatpush2.msra.mxu0 0.0
    %2089 = vmatprep.subr.mxu0 0.0
    %2090 = vmatpush2.msra.mxu0 0.0
    %2091 = vmatprep.subr.mxu0 0.0
    %2092 = vmatpush2.msra.mxu0 0.0
    %2093 = vmatprep.subr.mxu0 0.0
    %2094 = vmatpush2.msra.mxu0 0.0
    %2095 = vmatprep.subr.mxu0 0.0
    %2096 = vmatpush2.msra.mxu0 0.0
    %2097 = vmatprep.subr.mxu0 0.0
    %2098 = vmatpush2.msra.mxu0 0.0
    %2099 = vmatprep.subr.mxu0 0.0
    %2100 = vmatpush2.msra.mxu0 0.0
    %2101 = vmatprep.subr.mxu0 0.0
    %2102 = vmatpush2.msra.mxu0 0.0
    %2103 = vmatprep.subr.mxu0 0.0
    %2104 = vmatpush2.msra.mxu0 0.0
    %2105 = vmatprep.subr.mxu0 0.0
    %2106 = vmatpush2.msra.mxu0 0.0
    %2107 = vmatprep.subr.mxu0 0.0
    %2108 = vmatpush2.msra.mxu0 0.0
    %2109 = vmatprep.subr.mxu0 0.0
    %2110 = vmatpush2.msra.mxu0 0.0
    %2111 = vmatprep.subr.mxu0 0.0
    %2112 = vmatpush2.msra.mxu0 0.0
    %2113 = vmatprep.subr.mxu0 0.0
    %2114 = vmatpush2.msra.mxu0 0.0
    %2115 = vmatprep.subr.mxu0 0.0
    %2116 = vmatpush2.msra.mxu0 0.0
    %2117 = vmatprep.mubr.f32.mxu0 0.0
    %2118 = vmatmul.mubr.f32.gmra.mxu0 %v1596
    %v2119 = vpop.f32.mrf.mxu0
    %v2120 = vadd.f32 0.0, %v2119
    %v2121 = vpop.f32.mrf.mxu0
    %2122 = vdwg.mxu0
    %2123 = vmatprep.subr.mxu0 0.0
    %2124 = vmatpush1.msra.mxu0 0.0
    %2125 = vmatprep.subr.mxu0 0.0
    %2126 = vmatpush1.msra.mxu0 0.0
    %2127 = vmatprep.subr.mxu0 0.0
    %2128 = vmatpush1.msra.mxu0 0.0
    %2129 = vmatprep.subr.mxu0 0.0
    %2130 = vmatpush1.msra.mxu0 0.0
    %2131 = vmatprep.subr.mxu0 0.0
    %2132 = vmatpush1.msra.mxu0 0.0
    %2133 = vmatprep.subr.mxu0 0.0
    %2134 = vmatpush1.msra.mxu0 0.0
    %2135 = vmatprep.subr.mxu0 0.0
    %2136 = vmatpush1.msra.mxu0 0.0
    %2137 = vmatprep.subr.mxu0 0.0
    %2138 = vmatpush1.msra.mxu0 0.0
    %2139 = vmatprep.subr.mxu0 0.0
    %2140 = vmatpush1.msra.mxu0 0.0
    %2141 = vmatprep.subr.mxu0 0.0
    %2142 = vmatpush1.msra.mxu0 0.0
    %2143 = vmatprep.subr.mxu0 0.0
    %2144 = vmatpush1.msra.mxu0 0.0
    %2145 = vmatprep.subr.mxu0 0.0
    %2146 = vmatpush1.msra.mxu0 0.0
    %2147 = vmatprep.subr.mxu0 0.0
    %2148 = vmatpush1.msra.mxu0 0.0
    %2149 = vmatprep.subr.mxu0 0.0
    %2150 = vmatpush1.msra.mxu0 0.0
    %2151 = vmatprep.subr.mxu0 0.0
    %2152 = vmatpush1.msra.mxu0 0.0
    %2153 = vmatprep.subr.mxu0 0.0
    %2154 = vmatpush1.msra.mxu0 %v1764
    %2155 = vmatprep.subr.mxu0 0.0
    %2156 = vmatpush2.msra.mxu0 0.0
    %2157 = vmatprep.subr.mxu0 0.0
    %2158 = vmatpush2.msra.mxu0 0.0
    %2159 = vmatprep.subr.mxu0 0.0
    %2160 = vmatpush2.msra.mxu0 0.0
    %2161 = vmatprep.subr.mxu0 0.0
    %2162 = vmatpush2.msra.mxu0 0.0
    %2163 = vmatprep.subr.mxu0 0.0
    %2164 = vmatpush2.msra.mxu0 0.0
    %2165 = vmatprep.subr.mxu0 0.0
    %2166 = vmatpush2.msra.mxu0 0.0
    %2167 = vmatprep.subr.mxu0 0.0
    %2168 = vmatpush2.msra.mxu0 0.0
    %2169 = vmatprep.subr.mxu0 0.0
    %2170 = vmatpush2.msra.mxu0 0.0
    %2171 = vmatprep.subr.mxu0 0.0
    %2172 = vmatpush2.msra.mxu0 0.0
    %2173 = vmatprep.subr.mxu0 0.0
    %2174 = vmatpush2.msra.mxu0 0.0
    %2175 = vmatprep.subr.mxu0 0.0
    %2176 = vmatpush2.msra.mxu0 0.0
    %2177 = vmatprep.subr.mxu0 0.0
    %2178 = vmatpush2.msra.mxu0 0.0
    %2179 = vmatprep.subr.mxu0 0.0
    %2180 = vmatpush2.msra.mxu0 0.0
    %2181 = vmatprep.subr.mxu0 0.0
    %2182 = vmatpush2.msra.mxu0 0.0
    %2183 = vmatprep.subr.mxu0 0.0
    %2184 = vmatpush2.msra.mxu0 0.0
    %2185 = vmatprep.subr.mxu0 0.0
    %2186 = vmatpush2.msra.mxu0 0.0
    %2187 = vmatprep.mubr.f32.mxu0 0.0
    %2188 = vmatmul.mubr.f32.gmra.mxu0 %v1685
    %v2189 = vpop.f32.mrf.mxu0
    %v2190 = vadd.f32 0.0, %v2189
    %v2191 = vpop.f32.mrf.mxu0
    %2192 = vdwg.mxu0
    %s2193 = scalar_lea.vmem %s6, 112
    %2194 = vst.msk [vmem:[%s2193] sm:$0xff] %vm50, %v2120
    %2195 = vst.msk [vmem:[%s2193 + $0x8] sm:$0xff] %vm50, %v2190
    %2196 = vmatprep.subr.mxu0 0.0
    %2197 = vmatpush1.xpose.msra.mxu0 0.0
    %2198 = vmatprep.subr.mxu0 0.0
    %2199 = vmatpush1.xpose.msra.mxu0 0.0
    %2200 = vmatprep.subr.mxu0 0.0
    %2201 = vmatpush1.xpose.msra.mxu0 0.0
    %2202 = vmatprep.subr.mxu0 0.0
    %2203 = vmatpush1.xpose.msra.mxu0 0.0
    %2204 = vmatprep.subr.mxu0 0.0
    %2205 = vmatpush1.xpose.msra.mxu0 0.0
    %2206 = vmatprep.subr.mxu0 0.0
    %2207 = vmatpush1.xpose.msra.mxu0 0.0
    %2208 = vmatprep.subr.mxu0 0.0
    %2209 = vmatpush1.xpose.msra.mxu0 0.0
    %2210 = vmatprep.subr.mxu0 0.0
    %2211 = vmatpush1.xpose.msra.mxu0 0.0
    %2212 = vmatprep.subr.mxu0 0.0
    %2213 = vmatpush1.xpose.msra.mxu0 0.0
    %2214 = vmatprep.subr.mxu0 0.0
    %2215 = vmatpush1.xpose.msra.mxu0 0.0
    %2216 = vmatprep.subr.mxu0 0.0
    %2217 = vmatpush1.xpose.msra.mxu0 0.0
    %2218 = vmatprep.subr.mxu0 0.0
    %2219 = vmatpush1.xpose.msra.mxu0 0.0
    %2220 = vmatprep.subr.mxu0 0.0
    %2221 = vmatpush1.xpose.msra.mxu0 0.0
    %2222 = vmatprep.subr.mxu0 0.0
    %2223 = vmatpush1.xpose.msra.mxu0 0.0
    %2224 = vmatprep.subr.mxu0 0.0
    %2225 = vmatpush1.xpose.msra.mxu0 0.0
    %2226 = vmatprep.subr.mxu0 0.0
    %2227 = vmatpush1.xpose.msra.mxu0 %v356
    %2228 = vmatprep.subr.mxu0 0.0
    %2229 = vmatpush2.xpose.msra.mxu0 0.0
    %2230 = vmatprep.subr.mxu0 0.0
    %2231 = vmatpush2.xpose.msra.mxu0 0.0
    %2232 = vmatprep.subr.mxu0 0.0
    %2233 = vmatpush2.xpose.msra.mxu0 0.0
    %2234 = vmatprep.subr.mxu0 0.0
    %2235 = vmatpush2.xpose.msra.mxu0 0.0
    %2236 = vmatprep.subr.mxu0 0.0
    %2237 = vmatpush2.xpose.msra.mxu0 0.0
    %2238 = vmatprep.subr.mxu0 0.0
    %2239 = vmatpush2.xpose.msra.mxu0 0.0
    %2240 = vmatprep.subr.mxu0 0.0
    %2241 = vmatpush2.xpose.msra.mxu0 0.0
    %2242 = vmatprep.subr.mxu0 0.0
    %2243 = vmatpush2.xpose.msra.mxu0 0.0
    %2244 = vmatprep.subr.mxu0 0.0
    %2245 = vmatpush2.xpose.msra.mxu0 0.0
    %2246 = vmatprep.subr.mxu0 0.0
    %2247 = vmatpush2.xpose.msra.mxu0 0.0
    %2248 = vmatprep.subr.mxu0 0.0
    %2249 = vmatpush2.xpose.msra.mxu0 0.0
    %2250 = vmatprep.subr.mxu0 0.0
    %2251 = vmatpush2.xpose.msra.mxu0 0.0
    %2252 = vmatprep.subr.mxu0 0.0
    %2253 = vmatpush2.xpose.msra.mxu0 0.0
    %2254 = vmatprep.subr.mxu0 0.0
    %2255 = vmatpush2.xpose.msra.mxu0 0.0
    %2256 = vmatprep.subr.mxu0 0.0
    %2257 = vmatpush2.xpose.msra.mxu0 0.0
    %2258 = vmatprep.subr.mxu0 0.0
    %2259 = vmatpush2.xpose.msra.mxu0 0.0
    %2260 = vmatprep.mubr.f32.mxu0 0.0
    %2261 = vmatmul.mubr.f32.gmra.mxu0 %v344
    %v2262 = vpop.f32.mrf.mxu0
    %v2263 = vadd.f32 0.0, %v2262
    %v2264 = vpop.f32.mrf.mxu0
    %2265 = vmatprep.mubr.f32.mxu0 0.0
    %2266 = vmatmul.mubr.f32.gmra.mxu0 %v350
    %v2267 = vpop.f32.mrf.mxu0
    %v2268 = vadd.f32 0.0, %v2267
    %v2269 = vpop.f32.mrf.mxu0
    %2270 = vmatprep.mubr.f32.mxu0 0.0
    %2271 = vmatmul.mubr.f32.gmra.mxu0 %v356
    %v2272 = vpop.f32.mrf.mxu0
    %v2273 = vadd.f32 0.0, %v2272
    %v2274 = vpop.f32.mrf.mxu0
    %2275 = vdwg.mxu0
    %2276 = vmatprep.subr.mxu0 0.0
    %2277 = vmatpush1.xpose.msra.mxu0 0.0
    %2278 = vmatprep.subr.mxu0 0.0
    %2279 = vmatpush1.xpose.msra.mxu0 0.0
    %2280 = vmatprep.subr.mxu0 0.0
    %2281 = vmatpush1.xpose.msra.mxu0 0.0
    %2282 = vmatprep.subr.mxu0 0.0
    %2283 = vmatpush1.xpose.msra.mxu0 0.0
    %2284 = vmatprep.subr.mxu0 0.0
    %2285 = vmatpush1.xpose.msra.mxu0 0.0
    %2286 = vmatprep.subr.mxu0 0.0
    %2287 = vmatpush1.xpose.msra.mxu0 0.0
    %2288 = vmatprep.subr.mxu0 0.0
    %2289 = vmatpush1.xpose.msra.mxu0 0.0
    %2290 = vmatprep.subr.mxu0 0.0
    %2291 = vmatpush1.xpose.msra.mxu0 0.0
    %2292 = vmatprep.subr.mxu0 0.0
    %2293 = vmatpush1.xpose.msra.mxu0 0.0
    %2294 = vmatprep.subr.mxu0 0.0
    %2295 = vmatpush1.xpose.msra.mxu0 0.0
    %2296 = vmatprep.subr.mxu0 0.0
    %2297 = vmatpush1.xpose.msra.mxu0 0.0
    %2298 = vmatprep.subr.mxu0 0.0
    %2299 = vmatpush1.xpose.msra.mxu0 0.0
    %2300 = vmatprep.subr.mxu0 0.0
    %2301 = vmatpush1.xpose.msra.mxu0 0.0
    %2302 = vmatprep.subr.mxu0 0.0
    %2303 = vmatpush1.xpose.msra.mxu0 0.0
    %2304 = vmatprep.subr.mxu0 0.0
    %2305 = vmatpush1.xpose.msra.mxu0 0.0
    %2306 = vmatprep.subr.mxu0 0.0
    %2307 = vmatpush1.xpose.msra.mxu0 %v359
    %2308 = vmatprep.subr.mxu0 0.0
    %2309 = vmatpush2.xpose.msra.mxu0 0.0
    %2310 = vmatprep.subr.mxu0 0.0
    %2311 = vmatpush2.xpose.msra.mxu0 0.0
    %2312 = vmatprep.subr.mxu0 0.0
    %2313 = vmatpush2.xpose.msra.mxu0 0.0
    %2314 = vmatprep.subr.mxu0 0.0
    %2315 = vmatpush2.xpose.msra.mxu0 0.0
    %2316 = vmatprep.subr.mxu0 0.0
    %2317 = vmatpush2.xpose.msra.mxu0 0.0
    %2318 = vmatprep.subr.mxu0 0.0
    %2319 = vmatpush2.xpose.msra.mxu0 0.0
    %2320 = vmatprep.subr.mxu0 0.0
    %2321 = vmatpush2.xpose.msra.mxu0 0.0
    %2322 = vmatprep.subr.mxu0 0.0
    %2323 = vmatpush2.xpose.msra.mxu0 0.0
    %2324 = vmatprep.subr.mxu0 0.0
    %2325 = vmatpush2.xpose.msra.mxu0 0.0
    %2326 = vmatprep.subr.mxu0 0.0
    %2327 = vmatpush2.xpose.msra.mxu0 0.0
    %2328 = vmatprep.subr.mxu0 0.0
    %2329 = vmatpush2.xpose.msra.mxu0 0.0
    %2330 = vmatprep.subr.mxu0 0.0
    %2331 = vmatpush2.xpose.msra.mxu0 0.0
    %2332 = vmatprep.subr.mxu0 0.0
    %2333 = vmatpush2.xpose.msra.mxu0 0.0
    %2334 = vmatprep.subr.mxu0 0.0
    %2335 = vmatpush2.xpose.msra.mxu0 0.0
    %2336 = vmatprep.subr.mxu0 0.0
    %2337 = vmatpush2.xpose.msra.mxu0 0.0
    %2338 = vmatprep.subr.mxu0 0.0
    %2339 = vmatpush2.xpose.msra.mxu0 0.0
    %2340 = vmatprep.mubr.f32.mxu0 0.0
    %2341 = vmatmul.mubr.f32.gmra.mxu0 %v347
    %v2342 = vpop.f32.mrf.mxu0
    %v2343 = vadd.f32 0.0, %v2342
    %v2344 = vpop.f32.mrf.mxu0
    %2345 = vmatprep.mubr.f32.mxu0 0.0
    %2346 = vmatmul.mubr.f32.gmra.mxu0 %v353
    %v2347 = vpop.f32.mrf.mxu0
    %v2348 = vadd.f32 0.0, %v2347
    %v2349 = vpop.f32.mrf.mxu0
    %2350 = vmatprep.mubr.f32.mxu0 0.0
    %2351 = vmatmul.mubr.f32.gmra.mxu0 %v359
    %v2352 = vpop.f32.mrf.mxu0
    %v2353 = vadd.f32 0.0, %v2352
    %v2354 = vpop.f32.mrf.mxu0
    %2355 = vdwg.mxu0
    %v2356 = vmul.f32 %v2263, 0.17677669
    %v2357 = vmul.f32 %v2268, 0.17677669
    %v2358 = vmul.f32 %v2273, 0.17677669
    %v2359 = vmul.f32 %v2343, 0.17677669
    %v2360 = vmul.f32 %v2348, 0.17677669
    %v2361 = vmul.f32 %v2353, 0.17677669
    %v2362 = vmax.f32 %v2356, 0.0
    %v2363 = vmax.f32 %v2357, 0.0
    %v2364 = vmax.f32 %v2358, 0.0
    %v2365 = vmax.f32 %v2359, 0.0
    %v2366 = vmax.f32 %v2360, 0.0
    %v2367 = vmax.f32 %v2361, 0.0
    %v2368 = vsel %vm658, %v2362, -inf
    %2369 = vmax.xlane.f32.xlu0 %v2368
    %v2370 = vpop.xlane.xlu0 %2369
    %v2371 = vsel %vm658, %v2363, -inf
    %2372 = vmax.xlane.f32.xlu0 %v2371
    %v2373 = vpop.xlane.xlu0 %2372
    %v2374 = vsel %vm658, %v2364, -inf
    %2375 = vmax.xlane.f32.xlu0 %v2374
    %v2376 = vpop.xlane.xlu0 %2375
    %v2377 = vsel %vm658, %v2365, -inf
    %2378 = vmax.xlane.f32.xlu0 %v2377
    %v2379 = vpop.xlane.xlu0 %2378
    %v2380 = vsel %vm658, %v2366, -inf
    %2381 = vmax.xlane.f32.xlu0 %v2380
    %v2382 = vpop.xlane.xlu0 %2381
    %v2383 = vsel %vm658, %v2367, -inf
    %2384 = vmax.xlane.f32.xlu0 %v2383
    %v2385 = vpop.xlane.xlu0 %2384
    %v2386 = vsub.f32 %v2362, %v2370
    %v2387 = vsub.f32 %v2363, %v2373
    %v2388 = vsub.f32 %v2364, %v2376
    %v2389 = vsub.f32 %v2365, %v2379
    %v2390 = vsub.f32 %v2366, %v2382
    %v2391 = vsub.f32 %v2367, %v2385
    %v2392 = vmul.f32 %v2386, 1.442695
    %v2393 = vpow.pop %v2392
    %v2394 = vmul.f32 %v2387, 1.442695
    %v2395 = vpow.pop %v2394
    %v2396 = vmul.f32 %v2388, 1.442695
    %v2397 = vpow.pop %v2396
    %v2398 = vmul.f32 %v2389, 1.442695
    %v2399 = vpow.pop %v2398
    %v2400 = vmul.f32 %v2390, 1.442695
    %v2401 = vpow.pop %v2400
    %v2402 = vmul.f32 %v2391, 1.442695
    %v2403 = vpow.pop %v2402
    %v2404 = vsel %vm658, %v2393, 0.0
    %2405 = vadd.xlane.f32.xlu0 %v2404
    %v2406 = vpop.xlane.xlu0 %2405
    %v2407 = vsel %vm658, %v2395, 0.0
    %2408 = vadd.xlane.f32.xlu0 %v2407
    %v2409 = vpop.xlane.xlu0 %2408
    %v2410 = vsel %vm658, %v2397, 0.0
    %2411 = vadd.xlane.f32.xlu0 %v2410
    %v2412 = vpop.xlane.xlu0 %2411
    %v2413 = vsel %vm658, %v2399, 0.0
    %2414 = vadd.xlane.f32.xlu0 %v2413
    %v2415 = vpop.xlane.xlu0 %2414
    %v2416 = vsel %vm658, %v2401, 0.0
    %2417 = vadd.xlane.f32.xlu0 %v2416
    %v2418 = vpop.xlane.xlu0 %2417
    %v2419 = vsel %vm658, %v2403, 0.0
    %2420 = vadd.xlane.f32.xlu0 %v2419
    %v2421 = vpop.xlane.xlu0 %2420
    %v2422 = vrcp.pop %v2406
    %v2423 = vrcp.pop %v2409
    %v2424 = vrcp.pop %v2412
    %v2425 = vrcp.pop %v2415
    %v2426 = vrcp.pop %v2418
    %v2427 = vrcp.pop %v2421
    %v2428 = vmul.f32 %v2393, %v2422
    %v2429 = vmul.f32 %v2395, %v2423
    %v2430 = vmul.f32 %v2397, %v2424
    %v2431 = vmul.f32 %v2399, %v2425
    %v2432 = vmul.f32 %v2401, %v2426
    %v2433 = vmul.f32 %v2403, %v2427
    %v2434 = vadd.f32 %v2428, %v2429
    %v2435 = vadd.f32 %v2431, %v2432
    %v2436 = vadd.f32 %v2434, %v2430
    %v2437 = vadd.f32 %v2435, %v2433
    %v2438 = vsub.f32 %v2436, %v484
    %v2439 = vsub.f32 %v2437, %v485
    %v2440 = vmul.f32 %v2438, %v2438
    %v2441 = vmul.f32 %v2439, %v2439
    %v2442 = vadd.f32 %v1587, %v2440
    %v2443 = vadd.f32 %v1588, %v2441
    %v2445 = vsel %vm658, %v2428, 0
    %v2448 = vsel %vm658, %v2429, 0
    %v2451 = vsel %vm658, %v2430, 0
    %2453 = vmatprep.subr.mxu0 0.0
    %2454 = vmatpush1.msra.mxu0 0.0
    %2455 = vmatprep.subr.mxu0 0.0
    %2456 = vmatpush1.msra.mxu0 0.0
    %2457 = vmatprep.subr.mxu0 0.0
    %2458 = vmatpush1.msra.mxu0 0.0
    %2459 = vmatprep.subr.mxu0 0.0
    %2460 = vmatpush1.msra.mxu0 0.0
    %2461 = vmatprep.subr.mxu0 0.0
    %2462 = vmatpush1.msra.mxu0 0.0
    %2463 = vmatprep.subr.mxu0 0.0
    %2464 = vmatpush1.msra.mxu0 0.0
    %2465 = vmatprep.subr.mxu0 0.0
    %2466 = vmatpush1.msra.mxu0 0.0
    %2467 = vmatprep.subr.mxu0 0.0
    %2468 = vmatpush1.msra.mxu0 0.0
    %2469 = vmatprep.subr.mxu0 0.0
    %2470 = vmatpush1.msra.mxu0 0.0
    %2471 = vmatprep.subr.mxu0 0.0
    %2472 = vmatpush1.msra.mxu0 0.0
    %2473 = vmatprep.subr.mxu0 0.0
    %2474 = vmatpush1.msra.mxu0 0.0
    %2475 = vmatprep.subr.mxu0 0.0
    %2476 = vmatpush1.msra.mxu0 0.0
    %2477 = vmatprep.subr.mxu0 0.0
    %2478 = vmatpush1.msra.mxu0 0.0
    %2479 = vmatprep.subr.mxu0 0.0
    %2480 = vmatpush1.msra.mxu0 0.0
    %2481 = vmatprep.subr.mxu0 0.0
    %2482 = vmatpush1.msra.mxu0 0.0
    %2483 = vmatprep.subr.mxu0 0.0
    %2484 = vmatpush1.msra.mxu0 %v330
    %2485 = vmatprep.subr.mxu0 0.0
    %2486 = vmatpush2.msra.mxu0 0.0
    %2487 = vmatprep.subr.mxu0 0.0
    %2488 = vmatpush2.msra.mxu0 0.0
    %2489 = vmatprep.subr.mxu0 0.0
    %2490 = vmatpush2.msra.mxu0 0.0
    %2491 = vmatprep.subr.mxu0 0.0
    %2492 = vmatpush2.msra.mxu0 0.0
    %2493 = vmatprep.subr.mxu0 0.0
    %2494 = vmatpush2.msra.mxu0 0.0
    %2495 = vmatprep.subr.mxu0 0.0
    %2496 = vmatpush2.msra.mxu0 0.0
    %2497 = vmatprep.subr.mxu0 0.0
    %2498 = vmatpush2.msra.mxu0 0.0
    %2499 = vmatprep.subr.mxu0 0.0
    %2500 = vmatpush2.msra.mxu0 0.0
    %2501 = vmatprep.subr.mxu0 0.0
    %2502 = vmatpush2.msra.mxu0 0.0
    %2503 = vmatprep.subr.mxu0 0.0
    %2504 = vmatpush2.msra.mxu0 0.0
    %2505 = vmatprep.subr.mxu0 0.0
    %2506 = vmatpush2.msra.mxu0 0.0
    %2507 = vmatprep.subr.mxu0 0.0
    %2508 = vmatpush2.msra.mxu0 0.0
    %2509 = vmatprep.subr.mxu0 0.0
    %2510 = vmatpush2.msra.mxu0 0.0
    %2511 = vmatprep.subr.mxu0 0.0
    %2512 = vmatpush2.msra.mxu0 0.0
    %2513 = vmatprep.subr.mxu0 0.0
    %2514 = vmatpush2.msra.mxu0 0.0
    %2515 = vmatprep.subr.mxu0 0.0
    %2516 = vmatpush2.msra.mxu0 0.0
    %2517 = vmatprep.mubr.f32.mxu0 0.0
    %2518 = vmatmul.mubr.f32.gmra.mxu0 %v2445
    %v2519 = vpop.f32.mrf.mxu0
    %v2520 = vadd.f32 0.0, %v2519
    %v2521 = vpop.f32.mrf.mxu0
    %2522 = vmatprep.mubr.f32.mxu0 0.0
    %2523 = vmatmul.mubr.f32.gmra.mxu0 %v2448
    %v2524 = vpop.f32.mrf.mxu0
    %v2525 = vadd.f32 0.0, %v2524
    %v2526 = vpop.f32.mrf.mxu0
    %2527 = vmatprep.mubr.f32.mxu0 0.0
    %2528 = vmatmul.mubr.f32.gmra.mxu0 %v2451
    %v2529 = vpop.f32.mrf.mxu0
    %v2530 = vadd.f32 0.0, %v2529
    %v2531 = vpop.f32.mrf.mxu0
    %2532 = vdwg.mxu0
    %v2534 = vsel %vm658, %v2431, 0
    %v2537 = vsel %vm658, %v2432, 0
    %v2540 = vsel %vm658, %v2433, 0
    %2542 = vmatprep.subr.mxu0 0.0
    %2543 = vmatpush1.msra.mxu0 0.0
    %2544 = vmatprep.subr.mxu0 0.0
    %2545 = vmatpush1.msra.mxu0 0.0
    %2546 = vmatprep.subr.mxu0 0.0
    %2547 = vmatpush1.msra.mxu0 0.0
    %2548 = vmatprep.subr.mxu0 0.0
    %2549 = vmatpush1.msra.mxu0 0.0
    %2550 = vmatprep.subr.mxu0 0.0
    %2551 = vmatpush1.msra.mxu0 0.0
    %2552 = vmatprep.subr.mxu0 0.0
    %2553 = vmatpush1.msra.mxu0 0.0
    %2554 = vmatprep.subr.mxu0 0.0
    %2555 = vmatpush1.msra.mxu0 0.0
    %2556 = vmatprep.subr.mxu0 0.0
    %2557 = vmatpush1.msra.mxu0 0.0
    %2558 = vmatprep.subr.mxu0 0.0
    %2559 = vmatpush1.msra.mxu0 0.0
    %2560 = vmatprep.subr.mxu0 0.0
    %2561 = vmatpush1.msra.mxu0 0.0
    %2562 = vmatprep.subr.mxu0 0.0
    %2563 = vmatpush1.msra.mxu0 0.0
    %2564 = vmatprep.subr.mxu0 0.0
    %2565 = vmatpush1.msra.mxu0 0.0
    %2566 = vmatprep.subr.mxu0 0.0
    %2567 = vmatpush1.msra.mxu0 0.0
    %2568 = vmatprep.subr.mxu0 0.0
    %2569 = vmatpush1.msra.mxu0 0.0
    %2570 = vmatprep.subr.mxu0 0.0
    %2571 = vmatpush1.msra.mxu0 0.0
    %2572 = vmatprep.subr.mxu0 0.0
    %2573 = vmatpush1.msra.mxu0 %v331
    %2574 = vmatprep.subr.mxu0 0.0
    %2575 = vmatpush2.msra.mxu0 0.0
    %2576 = vmatprep.subr.mxu0 0.0
    %2577 = vmatpush2.msra.mxu0 0.0
    %2578 = vmatprep.subr.mxu0 0.0
    %2579 = vmatpush2.msra.mxu0 0.0
    %2580 = vmatprep.subr.mxu0 0.0
    %2581 = vmatpush2.msra.mxu0 0.0
    %2582 = vmatprep.subr.mxu0 0.0
    %2583 = vmatpush2.msra.mxu0 0.0
    %2584 = vmatprep.subr.mxu0 0.0
    %2585 = vmatpush2.msra.mxu0 0.0
    %2586 = vmatprep.subr.mxu0 0.0
    %2587 = vmatpush2.msra.mxu0 0.0
    %2588 = vmatprep.subr.mxu0 0.0
    %2589 = vmatpush2.msra.mxu0 0.0
    %2590 = vmatprep.subr.mxu0 0.0
    %2591 = vmatpush2.msra.mxu0 0.0
    %2592 = vmatprep.subr.mxu0 0.0
    %2593 = vmatpush2.msra.mxu0 0.0
    %2594 = vmatprep.subr.mxu0 0.0
    %2595 = vmatpush2.msra.mxu0 0.0
    %2596 = vmatprep.subr.mxu0 0.0
    %2597 = vmatpush2.msra.mxu0 0.0
    %2598 = vmatprep.subr.mxu0 0.0
    %2599 = vmatpush2.msra.mxu0 0.0
    %2600 = vmatprep.subr.mxu0 0.0
    %2601 = vmatpush2.msra.mxu0 0.0
    %2602 = vmatprep.subr.mxu0 0.0
    %2603 = vmatpush2.msra.mxu0 0.0
    %2604 = vmatprep.subr.mxu0 0.0
    %2605 = vmatpush2.msra.mxu0 0.0
    %2606 = vmatprep.mubr.f32.mxu0 0.0
    %2607 = vmatmul.mubr.f32.gmra.mxu0 %v2534
    %v2608 = vpop.f32.mrf.mxu0
    %v2609 = vadd.f32 0.0, %v2608
    %v2610 = vpop.f32.mrf.mxu0
    %2611 = vmatprep.mubr.f32.mxu0 0.0
    %2612 = vmatmul.mubr.f32.gmra.mxu0 %v2537
    %v2613 = vpop.f32.mrf.mxu0
    %v2614 = vadd.f32 0.0, %v2613
    %v2615 = vpop.f32.mrf.mxu0
    %2616 = vmatprep.mubr.f32.mxu0 0.0
    %2617 = vmatmul.mubr.f32.gmra.mxu0 %v2540
    %v2618 = vpop.f32.mrf.mxu0
    %v2619 = vadd.f32 0.0, %v2618
    %v2620 = vpop.f32.mrf.mxu0
    %2621 = vdwg.mxu0
    %2622 = vmatprep.subr.mxu0 0.0
    %2623 = vmatpush1.msra.mxu0 0.0
    %2624 = vmatprep.subr.mxu0 0.0
    %2625 = vmatpush1.msra.mxu0 0.0
    %2626 = vmatprep.subr.mxu0 0.0
    %2627 = vmatpush1.msra.mxu0 0.0
    %2628 = vmatprep.subr.mxu0 0.0
    %2629 = vmatpush1.msra.mxu0 0.0
    %2630 = vmatprep.subr.mxu0 0.0
    %2631 = vmatpush1.msra.mxu0 0.0
    %2632 = vmatprep.subr.mxu0 0.0
    %2633 = vmatpush1.msra.mxu0 0.0
    %2634 = vmatprep.subr.mxu0 0.0
    %2635 = vmatpush1.msra.mxu0 0.0
    %2636 = vmatprep.subr.mxu0 0.0
    %2637 = vmatpush1.msra.mxu0 0.0
    %2638 = vmatprep.subr.mxu0 0.0
    %2639 = vmatpush1.msra.mxu0 0.0
    %2640 = vmatprep.subr.mxu0 0.0
    %2641 = vmatpush1.msra.mxu0 0.0
    %2642 = vmatprep.subr.mxu0 0.0
    %2643 = vmatpush1.msra.mxu0 0.0
    %2644 = vmatprep.subr.mxu0 0.0
    %2645 = vmatpush1.msra.mxu0 0.0
    %2646 = vmatprep.subr.mxu0 0.0
    %2647 = vmatpush1.msra.mxu0 0.0
    %2648 = vmatprep.subr.mxu0 0.0
    %2649 = vmatpush1.msra.mxu0 0.0
    %2650 = vmatprep.subr.mxu0 0.0
    %2651 = vmatpush1.msra.mxu0 0.0
    %2652 = vmatprep.subr.mxu0 0.0
    %2653 = vmatpush1.msra.mxu0 %v2520
    %2654 = vmatprep.subr.mxu0 0.0
    %2655 = vmatpush2.msra.mxu0 0.0
    %2656 = vmatprep.subr.mxu0 0.0
    %2657 = vmatpush2.msra.mxu0 0.0
    %2658 = vmatprep.subr.mxu0 0.0
    %2659 = vmatpush2.msra.mxu0 0.0
    %2660 = vmatprep.subr.mxu0 0.0
    %2661 = vmatpush2.msra.mxu0 0.0
    %2662 = vmatprep.subr.mxu0 0.0
    %2663 = vmatpush2.msra.mxu0 0.0
    %2664 = vmatprep.subr.mxu0 0.0
    %2665 = vmatpush2.msra.mxu0 0.0
    %2666 = vmatprep.subr.mxu0 0.0
    %2667 = vmatpush2.msra.mxu0 0.0
    %2668 = vmatprep.subr.mxu0 0.0
    %2669 = vmatpush2.msra.mxu0 0.0
    %2670 = vmatprep.subr.mxu0 0.0
    %2671 = vmatpush2.msra.mxu0 0.0
    %2672 = vmatprep.subr.mxu0 0.0
    %2673 = vmatpush2.msra.mxu0 0.0
    %2674 = vmatprep.subr.mxu0 0.0
    %2675 = vmatpush2.msra.mxu0 0.0
    %2676 = vmatprep.subr.mxu0 0.0
    %2677 = vmatpush2.msra.mxu0 0.0
    %2678 = vmatprep.subr.mxu0 0.0
    %2679 = vmatpush2.msra.mxu0 0.0
    %2680 = vmatprep.subr.mxu0 0.0
    %2681 = vmatpush2.msra.mxu0 0.0
    %2682 = vmatprep.subr.mxu0 0.0
    %2683 = vmatpush2.msra.mxu0 0.0
    %2684 = vmatprep.subr.mxu0 0.0
    %2685 = vmatpush2.msra.mxu0 0.0
    %2686 = vmatprep.mubr.f32.mxu0 0.0
    %2687 = vmatmul.mubr.f32.gmra.mxu0 %v2445
    %v2688 = vpop.f32.mrf.mxu0
    %v2689 = vadd.f32 0.0, %v2688
    %v2690 = vpop.f32.mrf.mxu0
    %2691 = vdwg.mxu0
    %2692 = vmatprep.subr.mxu0 0.0
    %2693 = vmatpush1.msra.mxu0 0.0
    %2694 = vmatprep.subr.mxu0 0.0
    %2695 = vmatpush1.msra.mxu0 0.0
    %2696 = vmatprep.subr.mxu0 0.0
    %2697 = vmatpush1.msra.mxu0 0.0
    %2698 = vmatprep.subr.mxu0 0.0
    %2699 = vmatpush1.msra.mxu0 0.0
    %2700 = vmatprep.subr.mxu0 0.0
    %2701 = vmatpush1.msra.mxu0 0.0
    %2702 = vmatprep.subr.mxu0 0.0
    %2703 = vmatpush1.msra.mxu0 0.0
    %2704 = vmatprep.subr.mxu0 0.0
    %2705 = vmatpush1.msra.mxu0 0.0
    %2706 = vmatprep.subr.mxu0 0.0
    %2707 = vmatpush1.msra.mxu0 0.0
    %2708 = vmatprep.subr.mxu0 0.0
    %2709 = vmatpush1.msra.mxu0 0.0
    %2710 = vmatprep.subr.mxu0 0.0
    %2711 = vmatpush1.msra.mxu0 0.0
    %2712 = vmatprep.subr.mxu0 0.0
    %2713 = vmatpush1.msra.mxu0 0.0
    %2714 = vmatprep.subr.mxu0 0.0
    %2715 = vmatpush1.msra.mxu0 0.0
    %2716 = vmatprep.subr.mxu0 0.0
    %2717 = vmatpush1.msra.mxu0 0.0
    %2718 = vmatprep.subr.mxu0 0.0
    %2719 = vmatpush1.msra.mxu0 0.0
    %2720 = vmatprep.subr.mxu0 0.0
    %2721 = vmatpush1.msra.mxu0 0.0
    %2722 = vmatprep.subr.mxu0 0.0
    %2723 = vmatpush1.msra.mxu0 %v2609
    %2724 = vmatprep.subr.mxu0 0.0
    %2725 = vmatpush2.msra.mxu0 0.0
    %2726 = vmatprep.subr.mxu0 0.0
    %2727 = vmatpush2.msra.mxu0 0.0
    %2728 = vmatprep.subr.mxu0 0.0
    %2729 = vmatpush2.msra.mxu0 0.0
    %2730 = vmatprep.subr.mxu0 0.0
    %2731 = vmatpush2.msra.mxu0 0.0
    %2732 = vmatprep.subr.mxu0 0.0
    %2733 = vmatpush2.msra.mxu0 0.0
    %2734 = vmatprep.subr.mxu0 0.0
    %2735 = vmatpush2.msra.mxu0 0.0
    %2736 = vmatprep.subr.mxu0 0.0
    %2737 = vmatpush2.msra.mxu0 0.0
    %2738 = vmatprep.subr.mxu0 0.0
    %2739 = vmatpush2.msra.mxu0 0.0
    %2740 = vmatprep.subr.mxu0 0.0
    %2741 = vmatpush2.msra.mxu0 0.0
    %2742 = vmatprep.subr.mxu0 0.0
    %2743 = vmatpush2.msra.mxu0 0.0
    %2744 = vmatprep.subr.mxu0 0.0
    %2745 = vmatpush2.msra.mxu0 0.0
    %2746 = vmatprep.subr.mxu0 0.0
    %2747 = vmatpush2.msra.mxu0 0.0
    %2748 = vmatprep.subr.mxu0 0.0
    %2749 = vmatpush2.msra.mxu0 0.0
    %2750 = vmatprep.subr.mxu0 0.0
    %2751 = vmatpush2.msra.mxu0 0.0
    %2752 = vmatprep.subr.mxu0 0.0
    %2753 = vmatpush2.msra.mxu0 0.0
    %2754 = vmatprep.subr.mxu0 0.0
    %2755 = vmatpush2.msra.mxu0 0.0
    %2756 = vmatprep.mubr.f32.mxu0 0.0
    %2757 = vmatmul.mubr.f32.gmra.mxu0 %v2534
    %v2758 = vpop.f32.mrf.mxu0
    %v2759 = vadd.f32 0.0, %v2758
    %v2760 = vpop.f32.mrf.mxu0
    %2761 = vdwg.mxu0
    %s2762 = scalar_lea.vmem %s6, 32
    %2763 = vst.msk [vmem:[%s2762] sm:$0xff] %vm50, %v2689
    %2764 = vst.msk [vmem:[%s2762 + $0x8] sm:$0xff] %vm50, %v2759
    %2765 = vmatprep.subr.mxu0 0.0
    %2766 = vmatpush1.msra.mxu0 0.0
    %2767 = vmatprep.subr.mxu0 0.0
    %2768 = vmatpush1.msra.mxu0 0.0
    %2769 = vmatprep.subr.mxu0 0.0
    %2770 = vmatpush1.msra.mxu0 0.0
    %2771 = vmatprep.subr.mxu0 0.0
    %2772 = vmatpush1.msra.mxu0 0.0
    %2773 = vmatprep.subr.mxu0 0.0
    %2774 = vmatpush1.msra.mxu0 0.0
    %2775 = vmatprep.subr.mxu0 0.0
    %2776 = vmatpush1.msra.mxu0 0.0
    %2777 = vmatprep.subr.mxu0 0.0
    %2778 = vmatpush1.msra.mxu0 0.0
    %2779 = vmatprep.subr.mxu0 0.0
    %2780 = vmatpush1.msra.mxu0 0.0
    %2781 = vmatprep.subr.mxu0 0.0
    %2782 = vmatpush1.msra.mxu0 0.0
    %2783 = vmatprep.subr.mxu0 0.0
    %2784 = vmatpush1.msra.mxu0 0.0
    %2785 = vmatprep.subr.mxu0 0.0
    %2786 = vmatpush1.msra.mxu0 0.0
    %2787 = vmatprep.subr.mxu0 0.0
    %2788 = vmatpush1.msra.mxu0 0.0
    %2789 = vmatprep.subr.mxu0 0.0
    %2790 = vmatpush1.msra.mxu0 0.0
    %2791 = vmatprep.subr.mxu0 0.0
    %2792 = vmatpush1.msra.mxu0 0.0
    %2793 = vmatprep.subr.mxu0 0.0
    %2794 = vmatpush1.msra.mxu0 0.0
    %2795 = vmatprep.subr.mxu0 0.0
    %2796 = vmatpush1.msra.mxu0 %v2525
    %2797 = vmatprep.subr.mxu0 0.0
    %2798 = vmatpush2.msra.mxu0 0.0
    %2799 = vmatprep.subr.mxu0 0.0
    %2800 = vmatpush2.msra.mxu0 0.0
    %2801 = vmatprep.subr.mxu0 0.0
    %2802 = vmatpush2.msra.mxu0 0.0
    %2803 = vmatprep.subr.mxu0 0.0
    %2804 = vmatpush2.msra.mxu0 0.0
    %2805 = vmatprep.subr.mxu0 0.0
    %2806 = vmatpush2.msra.mxu0 0.0
    %2807 = vmatprep.subr.mxu0 0.0
    %2808 = vmatpush2.msra.mxu0 0.0
    %2809 = vmatprep.subr.mxu0 0.0
    %2810 = vmatpush2.msra.mxu0 0.0
    %2811 = vmatprep.subr.mxu0 0.0
    %2812 = vmatpush2.msra.mxu0 0.0
    %2813 = vmatprep.subr.mxu0 0.0
    %2814 = vmatpush2.msra.mxu0 0.0
    %2815 = vmatprep.subr.mxu0 0.0
    %2816 = vmatpush2.msra.mxu0 0.0
    %2817 = vmatprep.subr.mxu0 0.0
    %2818 = vmatpush2.msra.mxu0 0.0
    %2819 = vmatprep.subr.mxu0 0.0
    %2820 = vmatpush2.msra.mxu0 0.0
    %2821 = vmatprep.subr.mxu0 0.0
    %2822 = vmatpush2.msra.mxu0 0.0
    %2823 = vmatprep.subr.mxu0 0.0
    %2824 = vmatpush2.msra.mxu0 0.0
    %2825 = vmatprep.subr.mxu0 0.0
    %2826 = vmatpush2.msra.mxu0 0.0
    %2827 = vmatprep.subr.mxu0 0.0
    %2828 = vmatpush2.msra.mxu0 0.0
    %2829 = vmatprep.mubr.f32.mxu0 0.0
    %2830 = vmatmul.mubr.f32.gmra.mxu0 %v2448
    %v2831 = vpop.f32.mrf.mxu0
    %v2832 = vadd.f32 0.0, %v2831
    %v2833 = vpop.f32.mrf.mxu0
    %2834 = vdwg.mxu0
    %2835 = vmatprep.subr.mxu0 0.0
    %2836 = vmatpush1.msra.mxu0 0.0
    %2837 = vmatprep.subr.mxu0 0.0
    %2838 = vmatpush1.msra.mxu0 0.0
    %2839 = vmatprep.subr.mxu0 0.0
    %2840 = vmatpush1.msra.mxu0 0.0
    %2841 = vmatprep.subr.mxu0 0.0
    %2842 = vmatpush1.msra.mxu0 0.0
    %2843 = vmatprep.subr.mxu0 0.0
    %2844 = vmatpush1.msra.mxu0 0.0
    %2845 = vmatprep.subr.mxu0 0.0
    %2846 = vmatpush1.msra.mxu0 0.0
    %2847 = vmatprep.subr.mxu0 0.0
    %2848 = vmatpush1.msra.mxu0 0.0
    %2849 = vmatprep.subr.mxu0 0.0
    %2850 = vmatpush1.msra.mxu0 0.0
    %2851 = vmatprep.subr.mxu0 0.0
    %2852 = vmatpush1.msra.mxu0 0.0
    %2853 = vmatprep.subr.mxu0 0.0
    %2854 = vmatpush1.msra.mxu0 0.0
    %2855 = vmatprep.subr.mxu0 0.0
    %2856 = vmatpush1.msra.mxu0 0.0
    %2857 = vmatprep.subr.mxu0 0.0
    %2858 = vmatpush1.msra.mxu0 0.0
    %2859 = vmatprep.subr.mxu0 0.0
    %2860 = vmatpush1.msra.mxu0 0.0
    %2861 = vmatprep.subr.mxu0 0.0
    %2862 = vmatpush1.msra.mxu0 0.0
    %2863 = vmatprep.subr.mxu0 0.0
    %2864 = vmatpush1.msra.mxu0 0.0
    %2865 = vmatprep.subr.mxu0 0.0
    %2866 = vmatpush1.msra.mxu0 %v2614
    %2867 = vmatprep.subr.mxu0 0.0
    %2868 = vmatpush2.msra.mxu0 0.0
    %2869 = vmatprep.subr.mxu0 0.0
    %2870 = vmatpush2.msra.mxu0 0.0
    %2871 = vmatprep.subr.mxu0 0.0
    %2872 = vmatpush2.msra.mxu0 0.0
    %2873 = vmatprep.subr.mxu0 0.0
    %2874 = vmatpush2.msra.mxu0 0.0
    %2875 = vmatprep.subr.mxu0 0.0
    %2876 = vmatpush2.msra.mxu0 0.0
    %2877 = vmatprep.subr.mxu0 0.0
    %2878 = vmatpush2.msra.mxu0 0.0
    %2879 = vmatprep.subr.mxu0 0.0
    %2880 = vmatpush2.msra.mxu0 0.0
    %2881 = vmatprep.subr.mxu0 0.0
    %2882 = vmatpush2.msra.mxu0 0.0
    %2883 = vmatprep.subr.mxu0 0.0
    %2884 = vmatpush2.msra.mxu0 0.0
    %2885 = vmatprep.subr.mxu0 0.0
    %2886 = vmatpush2.msra.mxu0 0.0
    %2887 = vmatprep.subr.mxu0 0.0
    %2888 = vmatpush2.msra.mxu0 0.0
    %2889 = vmatprep.subr.mxu0 0.0
    %2890 = vmatpush2.msra.mxu0 0.0
    %2891 = vmatprep.subr.mxu0 0.0
    %2892 = vmatpush2.msra.mxu0 0.0
    %2893 = vmatprep.subr.mxu0 0.0
    %2894 = vmatpush2.msra.mxu0 0.0
    %2895 = vmatprep.subr.mxu0 0.0
    %2896 = vmatpush2.msra.mxu0 0.0
    %2897 = vmatprep.subr.mxu0 0.0
    %2898 = vmatpush2.msra.mxu0 0.0
    %2899 = vmatprep.mubr.f32.mxu0 0.0
    %2900 = vmatmul.mubr.f32.gmra.mxu0 %v2537
    %v2901 = vpop.f32.mrf.mxu0
    %v2902 = vadd.f32 0.0, %v2901
    %v2903 = vpop.f32.mrf.mxu0
    %2904 = vdwg.mxu0
    %s2905 = scalar_lea.vmem %s6, 80
    %2906 = vst.msk [vmem:[%s2905] sm:$0xff] %vm50, %v2832
    %2907 = vst.msk [vmem:[%s2905 + $0x8] sm:$0xff] %vm50, %v2902
    %2908 = vmatprep.subr.mxu0 0.0
    %2909 = vmatpush1.msra.mxu0 0.0
    %2910 = vmatprep.subr.mxu0 0.0
    %2911 = vmatpush1.msra.mxu0 0.0
    %2912 = vmatprep.subr.mxu0 0.0
    %2913 = vmatpush1.msra.mxu0 0.0
    %2914 = vmatprep.subr.mxu0 0.0
    %2915 = vmatpush1.msra.mxu0 0.0
    %2916 = vmatprep.subr.mxu0 0.0
    %2917 = vmatpush1.msra.mxu0 0.0
    %2918 = vmatprep.subr.mxu0 0.0
    %2919 = vmatpush1.msra.mxu0 0.0
    %2920 = vmatprep.subr.mxu0 0.0
    %2921 = vmatpush1.msra.mxu0 0.0
    %2922 = vmatprep.subr.mxu0 0.0
    %2923 = vmatpush1.msra.mxu0 0.0
    %2924 = vmatprep.subr.mxu0 0.0
    %2925 = vmatpush1.msra.mxu0 0.0
    %2926 = vmatprep.subr.mxu0 0.0
    %2927 = vmatpush1.msra.mxu0 0.0
    %2928 = vmatprep.subr.mxu0 0.0
    %2929 = vmatpush1.msra.mxu0 0.0
    %2930 = vmatprep.subr.mxu0 0.0
    %2931 = vmatpush1.msra.mxu0 0.0
    %2932 = vmatprep.subr.mxu0 0.0
    %2933 = vmatpush1.msra.mxu0 0.0
    %2934 = vmatprep.subr.mxu0 0.0
    %2935 = vmatpush1.msra.mxu0 0.0
    %2936 = vmatprep.subr.mxu0 0.0
    %2937 = vmatpush1.msra.mxu0 0.0
    %2938 = vmatprep.subr.mxu0 0.0
    %2939 = vmatpush1.msra.mxu0 %v2530
    %2940 = vmatprep.subr.mxu0 0.0
    %2941 = vmatpush2.msra.mxu0 0.0
    %2942 = vmatprep.subr.mxu0 0.0
    %2943 = vmatpush2.msra.mxu0 0.0
    %2944 = vmatprep.subr.mxu0 0.0
    %2945 = vmatpush2.msra.mxu0 0.0
    %2946 = vmatprep.subr.mxu0 0.0
    %2947 = vmatpush2.msra.mxu0 0.0
    %2948 = vmatprep.subr.mxu0 0.0
    %2949 = vmatpush2.msra.mxu0 0.0
    %2950 = vmatprep.subr.mxu0 0.0
    %2951 = vmatpush2.msra.mxu0 0.0
    %2952 = vmatprep.subr.mxu0 0.0
    %2953 = vmatpush2.msra.mxu0 0.0
    %2954 = vmatprep.subr.mxu0 0.0
    %2955 = vmatpush2.msra.mxu0 0.0
    %2956 = vmatprep.subr.mxu0 0.0
    %2957 = vmatpush2.msra.mxu0 0.0
    %2958 = vmatprep.subr.mxu0 0.0
    %2959 = vmatpush2.msra.mxu0 0.0
    %2960 = vmatprep.subr.mxu0 0.0
    %2961 = vmatpush2.msra.mxu0 0.0
    %2962 = vmatprep.subr.mxu0 0.0
    %2963 = vmatpush2.msra.mxu0 0.0
    %2964 = vmatprep.subr.mxu0 0.0
    %2965 = vmatpush2.msra.mxu0 0.0
    %2966 = vmatprep.subr.mxu0 0.0
    %2967 = vmatpush2.msra.mxu0 0.0
    %2968 = vmatprep.subr.mxu0 0.0
    %2969 = vmatpush2.msra.mxu0 0.0
    %2970 = vmatprep.subr.mxu0 0.0
    %2971 = vmatpush2.msra.mxu0 0.0
    %2972 = vmatprep.mubr.f32.mxu0 0.0
    %2973 = vmatmul.mubr.f32.gmra.mxu0 %v2451
    %v2974 = vpop.f32.mrf.mxu0
    %v2975 = vadd.f32 0.0, %v2974
    %v2976 = vpop.f32.mrf.mxu0
    %2977 = vdwg.mxu0
    %2978 = vmatprep.subr.mxu0 0.0
    %2979 = vmatpush1.msra.mxu0 0.0
    %2980 = vmatprep.subr.mxu0 0.0
    %2981 = vmatpush1.msra.mxu0 0.0
    %2982 = vmatprep.subr.mxu0 0.0
    %2983 = vmatpush1.msra.mxu0 0.0
    %2984 = vmatprep.subr.mxu0 0.0
    %2985 = vmatpush1.msra.mxu0 0.0
    %2986 = vmatprep.subr.mxu0 0.0
    %2987 = vmatpush1.msra.mxu0 0.0
    %2988 = vmatprep.subr.mxu0 0.0
    %2989 = vmatpush1.msra.mxu0 0.0
    %2990 = vmatprep.subr.mxu0 0.0
    %2991 = vmatpush1.msra.mxu0 0.0
    %2992 = vmatprep.subr.mxu0 0.0
    %2993 = vmatpush1.msra.mxu0 0.0
    %2994 = vmatprep.subr.mxu0 0.0
    %2995 = vmatpush1.msra.mxu0 0.0
    %2996 = vmatprep.subr.mxu0 0.0
    %2997 = vmatpush1.msra.mxu0 0.0
    %2998 = vmatprep.subr.mxu0 0.0
    %2999 = vmatpush1.msra.mxu0 0.0
    %3000 = vmatprep.subr.mxu0 0.0
    %3001 = vmatpush1.msra.mxu0 0.0
    %3002 = vmatprep.subr.mxu0 0.0
    %3003 = vmatpush1.msra.mxu0 0.0
    %3004 = vmatprep.subr.mxu0 0.0
    %3005 = vmatpush1.msra.mxu0 0.0
    %3006 = vmatprep.subr.mxu0 0.0
    %3007 = vmatpush1.msra.mxu0 0.0
    %3008 = vmatprep.subr.mxu0 0.0
    %3009 = vmatpush1.msra.mxu0 %v2619
    %3010 = vmatprep.subr.mxu0 0.0
    %3011 = vmatpush2.msra.mxu0 0.0
    %3012 = vmatprep.subr.mxu0 0.0
    %3013 = vmatpush2.msra.mxu0 0.0
    %3014 = vmatprep.subr.mxu0 0.0
    %3015 = vmatpush2.msra.mxu0 0.0
    %3016 = vmatprep.subr.mxu0 0.0
    %3017 = vmatpush2.msra.mxu0 0.0
    %3018 = vmatprep.subr.mxu0 0.0
    %3019 = vmatpush2.msra.mxu0 0.0
    %3020 = vmatprep.subr.mxu0 0.0
    %3021 = vmatpush2.msra.mxu0 0.0
    %3022 = vmatprep.subr.mxu0 0.0
    %3023 = vmatpush2.msra.mxu0 0.0
    %3024 = vmatprep.subr.mxu0 0.0
    %3025 = vmatpush2.msra.mxu0 0.0
    %3026 = vmatprep.subr.mxu0 0.0
    %3027 = vmatpush2.msra.mxu0 0.0
    %3028 = vmatprep.subr.mxu0 0.0
    %3029 = vmatpush2.msra.mxu0 0.0
    %3030 = vmatprep.subr.mxu0 0.0
    %3031 = vmatpush2.msra.mxu0 0.0
    %3032 = vmatprep.subr.mxu0 0.0
    %3033 = vmatpush2.msra.mxu0 0.0
    %3034 = vmatprep.subr.mxu0 0.0
    %3035 = vmatpush2.msra.mxu0 0.0
    %3036 = vmatprep.subr.mxu0 0.0
    %3037 = vmatpush2.msra.mxu0 0.0
    %3038 = vmatprep.subr.mxu0 0.0
    %3039 = vmatpush2.msra.mxu0 0.0
    %3040 = vmatprep.subr.mxu0 0.0
    %3041 = vmatpush2.msra.mxu0 0.0
    %3042 = vmatprep.mubr.f32.mxu0 0.0
    %3043 = vmatmul.mubr.f32.gmra.mxu0 %v2540
    %v3044 = vpop.f32.mrf.mxu0
    %v3045 = vadd.f32 0.0, %v3044
    %v3046 = vpop.f32.mrf.mxu0
    %3047 = vdwg.mxu0
    %s3048 = scalar_lea.vmem %s6, 128
    %3049 = vst.msk [vmem:[%s3048] sm:$0xff] %vm50, %v2975
    %3050 = vst.msk [vmem:[%s3048 + $0x8] sm:$0xff] %vm50, %v3045
    %v3051 = vsel %vm658, %v2442, 0.0
    %v3052 = vsel %vm658, %v2443, 0.0
    %v3053 = vadd.f32 %v3051, %v3052
    %v3054 = vsel %vm658, %v3053, 0.0
    %3055 = vadd.xlane.f32.xlu0 %v3054
    %v3056 = vpop.xlane.xlu0 %3055
    %v3057 = vrot.slane %v3056, 4
    %v3058 = vadd.f32 %v3056, %v3057
    %v3059 = vrot.slane %v3058, 2
    %v3060 = vadd.f32 %v3058, %v3059
    %v3061 = vrot.slane %v3060, 1
    %v3062 = vadd.f32 %v3060, %v3061
    %v3063 = vmul.f32 %v3062, 0.0026041667
    %vm3064 = vcmask 0
    %3065 = vst.msk [vmem:[#allocation5] sm:$0x1] %vm3064, %v3063
    // Predicated region
    $region26: #{global_confidence_attention.1} parent=1 // pred_check
      _
    $region27: #{global_confidence_attention.1} parent=1 // pred_check_branch
      %3067 = sbr.rel (0) target = $region29
    $region28: #{global_confidence_attention.1} parent=1 // pred_region
      %s3069 = ssub.s32 16, 16
      %3070 = vsyncadd [#allocation4], %s3069
      %s3072 = sshll.u32 [#allocation5], 4
      %s3073 = int_to_ptr.vmem [resolvable:$true] %s3072
      %3075 = dma.vmem_to_hbm [thread:$0]  %s3073, 16, %s5, [#allocation4]
    $region29: #{global_confidence_attention.1} parent=1 // pred_fallthru
      _
    // Predicated region
    $region30: #{global_confidence_attention.1} parent=1 // pred_check
      _
    $region31: #{global_confidence_attention.1} parent=1 // pred_check_branch
      %3077 = sbr.rel (0) target = $region33
    $region32: #{global_confidence_attention.1} parent=1 // pred_region
      _
    $region33: #{global_confidence_attention.1} parent=1 // pred_fallthru
      _
    // Predicated region
    $region34: #{global_confidence_attention.1} parent=1 // pred_check
      _
    $region35: #{global_confidence_attention.1} parent=1 // pred_check_branch
      %3079 = sbr.rel (0) target = $region37
    $region36: #{global_confidence_attention.1} parent=1 // pred_region
      %3080 = dma.done [#allocation4], 16
    $region37: #{global_confidence_attention.1} parent=1 // pred_fallthru
      _
    // Predicated region
    $region38: #{global_confidence_attention.1} parent=1 // pred_check
      _
    $region39: #{global_confidence_attention.1} parent=1 // pred_check_branch
      %3082 = sbr.rel (0) target = $region41
    $region40: #{global_confidence_attention.1} parent=1 // pred_region
      _
    $region41: #{global_confidence_attention.1} parent=1 // pred_fallthru
      _
    %3083 = vsyncpa [#allocation3], 1
    %3084 = vsyncpa [#allocation4], 1

</llo_original>
